<compile_context>
chip_gen: v6e
topology: v6e:2x2x1
jax: 0.10.0
libtpu: 0.0.40
codegen_flags: <defaults>
</compile_context>

<pallas_src>
import functools

import jax
import jax.numpy as jnp
from jax.experimental import pallas as pl
from jax.experimental.pallas import tpu as pltpu

BN_EPS = 1e-5
LANES = 128
DEFAULT_TILE_N = 1024


def _round_up(v, m):
    return ((v + m - 1) // m) * m


def _vmem_limit_bytes():
    """Generation-aware VMEM budget (~3/4 of physical)."""
    phys = None
    try:
        info = pltpu.get_tpu_info()
        phys = getattr(info, "vmem_capacity_bytes", None)
    except Exception:
        phys = None
    if not phys:
        phys = 64 * 1024 * 1024  # conservative: v7x per-TensorCore VMEM
    return int(phys) * 3 // 4


def _fused_vmem_estimate(tile_n, num_tiles, d_in_p, d_hid_p, d_out_p):
    n_pad = tile_n * num_tiles
    est = 0
    est += 2 * tile_n * d_in_p * 2          # x tile, double buffered, bf16
    est += 2 * d_in_p * d_hid_p * 2         # W1 (constant block, 2 bufs)
    est += 2 * d_hid_p * d_out_p * 2        # W2
    est += 2 * tile_n * d_out_p * 4         # out tile, double buffered, f32
    est += n_pad * d_hid_p * 4              # resident h1 scratch
    est += n_pad * d_out_p * 4              # resident y scratch
    est += 16 * (d_hid_p + d_out_p) * 4     # stats + scale/shift + BN params
    return est


# ---------------------------------------------------------------------------
# Fused kernel: grid = (phase, node-tile)
#   phase 0:  h1  = x @ W1                 (+ per-feature sum / sumsq of h1)
#   phase 1:  y   = relu(BN1(h1)) @ W2     (+ per-feature sum / sumsq of y)
#   phase 2:  out = relu(BN2(y))
# h1 and y never leave VMEM.
# ---------------------------------------------------------------------------
def fused_kernel(x_ref, w1_ref, w2_ref, bn1_ref, bn2_ref,      # inputs
                 o_ref,                                        # output
                 h1_ref, y_ref, stats1_ref, stats2_ref,        # scratch
                 ss1_ref, ss2_ref,
                 *, n_valid, tile_n, mask_last):
    p = pl.program_id(0)
    t = pl.program_id(1)
    inv_n = jnp.float32(1.0 / n_valid)

    # ------------------------- phase 0: first Linear ------------------------
    @pl.when(p == 0)
    def _phase0():
        @pl.when(t == 0)
        def _():
            stats1_ref[...] = jnp.zeros_like(stats1_ref)
            stats2_ref[...] = jnp.zeros_like(stats2_ref)

        # bf16 operands, f32 accumulation on the MXU.
        h = jnp.dot(x_ref[...], w1_ref[...], preferred_element_type=jnp.float32)
        h1_ref[t] = h
        # Padded node rows of x are zero (biases dropped) -> contribute 0.
        stats1_ref[...] += jnp.concatenate(
            [jnp.sum(h, axis=0, keepdims=True),
             jnp.sum(h * h, axis=0, keepdims=True)], axis=0)

    # -------------------- phase 1: BN1 + ReLU + second Linear ---------------
    @pl.when(p == 1)
    def _phase1():
        @pl.when(t == 0)
        def _():
            # BN1 scale/shift computed once from the finished batch stats.
            mean = stats1_ref[0:1, :] * inv_n
            var = jnp.maximum(stats1_ref[1:2, :] * inv_n - mean * mean, 0.0)
            scale = bn1_ref[0:1, :] * jax.lax.rsqrt(var + BN_EPS)
            shift = bn1_ref[1:2, :] - mean * scale
            ss1_ref[...] = jnp.concatenate([scale, shift], axis=0)

        h = h1_ref[t]
        hbn = jnp.maximum(h * ss1_ref[0:1, :] + ss1_ref[1:2, :], 0.0)
        if mask_last:
            # Only the tail tile has padded rows; cheap column mask.
            rem = n_valid - t * tile_n
            row = jax.lax.broadcasted_iota(jnp.int32, (tile_n, 1), 0)
            hbn = jnp.where(row < rem, hbn, 0.0)

        y = jnp.dot(hbn.astype(jnp.bfloat16), w2_ref[...],
                    preferred_element_type=jnp.float32)
        y_ref[t] = y
        stats2_ref[...] += jnp.concatenate(
            [jnp.sum(y, axis=0, keepdims=True),
             jnp.sum(y * y, axis=0, keepdims=True)], axis=0)

    # ------------------------- phase 2: BN2 + ReLU --------------------------
    @pl.when(p == 2)
    def _phase2():
        @pl.when(t == 0)
        def _():
            mean = stats2_ref[0:1, :] * inv_n
            var = jnp.maximum(stats2_ref[1:2, :] * inv_n - mean * mean, 0.0)
            scale = bn2_ref[0:1, :] * jax.lax.rsqrt(var + BN_EPS)
            shift = bn2_ref[1:2, :] - mean * scale
            ss2_ref[...] = jnp.concatenate([scale, shift], axis=0)

        y = y_ref[t]
        o_ref[...] = jnp.maximum(
            y * ss2_ref[0:1, :] + ss2_ref[1:2, :], 0.0).astype(o_ref.dtype)


# ---------------------------------------------------------------------------
# Wrapper
# ---------------------------------------------------------------------------
def apply_node_func(x, params, *, tile_n=DEFAULT_TILE_N):
    (w1, b1, g1, be1, w2, b2, go, beo) = params
    del b1, b2  # exactly cancelled by training-mode BN mean subtraction

    n, d_in = x.shape
    d_hidden = w1.shape[1]
    d_out = w2.shape[1]

    # Per-dim lane padding (no everything-to-max padding).
    d_in_p = _round_up(d_in, LANES)
    d_hid_p = _round_up(d_hidden, LANES)
    d_out_p = _round_up(d_out, LANES)

    tile_n = _round_up(min(tile_n, n), 8)
    num_tiles = pl.cdiv(n, tile_n)
    n_pad = num_tiles * tile_n
    mask_last = (n_pad != n)

    vmem_limit = _vmem_limit_bytes()
    if _fused_vmem_estimate(tile_n, num_tiles, d_in_p, d_hid_p, d_out_p) > vmem_limit:
        # TODO(synk): spill h1/y to HBM (3-pass pipeline) when the fused
        # intermediates exceed VMEM; not needed at GIN-typical node batches.
        raise ValueError("fused ApplyNodeFunc intermediates do not fit in VMEM")

    def pad2(a, rows, cols):
        return jnp.zeros((rows, cols), a.dtype).at[:a.shape[0], :a.shape[1]].set(a)

    # Lane-dense padded operands; bf16 for the MXU inputs.
    x_p = pad2(x, n_pad, d_in_p).astype(jnp.bfloat16)
    w1_p = pad2(w1, d_in_p, d_hid_p).astype(jnp.bfloat16)
    w2_p = pad2(w2, d_hid_p, d_out_p).astype(jnp.bfloat16)

    bn1 = jnp.zeros((2, d_hid_p), jnp.float32)
    bn1 = bn1.at[0, :d_hidden].set(g1[0]).at[1, :d_hidden].set(be1[0])
    bn2 = jnp.zeros((2, d_out_p), jnp.float32)
    bn2 = bn2.at[0, :d_out].set(go[0]).at[1, :d_out].set(beo[0])

    out = pl.pallas_call(
        functools.partial(fused_kernel, n_valid=n, tile_n=tile_n,
                          mask_last=mask_last),
        grid=(3, num_tiles),
        in_specs=[
            # x is only consumed in phase 0; constant index afterwards so the
            # pipeline does not re-DMA it during phases 1/2.
            pl.BlockSpec((tile_n, d_in_p), lambda p, t: (jnp.where(p == 0, t, 0), 0)),
            pl.BlockSpec((d_in_p, d_hid_p), lambda p, t: (0, 0)),
            pl.BlockSpec((d_hid_p, d_out_p), lambda p, t: (0, 0)),
            pl.BlockSpec((2, d_hid_p), lambda p, t: (0, 0)),
            pl.BlockSpec((2, d_out_p), lambda p, t: (0, 0)),
        ],
        out_specs=pl.BlockSpec((tile_n, d_out_p),
                               lambda p, t: (jnp.where(p == 2, t, 0), 0)),
        out_shape=jax.ShapeDtypeStruct((n_pad, d_out_p), jnp.float32),
        scratch_shapes=[
            pltpu.VMEM((num_tiles, tile_n, d_hid_p), jnp.float32),  # h1
            pltpu.VMEM((num_tiles, tile_n, d_out_p), jnp.float32),  # y
            pltpu.VMEM((2, d_hid_p), jnp.float32),                  # stats1
            pltpu.VMEM((2, d_out_p), jnp.float32),                  # stats2
            pltpu.VMEM((2, d_hid_p), jnp.float32),                  # scale/shift 1
            pltpu.VMEM((2, d_out_p), jnp.float32),                  # scale/shift 2
        ],
        compiler_params=pltpu.CompilerParams(
            dimension_semantics=("arbitrary", "arbitrary"),
            vmem_limit_bytes=vmem_limit,
        ),
    )(x_p, w1_p, w2_p, bn1, bn2)

    return out[:n, :d_out]


# ---------------------------------------------------------------------------
# Pure-JAX reference (f32, PyTorch semantics incl. biases)
# ---------------------------------------------------------------------------
def _batch_norm_train(h, gamma, beta):
    mean = jnp.mean(h, axis=0, keepdims=True)
    var = jnp.mean((h - mean) ** 2, axis=0, keepdims=True)
    return (h - mean) * jax.lax.rsqrt(var + BN_EPS) * gamma + beta


def reference(x, params):
    (w1, b1, g1, be1, w2, b2, go, beo) = params
    h = x @ w1 + b1
    h = _batch_norm_train(h, g1, be1)
    h = jnp.maximum(h, 0.0)
    y = h @ w2 + b2
    y = _batch_norm_train(y, go, beo)
    return jnp.maximum(y, 0.0)


def init_params(key, d_in, d_hidden, d_out):
    k1, k2, k3, k4 = jax.random.split(key, 4)
    lim1 = 1.0 / jnp.sqrt(d_in)
    lim2 = 1.0 / jnp.sqrt(d_hidden)
    w1 = jax.random.uniform(k1, (d_in, d_hidden), jnp.float32, -lim1, lim1)
    b1 = jax.random.uniform(k2, (1, d_hidden), jnp.float32, -lim1, lim1)
    w2 = jax.random.uniform(k3, (d_hidden, d_out), jnp.float32, -lim2, lim2)
    b2 = jax.random.uniform(k4, (1, d_out), jnp.float32, -lim2, lim2)
    g1 = jnp.ones((1, d_hidden), jnp.float32)
    be1 = jnp.zeros((1, d_hidden), jnp.float32)
    go = jnp.ones((1, d_out), jnp.float32)
    beo = jnp.zeros((1, d_out), jnp.float32)
    return (w1, b1, g1, be1, w2, b2, go, beo)


if __name__ == "__main__":
    key = jax.random.PRNGKey(0)
    kx, kp = jax.random.split(key)

    # N intentionally NOT a multiple of 8 / the tile so row masking is used.
    N, D_IN, D_HIDDEN, D_OUT = 1001, 16, 32, 16
    x = jax.random.normal(kx, (N, D_IN), jnp.float32)
    params = init_params(kp, D_IN, D_HIDDEN, D_OUT)

    fn = jax.jit(apply_node_func, static_argnames=("tile_n",))
    ref = reference(x, params)

    # Default (single-tile) path and a multi-tile path through the same kernel.
    for tn in (DEFAULT_TILE_N, 256):
        out = jax.block_until_ready(fn(x, params, tile_n=tn))
        assert out.shape == (N, D_OUT)
        # bf16 MXU operands -> tolerance loosened vs. pure-f32 reference.
        assert jnp.allclose(out, ref, atol=5e-2, rtol=5e-2), f"mismatch tile_n={tn}"

    print("KERNEL_OK")
</pallas_src>

<mosaic_0001>
module attributes {stable_mosaic.version = 11 : i64} {
  func.func @fused_kernel(%arg0: i32, %arg1: i32, %arg2: memref<1008x128xbf16, #tpu.memory_space<vmem>>, %arg3: memref<128x128xbf16, #tpu.memory_space<vmem>>, %arg4: memref<128x128xbf16, #tpu.memory_space<vmem>>, %arg5: memref<2x128xf32, #tpu.memory_space<vmem>>, %arg6: memref<2x128xf32, #tpu.memory_space<vmem>>, %arg7: memref<1008x128xf32, #tpu.memory_space<vmem>>, %arg8: memref<1x1008x128xf32, #tpu.memory_space<vmem>>, %arg9: memref<1x1008x128xf32, #tpu.memory_space<vmem>>, %arg10: memref<2x128xf32, #tpu.memory_space<vmem>>, %arg11: memref<2x128xf32, #tpu.memory_space<vmem>>, %arg12: memref<2x128xf32, #tpu.memory_space<vmem>>, %arg13: memref<2x128xf32, #tpu.memory_space<vmem>>) attributes {dimension_semantics = [#tpu.dimension_semantics<arbitrary>, #tpu.dimension_semantics<arbitrary>], iteration_bounds = array<i64: 3, 1>, scalar_prefetch = 0 : i64, scratch_operands = 6 : i64, tpu.core_type = #tpu.core_type<tc>, window_params = [{transform_indices = @transform_0, window_bounds = array<i64: 1008, 128>}, {pipeline_mode = #tpu.pipeline_mode<synchronous>, transform_indices = @transform_1, window_bounds = array<i64: 128, 128>}, {pipeline_mode = #tpu.pipeline_mode<synchronous>, transform_indices = @transform_2, window_bounds = array<i64: 128, 128>}, {pipeline_mode = #tpu.pipeline_mode<synchronous>, transform_indices = @transform_3, window_bounds = array<i64: 2, 128>}, {pipeline_mode = #tpu.pipeline_mode<synchronous>, transform_indices = @transform_4, window_bounds = array<i64: 2, 128>}, {transform_indices = @transform_5, window_bounds = array<i64: 1008, 128>}]} {
    %c0_i32 = arith.constant 0 : i32
    %0 = arith.cmpi eq, %arg0, %c0_i32 : i32
    %1 = arith.extui %0 : i1 to i32
    %c0_i32_0 = arith.constant 0 : i32
    %2 = arith.cmpi ne, %1, %c0_i32_0 : i32
    scf.if %2 {
      %c0_i32_4 = arith.constant 0 : i32
      %9 = arith.cmpi eq, %arg1, %c0_i32_4 : i32
      %10 = arith.extui %9 : i1 to i32
      %c0_i32_5 = arith.constant 0 : i32
      %11 = arith.cmpi ne, %10, %c0_i32_5 : i32
      scf.if %11 {
        %cst_18 = arith.constant 0.000000e+00 : f32
        %28 = vector.broadcast %cst_18 : f32 to vector<2x128xf32>
        %c0_19 = arith.constant 0 : index
        %c0_20 = arith.constant 0 : index
        %29 = vector.load %arg10[%c0_19, %c0_20] : memref<2x128xf32, #tpu.memory_space<vmem>>, vector<2x128xf32>
        tpu.vector_store %arg10[%c0_19, %c0_20], %28 {strides = array<i32>} : memref<2x128xf32, #tpu.memory_space<vmem>>, vector<2x128xf32>,
        %cst_21 = arith.constant 0.000000e+00 : f32
        %30 = vector.broadcast %cst_21 : f32 to vector<2x128xf32>
        %c0_22 = arith.constant 0 : index
        %c0_23 = arith.constant 0 : index
        %31 = vector.load %arg11[%c0_22, %c0_23] : memref<2x128xf32, #tpu.memory_space<vmem>>, vector<2x128xf32>
        tpu.vector_store %arg11[%c0_22, %c0_23], %30 {strides = array<i32>} : memref<2x128xf32, #tpu.memory_space<vmem>>, vector<2x128xf32>,
      } else {
      }
      %c0 = arith.constant 0 : index
      %c0_6 = arith.constant 0 : index
      %12 = vector.load %arg2[%c0, %c0_6] : memref<1008x128xbf16, #tpu.memory_space<vmem>>, vector<1008x128xbf16>
      %c0_7 = arith.constant 0 : index
      %c0_8 = arith.constant 0 : index
      %13 = vector.load %arg3[%c0_7, %c0_8] : memref<128x128xbf16, #tpu.memory_space<vmem>>, vector<128x128xbf16>
      %cst_9 = arith.constant dense<0.000000e+00> : vector<1008x128xf32>
      %14 = tpu.matmul %12, %13, %cst_9 {dimension_numbers = #tpu.dot_dimension_numbers<[1], [0], [0], [1], [0, 0, 1, 1], [], []>} : vector<1008x128xbf16>, vector<128x128xbf16>, vector<1008x128xf32> -> vector<1008x128xf32>
      %15 = arith.index_cast %arg1 : i32 to index
      %c0_10 = arith.constant 0 : index
      %c0_11 = arith.constant 0 : index
      %16 = vector.load %arg8[%15, %c0_10, %c0_11] : memref<1x1008x128xf32, #tpu.memory_space<vmem>>, vector<1x1008x128xf32>
      %17 = vector.shape_cast %16 : vector<1x1008x128xf32> to vector<1008x128xf32>
      %18 = vector.shape_cast %14 : vector<1008x128xf32> to vector<1x1008x128xf32>
      tpu.vector_store %arg8[%15, %c0_10, %c0_11], %18 {strides = array<i32>} : memref<1x1008x128xf32, #tpu.memory_space<vmem>>, vector<1x1008x128xf32>,
      %c0_12 = arith.constant 0 : index
      %c0_13 = arith.constant 0 : index
      %19 = vector.load %arg10[%c0_12, %c0_13] : memref<2x128xf32, #tpu.memory_space<vmem>>, vector<2x128xf32>
      %cst_14 = arith.constant dense<0.000000e+00> : vector<128xf32>
      %20 = vector.multi_reduction <add>, %14, %cst_14 [0] : vector<1008x128xf32> to vector<128xf32>
      %21 = vector.shape_cast %20 : vector<128xf32> to vector<1x128xf32>
      %22 = arith.mulf %14, %14 : vector<1008x128xf32>
      %cst_15 = arith.constant dense<0.000000e+00> : vector<128xf32>
      %23 = vector.multi_reduction <add>, %22, %cst_15 [0] : vector<1008x128xf32> to vector<128xf32>
      %24 = vector.shape_cast %23 : vector<128xf32> to vector<1x128xf32>
      %25 = tpu.concatenate %21, %24 in 0 : vector<1x128xf32>, vector<1x128xf32> -> vector<2x128xf32>
      %26 = arith.addf %19, %25 : vector<2x128xf32>
      %c0_16 = arith.constant 0 : index
      %c0_17 = arith.constant 0 : index
      %27 = vector.load %arg10[%c0_16, %c0_17] : memref<2x128xf32, #tpu.memory_space<vmem>>, vector<2x128xf32>
      tpu.vector_store %arg10[%c0_16, %c0_17], %26 {strides = array<i32>} : memref<2x128xf32, #tpu.memory_space<vmem>>, vector<2x128xf32>,
    } else {
    }
    %c1_i32 = arith.constant 1 : i32
    %3 = arith.cmpi eq, %arg0, %c1_i32 : i32
    %4 = arith.extui %3 : i1 to i32
    %cst = arith.constant 9.99000971E-4 : f32
    %c0_i32_1 = arith.constant 0 : i32
    %5 = arith.cmpi ne, %4, %c0_i32_1 : i32
    scf.if %5 {
      %c0_i32_4 = arith.constant 0 : i32
      %9 = arith.cmpi eq, %arg1, %c0_i32_4 : i32
      %10 = arith.extui %9 : i1 to i32
      %c0_i32_5 = arith.constant 0 : i32
      %11 = arith.cmpi ne, %10, %c0_i32_5 : i32
      scf.if %11 {
        %c0_23 = arith.constant 0 : index
        %c0_24 = arith.constant 0 : index
        %48 = vector.load %arg10[%c0_23, %c0_24] : memref<2x128xf32, #tpu.memory_space<vmem>>, vector<1x128xf32>
        %49 = vector.broadcast %cst : f32 to vector<1x128xf32>
        %50 = arith.mulf %48, %49 : vector<1x128xf32>
        %c1_25 = arith.constant 1 : index
        %c0_26 = arith.constant 0 : index
        %51 = vector.load %arg10[%c1_25, %c0_26] : memref<2x128xf32, #tpu.memory_space<vmem>>, vector<1x128xf32>
        %52 = vector.broadcast %cst : f32 to vector<1x128xf32>
        %53 = arith.mulf %51, %52 : vector<1x128xf32>
        %54 = arith.mulf %50, %50 : vector<1x128xf32>
        %55 = arith.subf %53, %54 : vector<1x128xf32>
        %cst_27 = arith.constant 0.000000e+00 : f32
        %56 = vector.broadcast %cst_27 : f32 to vector<1x128xf32>
        %57 = arith.maximumf %55, %56 : vector<1x128xf32>
        %c0_28 = arith.constant 0 : index
        %c0_29 = arith.constant 0 : index
        %58 = vector.load %arg5[%c0_28, %c0_29] : memref<2x128xf32, #tpu.memory_space<vmem>>, vector<1x128xf32>
        %cst_30 = arith.constant 9.99999974E-6 : f32
        %59 = vector.broadcast %cst_30 : f32 to vector<1x128xf32>
        %60 = arith.addf %57, %59 : vector<1x128xf32>
        %61 = math.rsqrt %60 : vector<1x128xf32>
        %62 = arith.mulf %58, %61 : vector<1x128xf32>
        %c1_31 = arith.constant 1 : index
        %c0_32 = arith.constant 0 : index
        %63 = vector.load %arg5[%c1_31, %c0_32] : memref<2x128xf32, #tpu.memory_space<vmem>>, vector<1x128xf32>
        %64 = arith.mulf %50, %62 : vector<1x128xf32>
        %65 = arith.subf %63, %64 : vector<1x128xf32>
        %66 = tpu.concatenate %62, %65 in 0 : vector<1x128xf32>, vector<1x128xf32> -> vector<2x128xf32>
        %c0_33 = arith.constant 0 : index
        %c0_34 = arith.constant 0 : index
        %67 = vector.load %arg12[%c0_33, %c0_34] : memref<2x128xf32, #tpu.memory_space<vmem>>, vector<2x128xf32>
        tpu.vector_store %arg12[%c0_33, %c0_34], %66 {strides = array<i32>} : memref<2x128xf32, #tpu.memory_space<vmem>>, vector<2x128xf32>,
      } else {
      }
      %12 = arith.index_cast %arg1 : i32 to index
      %c0 = arith.constant 0 : index
      %c0_6 = arith.constant 0 : index
      %13 = vector.load %arg8[%12, %c0, %c0_6] : memref<1x1008x128xf32, #tpu.memory_space<vmem>>, vector<1x1008x128xf32>
      %14 = vector.shape_cast %13 : vector<1x1008x128xf32> to vector<1008x128xf32>
      %c0_7 = arith.constant 0 : index
      %c0_8 = arith.constant 0 : index
      %15 = vector.load %arg12[%c0_7, %c0_8] : memref<2x128xf32, #tpu.memory_space<vmem>>, vector<1x128xf32>
      %16 = vector.broadcast %15 : vector<1x128xf32> to vector<1008x128xf32>
      %17 = arith.mulf %14, %16 : vector<1008x128xf32>
      %c1 = arith.constant 1 : index
      %c0_9 = arith.constant 0 : index
      %18 = vector.load %arg12[%c1, %c0_9] : memref<2x128xf32, #tpu.memory_space<vmem>>, vector<1x128xf32>
      %19 = vector.broadcast %18 : vector<1x128xf32> to vector<1008x128xf32>
      %20 = arith.addf %17, %19 : vector<1008x128xf32>
      %cst_10 = arith.constant 0.000000e+00 : f32
      %21 = vector.broadcast %cst_10 : f32 to vector<1008x128xf32>
      %22 = arith.maximumf %20, %21 : vector<1008x128xf32>
      %c1008_i32 = arith.constant 1008 : i32
      %23 = arith.muli %arg1, %c1008_i32 : i32
      %c1001_i32 = arith.constant 1001 : i32
      %24 = arith.subi %c1001_i32, %23 : i32
      %25 = tpu.iota {dimensions = array<i32: 0>} : vector<1008x1xi32>
      %26 = vector.broadcast %24 : i32 to vector<1008x1xi32>
      %27 = arith.cmpi slt, %25, %26 : vector<1008x1xi32>
      %cst_11 = arith.constant 0.000000e+00 : f32
      %28 = vector.shape_cast %27 : vector<1008x1xi1> to vector<1008x1xi1>
      %29 = vector.broadcast %28 : vector<1008x1xi1> to vector<1008x128xi1>
      %30 = vector.broadcast %cst_11 : f32 to vector<1008x128xf32>
      %31 = arith.select %29, %22, %30 : vector<1008x128xi1>, vector<1008x128xf32>
      %32 = arith.truncf %31 : vector<1008x128xf32> to vector<1008x128xbf16>
      %c0_12 = arith.constant 0 : index
      %c0_13 = arith.constant 0 : index
      %33 = vector.load %arg4[%c0_12, %c0_13] : memref<128x128xbf16, #tpu.memory_space<vmem>>, vector<128x128xbf16>
      %cst_14 = arith.constant dense<0.000000e+00> : vector<1008x128xf32>
      %34 = tpu.matmul %32, %33, %cst_14 {dimension_numbers = #tpu.dot_dimension_numbers<[1], [0], [0], [1], [0, 0, 1, 1], [], []>} : vector<1008x128xbf16>, vector<128x128xbf16>, vector<1008x128xf32> -> vector<1008x128xf32>
      %35 = arith.index_cast %arg1 : i32 to index
      %c0_15 = arith.constant 0 : index
      %c0_16 = arith.constant 0 : index
      %36 = vector.load %arg9[%35, %c0_15, %c0_16] : memref<1x1008x128xf32, #tpu.memory_space<vmem>>, vector<1x1008x128xf32>
      %37 = vector.shape_cast %36 : vector<1x1008x128xf32> to vector<1008x128xf32>
      %38 = vector.shape_cast %34 : vector<1008x128xf32> to vector<1x1008x128xf32>
      tpu.vector_store %arg9[%35, %c0_15, %c0_16], %38 {strides = array<i32>} : memref<1x1008x128xf32, #tpu.memory_space<vmem>>, vector<1x1008x128xf32>,
      %c0_17 = arith.constant 0 : index
      %c0_18 = arith.constant 0 : index
      %39 = vector.load %arg11[%c0_17, %c0_18] : memref<2x128xf32, #tpu.memory_space<vmem>>, vector<2x128xf32>
      %cst_19 = arith.constant dense<0.000000e+00> : vector<128xf32>
      %40 = vector.multi_reduction <add>, %34, %cst_19 [0] : vector<1008x128xf32> to vector<128xf32>
      %41 = vector.shape_cast %40 : vector<128xf32> to vector<1x128xf32>
      %42 = arith.mulf %34, %34 : vector<1008x128xf32>
      %cst_20 = arith.constant dense<0.000000e+00> : vector<128xf32>
      %43 = vector.multi_reduction <add>, %42, %cst_20 [0] : vector<1008x128xf32> to vector<128xf32>
      %44 = vector.shape_cast %43 : vector<128xf32> to vector<1x128xf32>
      %45 = tpu.concatenate %41, %44 in 0 : vector<1x128xf32>, vector<1x128xf32> -> vector<2x128xf32>
      %46 = arith.addf %39, %45 : vector<2x128xf32>
      %c0_21 = arith.constant 0 : index
      %c0_22 = arith.constant 0 : index
      %47 = vector.load %arg11[%c0_21, %c0_22] : memref<2x128xf32, #tpu.memory_space<vmem>>, vector<2x128xf32>
      tpu.vector_store %arg11[%c0_21, %c0_22], %46 {strides = array<i32>} : memref<2x128xf32, #tpu.memory_space<vmem>>, vector<2x128xf32>,
    } else {
    }
    %c2_i32 = arith.constant 2 : i32
    %6 = arith.cmpi eq, %arg0, %c2_i32 : i32
    %7 = arith.extui %6 : i1 to i32
    %cst_2 = arith.constant 9.99000971E-4 : f32
    %c0_i32_3 = arith.constant 0 : i32
    %8 = arith.cmpi ne, %7, %c0_i32_3 : i32
    scf.if %8 {
      %c0_i32_4 = arith.constant 0 : i32
      %9 = arith.cmpi eq, %arg1, %c0_i32_4 : i32
      %10 = arith.extui %9 : i1 to i32
      %c0_i32_5 = arith.constant 0 : i32
      %11 = arith.cmpi ne, %10, %c0_i32_5 : i32
      scf.if %11 {
        %c0_13 = arith.constant 0 : index
        %c0_14 = arith.constant 0 : index
        %24 = vector.load %arg11[%c0_13, %c0_14] : memref<2x128xf32, #tpu.memory_space<vmem>>, vector<1x128xf32>
        %25 = vector.broadcast %cst_2 : f32 to vector<1x128xf32>
        %26 = arith.mulf %24, %25 : vector<1x128xf32>
        %c1_15 = arith.constant 1 : index
        %c0_16 = arith.constant 0 : index
        %27 = vector.load %arg11[%c1_15, %c0_16] : memref<2x128xf32, #tpu.memory_space<vmem>>, vector<1x128xf32>
        %28 = vector.broadcast %cst_2 : f32 to vector<1x128xf32>
        %29 = arith.mulf %27, %28 : vector<1x128xf32>
        %30 = arith.mulf %26, %26 : vector<1x128xf32>
        %31 = arith.subf %29, %30 : vector<1x128xf32>
        %cst_17 = arith.constant 0.000000e+00 : f32
        %32 = vector.broadcast %cst_17 : f32 to vector<1x128xf32>
        %33 = arith.maximumf %31, %32 : vector<1x128xf32>
        %c0_18 = arith.constant 0 : index
        %c0_19 = arith.constant 0 : index
        %34 = vector.load %arg6[%c0_18, %c0_19] : memref<2x128xf32, #tpu.memory_space<vmem>>, vector<1x128xf32>
        %cst_20 = arith.constant 9.99999974E-6 : f32
        %35 = vector.broadcast %cst_20 : f32 to vector<1x128xf32>
        %36 = arith.addf %33, %35 : vector<1x128xf32>
        %37 = math.rsqrt %36 : vector<1x128xf32>
        %38 = arith.mulf %34, %37 : vector<1x128xf32>
        %c1_21 = arith.constant 1 : index
        %c0_22 = arith.constant 0 : index
        %39 = vector.load %arg6[%c1_21, %c0_22] : memref<2x128xf32, #tpu.memory_space<vmem>>, vector<1x128xf32>
        %40 = arith.mulf %26, %38 : vector<1x128xf32>
        %41 = arith.subf %39, %40 : vector<1x128xf32>
        %42 = tpu.concatenate %38, %41 in 0 : vector<1x128xf32>, vector<1x128xf32> -> vector<2x128xf32>
        %c0_23 = arith.constant 0 : index
        %c0_24 = arith.constant 0 : index
        %43 = vector.load %arg13[%c0_23, %c0_24] : memref<2x128xf32, #tpu.memory_space<vmem>>, vector<2x128xf32>
        tpu.vector_store %arg13[%c0_23, %c0_24], %42 {strides = array<i32>} : memref<2x128xf32, #tpu.memory_space<vmem>>, vector<2x128xf32>,
      } else {
      }
      %12 = arith.index_cast %arg1 : i32 to index
      %c0 = arith.constant 0 : index
      %c0_6 = arith.constant 0 : index
      %13 = vector.load %arg9[%12, %c0, %c0_6] : memref<1x1008x128xf32, #tpu.memory_space<vmem>>, vector<1x1008x128xf32>
      %14 = vector.shape_cast %13 : vector<1x1008x128xf32> to vector<1008x128xf32>
      %c0_7 = arith.constant 0 : index
      %c0_8 = arith.constant 0 : index
      %15 = vector.load %arg13[%c0_7, %c0_8] : memref<2x128xf32, #tpu.memory_space<vmem>>, vector<1x128xf32>
      %16 = vector.broadcast %15 : vector<1x128xf32> to vector<1008x128xf32>
      %17 = arith.mulf %14, %16 : vector<1008x128xf32>
      %c1 = arith.constant 1 : index
      %c0_9 = arith.constant 0 : index
      %18 = vector.load %arg13[%c1, %c0_9] : memref<2x128xf32, #tpu.memory_space<vmem>>, vector<1x128xf32>
      %19 = vector.broadcast %18 : vector<1x128xf32> to vector<1008x128xf32>
      %20 = arith.addf %17, %19 : vector<1008x128xf32>
      %cst_10 = arith.constant 0.000000e+00 : f32
      %21 = vector.broadcast %cst_10 : f32 to vector<1008x128xf32>
      %22 = arith.maximumf %20, %21 : vector<1008x128xf32>
      %c0_11 = arith.constant 0 : index
      %c0_12 = arith.constant 0 : index
      %23 = vector.load %arg7[%c0_11, %c0_12] : memref<1008x128xf32, #tpu.memory_space<vmem>>, vector<1008x128xf32>
      tpu.vector_store %arg7[%c0_11, %c0_12], %22 {strides = array<i32>} : memref<1008x128xf32, #tpu.memory_space<vmem>>, vector<1008x128xf32>,
    } else {
    }
    return
  }
  func.func @transform_0(%arg0: i32, %arg1: i32) -> (i32, i32) {
    %c0_i32 = arith.constant 0 : i32
    %0 = arith.cmpi eq, %arg0, %c0_i32 : i32
    %c0_i32_0 = arith.constant 0 : i32
    %1 = arith.select %0, %arg1, %c0_i32_0 : i32
    %c0_i32_1 = arith.constant 0 : i32
    %c0_i32_2 = arith.constant 0 : i32
    return %1, %c0_i32_1 : i32, i32
  }
  func.func @transform_1(%arg0: i32, %arg1: i32) -> (i32, i32) {
    %c0_i32 = arith.constant 0 : i32
    %c0_i32_0 = arith.constant 0 : i32
    %c0_i32_1 = arith.constant 0 : i32
    return %c0_i32, %c0_i32_0 : i32, i32
  }
  func.func @transform_2(%arg0: i32, %arg1: i32) -> (i32, i32) {
    %c0_i32 = arith.constant 0 : i32
    %c0_i32_0 = arith.constant 0 : i32
    %c0_i32_1 = arith.constant 0 : i32
    return %c0_i32, %c0_i32_0 : i32, i32
  }
  func.func @transform_3(%arg0: i32, %arg1: i32) -> (i32, i32) {
    %c0_i32 = arith.constant 0 : i32
    %c0_i32_0 = arith.constant 0 : i32
    %c0_i32_1 = arith.constant 0 : i32
    return %c0_i32, %c0_i32_0 : i32, i32
  }
  func.func @transform_4(%arg0: i32, %arg1: i32) -> (i32, i32) {
    %c0_i32 = arith.constant 0 : i32
    %c0_i32_0 = arith.constant 0 : i32
    %c0_i32_1 = arith.constant 0 : i32
    return %c0_i32, %c0_i32_0 : i32, i32
  }
  func.func @transform_5(%arg0: i32, %arg1: i32) -> (i32, i32) {
    %c2_i32 = arith.constant 2 : i32
    %0 = arith.cmpi eq, %arg0, %c2_i32 : i32
    %c0_i32 = arith.constant 0 : i32
    %1 = arith.select %0, %arg1, %c0_i32 : i32
    %c0_i32_0 = arith.constant 0 : i32
    %c0_i32_1 = arith.constant 0 : i32
    return %1, %c0_i32_0 : i32, i32
  }
}

</mosaic_0001>

<llo_original>
// kernel: apply_node_func.1
$region0: #{apply_node_func.1}
  #allocation0 [shape = 'u32[]', space=smem, size = 0x4, offset = 0x4, fixed_abs, tag = 'smem constant byte address 0x4 - core index']
  #allocation1 [shape = 'u32[144,128]{1,0:T(1,128)}', space=vmem, size = 0x12000, scoped, tag = 'internal scratch']
  #allocation2 [shape = 'f32[1,1008,128]{2,1,0:T(8,128)}', space=vmem, size = 0x7e000, scoped, tag = 'scratch operand']
  #allocation3 [shape = 'f32[1,1008,128]{2,1,0:T(8,128)}', space=vmem, size = 0x7e000, scoped, tag = 'scratch operand']
  #allocation4 [shape = 'f32[2,128]{1,0:T(2,128)}', space=vmem, size = 0x400, scoped, tag = 'scratch operand']
  #allocation5 [shape = 'f32[2,128]{1,0:T(2,128)}', space=vmem, size = 0x400, scoped, tag = 'scratch operand']
  #allocation6 [shape = 'f32[2,128]{1,0:T(2,128)}', space=vmem, size = 0x400, scoped, tag = 'scratch operand']
  #allocation7 [shape = 'f32[2,128]{1,0:T(2,128)}', space=vmem, size = 0x400, scoped, tag = 'scratch operand']
  %s0 = inlined_call_operand.vmem [shape: bf16[1008,128], index: 0, kind: input, shape index: {}]
  %s1 = inlined_call_operand.vmem [shape: bf16[128,128], index: 1, kind: input, shape index: {}]
  %s2 = inlined_call_operand.vmem [shape: bf16[128,128], index: 2, kind: input, shape index: {}]
  %s3 = inlined_call_operand.vmem [shape: f32[2,128], index: 3, kind: input, shape index: {}]
  %s4 = inlined_call_operand.vmem [shape: f32[2,128], index: 4, kind: input, shape index: {}]
  %s5 = inlined_call_operand.vmem [shape: f32[1008,128], index: 5, kind: output, shape index: {}]
  %s6 = sld [smem:[#allocation0]]
  $region77: #{apply_node_func.1} parent=0
    _
  %s8 = ssub.s32 1, %s6
  %s9 = scalar_select 0, %s8, %s6
  loop: start=0, step=1, limit=5
  $region2: #{apply_node_func.1} parent=0 // loop_pre_header
    _
  $region3: #{apply_node_func.1} parent=0 // loop_header
    %s11 = sphi 0, %s15
    %p12 = scmp.ge.s32.totalorder %s11, 5
    %s18 = sphi 0, %s30
    %s19 = sphi 0, %s26
    %s20 = sphi 0, %s18
    %s21 = sphi 0, %s19
    %s22 = sphi 0, %s20
    %s23 = sphi 0, %s21
    %s37 = sphi 0, %s39
    %s40 = sphi 0, %s37
    %s41 = sphi 0, %s40
    %s57 = sphi 0, %s41
    %s61 = sphi 0, %s61
    %s63 = sphi 0, %s61
    %s64 = sphi 0, %s63
    %s78 = sphi 0, %s64
    %s82 = sphi 0, %s82
    %s84 = sphi 0, %s82
    %s85 = sphi 0, %s84
    %s99 = sphi 0, %s85
    %s103 = sphi 0, %s103
    %s105 = sphi 0, %s103
    %s106 = sphi 0, %s105
    %s120 = sphi 0, %s106
    %s124 = sphi 0, %s124
    %s126 = sphi 0, %s124
    %s127 = sphi 0, %s126
    %s141 = sphi 0, %s127
    %s151 = sphi 0, %s153
    %s154 = sphi 0, %s151
    %s155 = sphi 0, %s154
    %s171 = sphi 0, %s155
  $region4: #{apply_node_func.1} parent=0 // loop_header_branch
    %14 = sbr.rel (%p12) target = $region8
  $region5: #{apply_node_func.1} parent=0 // loop_body
    %s16 = ssub.s32 %s11, 1
    %s17 = ssub.s32 %s11, 2
    %s24 = sadd.s32 1, %s19
    %p25 = scmp.ge.s32.totalorder %s24, 1
    %s26 = scalar_select %p25, 0, %s24
    %s27 = sadd.s32 1, %s18
    %s28 = scalar_select %p25, %s27, %s18
    %p29 = scmp.ge.s32.totalorder %s28, 3
    %s30 = scalar_select %p29, 0, %s28
    %p31 = scmp.eq.s32.totalorder %s18, 0
    %s32 = scalar_select %p31, %s19, 0
    %p33 = scmp.eq.s32.totalorder %s30, 0
    %s34 = scalar_select %p33, %s26, 0
    %s35 = ssub.s32 %s32, %s34
    %p36 = scmp.eq.s32.totalorder %s35, 0
    %s38 = sadd.s32 %s37, 1
    %s39 = scalar_select %p36, %s37, %s38
    %p42 = pneg %p36
    %p43 = scmp.eq.s32.totalorder %s11, 2
    %p44 = por %p42, %p43
    %p45 = scmp.ne.s32.totalorder %s37, %s40
    %p46 = scmp.eq.s32.totalorder %s11, 0
    %p47 = por %p45, %p46
    %p48 = scmp.ne.s32.totalorder %s37, %s40
    %p49 = scmp.eq.s32.totalorder %s16, 2
    %p50 = por %p48, %p49
    %p51 = scmp.ne.s32.totalorder %s40, %s41
    %p52 = scmp.eq.s32.totalorder %s16, 0
    %p53 = por %p51, %p52
    %p54 = scmp.ne.s32.totalorder %s40, %s41
    %p55 = scmp.eq.s32.totalorder %s17, 2
    %p56 = por %p54, %p55
    %p58 = scmp.ne.s32.totalorder %s41, %s57
    %p59 = scmp.eq.s32.totalorder %s17, 0
    %p60 = por %p58, %p59
    %s62 = sadd.s32 %s61, 1
    %p65 = scmp.eq.s32.totalorder %s11, 2
    %p66 = scmp.ne.s32.totalorder %s61, %s63
    %p67 = scmp.eq.s32.totalorder %s11, 0
    %p68 = por %p66, %p67
    %p69 = scmp.ne.s32.totalorder %s61, %s63
    %p70 = scmp.eq.s32.totalorder %s16, 2
    %p71 = por %p69, %p70
    %p72 = scmp.ne.s32.totalorder %s63, %s64
    %p73 = scmp.eq.s32.totalorder %s16, 0
    %p74 = por %p72, %p73
    %p75 = scmp.ne.s32.totalorder %s63, %s64
    %p76 = scmp.eq.s32.totalorder %s17, 2
    %p77 = por %p75, %p76
    %p79 = scmp.ne.s32.totalorder %s64, %s78
    %p80 = scmp.eq.s32.totalorder %s17, 0
    %p81 = por %p79, %p80
    %s83 = sadd.s32 %s82, 1
    %p86 = scmp.eq.s32.totalorder %s11, 2
    %p87 = scmp.ne.s32.totalorder %s82, %s84
    %p88 = scmp.eq.s32.totalorder %s11, 0
    %p89 = por %p87, %p88
    %p90 = scmp.ne.s32.totalorder %s82, %s84
    %p91 = scmp.eq.s32.totalorder %s16, 2
    %p92 = por %p90, %p91
    %p93 = scmp.ne.s32.totalorder %s84, %s85
    %p94 = scmp.eq.s32.totalorder %s16, 0
    %p95 = por %p93, %p94
    %p96 = scmp.ne.s32.totalorder %s84, %s85
    %p97 = scmp.eq.s32.totalorder %s17, 2
    %p98 = por %p96, %p97
    %p100 = scmp.ne.s32.totalorder %s85, %s99
    %p101 = scmp.eq.s32.totalorder %s17, 0
    %p102 = por %p100, %p101
    %s104 = sadd.s32 %s103, 1
    %p107 = scmp.eq.s32.totalorder %s11, 2
    %p108 = scmp.ne.s32.totalorder %s103, %s105
    %p109 = scmp.eq.s32.totalorder %s11, 0
    %p110 = por %p108, %p109
    %p111 = scmp.ne.s32.totalorder %s103, %s105
    %p112 = scmp.eq.s32.totalorder %s16, 2
    %p113 = por %p111, %p112
    %p114 = scmp.ne.s32.totalorder %s105, %s106
    %p115 = scmp.eq.s32.totalorder %s16, 0
    %p116 = por %p114, %p115
    %p117 = scmp.ne.s32.totalorder %s105, %s106
    %p118 = scmp.eq.s32.totalorder %s17, 2
    %p119 = por %p117, %p118
    %p121 = scmp.ne.s32.totalorder %s106, %s120
    %p122 = scmp.eq.s32.totalorder %s17, 0
    %p123 = por %p121, %p122
    %s125 = sadd.s32 %s124, 1
    %p128 = scmp.eq.s32.totalorder %s11, 2
    %p129 = scmp.ne.s32.totalorder %s124, %s126
    %p130 = scmp.eq.s32.totalorder %s11, 0
    %p131 = por %p129, %p130
    %p132 = scmp.ne.s32.totalorder %s124, %s126
    %p133 = scmp.eq.s32.totalorder %s16, 2
    %p134 = por %p132, %p133
    %p135 = scmp.ne.s32.totalorder %s126, %s127
    %p136 = scmp.eq.s32.totalorder %s16, 0
    %p137 = por %p135, %p136
    %p138 = scmp.ne.s32.totalorder %s126, %s127
    %p139 = scmp.eq.s32.totalorder %s17, 2
    %p140 = por %p138, %p139
    %p142 = scmp.ne.s32.totalorder %s127, %s141
    %p143 = scmp.eq.s32.totalorder %s17, 0
    %p144 = por %p142, %p143
    %p145 = scmp.eq.s32.totalorder %s18, 2
    %s146 = scalar_select %p145, %s19, 0
    %p147 = scmp.eq.s32.totalorder %s30, 2
    %s148 = scalar_select %p147, %s26, 0
    %s149 = ssub.s32 %s146, %s148
    %p150 = scmp.eq.s32.totalorder %s149, 0
    %s152 = sadd.s32 %s151, 1
    %s153 = scalar_select %p150, %s151, %s152
    %p156 = pneg %p150
    %p157 = scmp.eq.s32.totalorder %s11, 2
    %p158 = por %p156, %p157
    %p159 = scmp.ne.s32.totalorder %s151, %s154
    %p160 = scmp.eq.s32.totalorder %s11, 0
    %p161 = por %p159, %p160
    %p162 = scmp.ne.s32.totalorder %s151, %s154
    %p163 = scmp.eq.s32.totalorder %s16, 2
    %p164 = por %p162, %p163
    %p165 = scmp.ne.s32.totalorder %s154, %s155
    %p166 = scmp.eq.s32.totalorder %s16, 0
    %p167 = por %p165, %p166
    %p168 = scmp.ne.s32.totalorder %s154, %s155
    %p169 = scmp.eq.s32.totalorder %s17, 2
    %p170 = por %p168, %p169
    %p172 = scmp.ne.s32.totalorder %s155, %s171
    %p173 = scmp.eq.s32.totalorder %s17, 0
    %p174 = por %p172, %p173
    %p175 = scmp.le.s32.totalorder 1, %s11
    %p176 = scmp.lt.s32.totalorder %s11, 4
    %p177 = pnand %p175, %p176
    %p178 = pneg %p177
    // Predicated region
    $region9: #{apply_node_func.1} parent=5 // pred_check
      _
    $region10: #{apply_node_func.1} parent=5 // pred_check_branch
      %180 = sbr.rel (%p177) target = $region12
    $region11: #{apply_node_func.1} parent=5 // pred_region
      %s181 = ssub.s32 %s11, 1
      // Predicated region
      $region13: #{apply_node_func.1} parent=11 // pred_check
        %p182 = pneg %p74
      $region14: #{apply_node_func.1} parent=11 // pred_check_branch
        %184 = sbr.rel (%p182) target = $region16
      $region15: #{apply_node_func.1} parent=11 // pred_region
        _
      $region16: #{apply_node_func.1} parent=11 // pred_fallthru
        _
      // Predicated region
      $region17: #{apply_node_func.1} parent=11 // pred_check
        %p185 = pneg %p95
      $region18: #{apply_node_func.1} parent=11 // pred_check_branch
        %187 = sbr.rel (%p185) target = $region20
      $region19: #{apply_node_func.1} parent=11 // pred_region
        _
      $region20: #{apply_node_func.1} parent=11 // pred_fallthru
        _
      // Predicated region
      $region21: #{apply_node_func.1} parent=11 // pred_check
        %p188 = pneg %p116
      $region22: #{apply_node_func.1} parent=11 // pred_check_branch
        %190 = sbr.rel (%p188) target = $region24
      $region23: #{apply_node_func.1} parent=11 // pred_region
        _
      $region24: #{apply_node_func.1} parent=11 // pred_fallthru
        _
      // Predicated region
      $region25: #{apply_node_func.1} parent=11 // pred_check
        %p191 = pneg %p137
      $region26: #{apply_node_func.1} parent=11 // pred_check_branch
        %193 = sbr.rel (%p191) target = $region28
      $region27: #{apply_node_func.1} parent=11 // pred_region
        _
      $region28: #{apply_node_func.1} parent=11 // pred_fallthru
        _
    $region12: #{apply_node_func.1} parent=5 // pred_fallthru
      _
    %p194 = scmp.lt.s32.totalorder %s11, 3
    // Predicated region
    $region29: #{apply_node_func.1} parent=5 // pred_check
      %p195 = pneg %p194
    $region30: #{apply_node_func.1} parent=5 // pred_check_branch
      %197 = sbr.rel (%p195) target = $region32
    $region31: #{apply_node_func.1} parent=5 // pred_region
      // Predicated region
      $region33: #{apply_node_func.1} parent=31 // pred_check
        %p198 = pneg %p47
      $region34: #{apply_node_func.1} parent=31 // pred_check_branch
        %200 = sbr.rel (%p198) target = $region36
      $region35: #{apply_node_func.1} parent=31 // pred_region
        %p201 = scmp.eq.s32.totalorder %s18, 0
        %s202 = scalar_select %p201, %s19, 0
        %s203 = smul.u32 126, %s202
        %p204 = scmp.lt.s32.totalorder %s203, 125
        %s205 = scalar_select %p204, %s203, 125
        %s206 = smul.addr %s205, 4
        %s207 = scalar_lea.vmem %s0, %s206
        %p208 = scmp.eq.s32.totalorder %s18, 0
        %s209 = scalar_select %p208, %s19, 0
        %s210 = smul.u32 126, %s209
      $region36: #{apply_node_func.1} parent=31 // pred_fallthru
        _
    $region32: #{apply_node_func.1} parent=5 // pred_fallthru
      _
    %p211 = scmp.le.s32.totalorder 1, %s11
    %p212 = scmp.lt.s32.totalorder %s11, 4
    %p213 = pnand %p211, %p212
    %p214 = pneg %p213
    // Predicated region
    $region37: #{apply_node_func.1} parent=5 // pred_check
      _
    $region38: #{apply_node_func.1} parent=5 // pred_check_branch
      %216 = sbr.rel (%p213) target = $region40
    $region39: #{apply_node_func.1} parent=5 // pred_region
      %s217 = ssub.s32 %s11, 1
      %p218 = scmp.eq.s32.totalorder %s20, 0
      %s219 = scalar_select %p218, %s21, 0
      %s220 = smul.u32 126, %s219
      %p221 = scmp.lt.s32.totalorder %s220, 125
      %s222 = scalar_select %p221, %s220, 125
      %s223 = smul.addr %s222, 4
      %s224 = scalar_lea.vmem %s0, %s223
      %p225 = pneg %p53
      %p226 = pneg %p50
      %p227 = pneg %p74
      %p228 = pneg %p71
      %p229 = pneg %p95
      %p230 = pneg %p92
      %p231 = pneg %p116
      %p232 = pneg %p113
      %p233 = pneg %p137
      %p234 = pneg %p134
      %p235 = pneg %p167
      %p236 = pneg %p164
      %p237 = scmp.eq.s32.totalorder %s20, 2
      %s238 = scalar_select %p237, %s21, 0
      %s239 = smul.u32 126, %s238
      %p240 = scmp.lt.s32.totalorder %s239, 125
      %s241 = scalar_select %p240, %s239, 125
      %s242 = smul.addr %s241, 8
      %s243 = scalar_lea.vmem %s5, %s242
      %p244 = scmp.eq.s32.totalorder %s20, 0
      %s245 = scalar_select %p244, %s21, 0
      %s246 = smul.u32 126, %s245
      %p247 = scmp.lt.s32.totalorder %s246, 125
      %s248 = scalar_select %p247, %s246, 125
      %s249 = smul.addr %s248, 4
      %s250 = scalar_lea.vmem %s0, %s249
      %p251 = scmp.eq.s32.totalorder %s20, 0
      %s252 = scalar_select %p251, %s21, 0
      %s253 = smul.u32 126, %s252
      %p254 = scmp.eq.s32.totalorder %s20, 2
      %s255 = scalar_select %p254, %s21, 0
      %s256 = smul.u32 126, %s255
      %p257 = scmp.lt.s32.totalorder %s256, 125
      %s258 = scalar_select %p257, %s256, 125
      %s259 = smul.addr %s258, 8
      %s260 = scalar_lea.vmem %s5, %s259
      %p261 = scmp.eq.s32.totalorder %s20, 2
      %s262 = scalar_select %p261, %s21, 0
      %s263 = smul.u32 126, %s262
      %p265 = scmp.eq.s32.totalorder %s20, 0
      // Predicated region
      $region41: #{apply_node_func.1} parent=39 // pred_check
        %p266 = pneg %p265
      $region42: #{apply_node_func.1} parent=39 // pred_check_branch
        %268 = sbr.rel (%p266) target = $region44
      $region43: #{apply_node_func.1} parent=39 // pred_region
        %p269 = scmp.eq.s32.totalorder %s21, 0
        // Predicated region
        $region45: #{apply_node_func.1} parent=43 // pred_check
          %p270 = pneg %p269
        $region46: #{apply_node_func.1} parent=43 // pred_check_branch
          %272 = sbr.rel (%p270) target = $region48
        $region47: #{apply_node_func.1} parent=43 // pred_region
          %273 = vst [vmem:[#allocation4] sm:$0x3] 0.0
          %274 = vst [vmem:[#allocation5] sm:$0x3] 0.0
        $region48: #{apply_node_func.1} parent=43 // pred_fallthru
          _
        %v275 = vld [vmem:[%s250] sm:$0xf]
        %v276 = vld [vmem:[%s250 + $0x4] sm:$0xf]
        %v277 = vld [vmem:[%s250 + $0x8] sm:$0xf]
        %v278 = vld [vmem:[%s250 + $0xc] sm:$0xf]
        %v279 = vld [vmem:[%s250 + $0x10] sm:$0xf]
        %v280 = vld [vmem:[%s250 + $0x14] sm:$0xf]
        %v281 = vld [vmem:[%s250 + $0x18] sm:$0xf]
        %v282 = vld [vmem:[%s250 + $0x1c] sm:$0xf]
        %v283 = vld [vmem:[%s250 + $0x20] sm:$0xf]
        %v284 = vld [vmem:[%s250 + $0x24] sm:$0xf]
        %v285 = vld [vmem:[%s250 + $0x28] sm:$0xf]
        %v286 = vld [vmem:[%s250 + $0x2c] sm:$0xf]
        %v287 = vld [vmem:[%s250 + $0x30] sm:$0xf]
        %v288 = vld [vmem:[%s250 + $0x34] sm:$0xf]
        %v289 = vld [vmem:[%s250 + $0x38] sm:$0xf]
        %v290 = vld [vmem:[%s250 + $0x3c] sm:$0xf]
        %v291 = vld [vmem:[%s250 + $0x40] sm:$0xf]
        %v292 = vld [vmem:[%s250 + $0x44] sm:$0xf]
        %v293 = vld [vmem:[%s250 + $0x48] sm:$0xf]
        %v294 = vld [vmem:[%s250 + $0x4c] sm:$0xf]
        %v295 = vld [vmem:[%s250 + $0x50] sm:$0xf]
        %v296 = vld [vmem:[%s250 + $0x54] sm:$0xf]
        %v297 = vld [vmem:[%s250 + $0x58] sm:$0xf]
        %v298 = vld [vmem:[%s250 + $0x5c] sm:$0xf]
        %v299 = vld [vmem:[%s250 + $0x60] sm:$0xf]
        %v300 = vld [vmem:[%s250 + $0x64] sm:$0xf]
        %v301 = vld [vmem:[%s250 + $0x68] sm:$0xf]
        %v302 = vld [vmem:[%s250 + $0x6c] sm:$0xf]
        %v303 = vld [vmem:[%s250 + $0x70] sm:$0xf]
        %v304 = vld [vmem:[%s250 + $0x74] sm:$0xf]
        %v305 = vld [vmem:[%s250 + $0x78] sm:$0xf]
        %v306 = vld [vmem:[%s250 + $0x7c] sm:$0xf]
        %v307 = vld [vmem:[%s250 + $0x80] sm:$0xf]
        %v308 = vld [vmem:[%s250 + $0x84] sm:$0xf]
        %v309 = vld [vmem:[%s250 + $0x88] sm:$0xf]
        %v310 = vld [vmem:[%s250 + $0x8c] sm:$0xf]
        %v311 = vld [vmem:[%s250 + $0x90] sm:$0xf]
        %v312 = vld [vmem:[%s250 + $0x94] sm:$0xf]
        %v313 = vld [vmem:[%s250 + $0x98] sm:$0xf]
        %v314 = vld [vmem:[%s250 + $0x9c] sm:$0xf]
        %v315 = vld [vmem:[%s250 + $0xa0] sm:$0xf]
        %v316 = vld [vmem:[%s250 + $0xa4] sm:$0xf]
        %v317 = vld [vmem:[%s250 + $0xa8] sm:$0xf]
        %v318 = vld [vmem:[%s250 + $0xac] sm:$0xf]
        %v319 = vld [vmem:[%s250 + $0xb0] sm:$0xf]
        %v320 = vld [vmem:[%s250 + $0xb4] sm:$0xf]
        %v321 = vld [vmem:[%s250 + $0xb8] sm:$0xf]
        %v322 = vld [vmem:[%s250 + $0xbc] sm:$0xf]
        %v323 = vld [vmem:[%s250 + $0xc0] sm:$0xf]
        %v324 = vld [vmem:[%s250 + $0xc4] sm:$0xf]
        %v325 = vld [vmem:[%s250 + $0xc8] sm:$0xf]
        %v326 = vld [vmem:[%s250 + $0xcc] sm:$0xf]
        %v327 = vld [vmem:[%s250 + $0xd0] sm:$0xf]
        %v328 = vld [vmem:[%s250 + $0xd4] sm:$0xf]
        %v329 = vld [vmem:[%s250 + $0xd8] sm:$0xf]
        %v330 = vld [vmem:[%s250 + $0xdc] sm:$0xf]
        %v331 = vld [vmem:[%s250 + $0xe0] sm:$0xf]
        %v332 = vld [vmem:[%s250 + $0xe4] sm:$0xf]
        %v333 = vld [vmem:[%s250 + $0xe8] sm:$0xf]
        %v334 = vld [vmem:[%s250 + $0xec] sm:$0xf]
        %v335 = vld [vmem:[%s250 + $0xf0] sm:$0xf]
        %v336 = vld [vmem:[%s250 + $0xf4] sm:$0xf]
        %v337 = vld [vmem:[%s250 + $0xf8] sm:$0xf]
        %v338 = vld [vmem:[%s250 + $0xfc] sm:$0xf]
        %v339 = vld [vmem:[%s250 + $0x100] sm:$0xf]
        %v340 = vld [vmem:[%s250 + $0x104] sm:$0xf]
        %v341 = vld [vmem:[%s250 + $0x108] sm:$0xf]
        %v342 = vld [vmem:[%s250 + $0x10c] sm:$0xf]
        %v343 = vld [vmem:[%s250 + $0x110] sm:$0xf]
        %v344 = vld [vmem:[%s250 + $0x114] sm:$0xf]
        %v345 = vld [vmem:[%s250 + $0x118] sm:$0xf]
        %v346 = vld [vmem:[%s250 + $0x11c] sm:$0xf]
        %v347 = vld [vmem:[%s250 + $0x120] sm:$0xf]
        %v348 = vld [vmem:[%s250 + $0x124] sm:$0xf]
        %v349 = vld [vmem:[%s250 + $0x128] sm:$0xf]
        %v350 = vld [vmem:[%s250 + $0x12c] sm:$0xf]
        %v351 = vld [vmem:[%s250 + $0x130] sm:$0xf]
        %v352 = vld [vmem:[%s250 + $0x134] sm:$0xf]
        %v353 = vld [vmem:[%s250 + $0x138] sm:$0xf]
        %v354 = vld [vmem:[%s250 + $0x13c] sm:$0xf]
        %v355 = vld [vmem:[%s250 + $0x140] sm:$0xf]
        %v356 = vld [vmem:[%s250 + $0x144] sm:$0xf]
        %v357 = vld [vmem:[%s250 + $0x148] sm:$0xf]
        %v358 = vld [vmem:[%s250 + $0x14c] sm:$0xf]
        %v359 = vld [vmem:[%s250 + $0x150] sm:$0xf]
        %v360 = vld [vmem:[%s250 + $0x154] sm:$0xf]
        %v361 = vld [vmem:[%s250 + $0x158] sm:$0xf]
        %v362 = vld [vmem:[%s250 + $0x15c] sm:$0xf]
        %v363 = vld [vmem:[%s250 + $0x160] sm:$0xf]
        %v364 = vld [vmem:[%s250 + $0x164] sm:$0xf]
        %v365 = vld [vmem:[%s250 + $0x168] sm:$0xf]
        %v366 = vld [vmem:[%s250 + $0x16c] sm:$0xf]
        %v367 = vld [vmem:[%s250 + $0x170] sm:$0xf]
        %v368 = vld [vmem:[%s250 + $0x174] sm:$0xf]
        %v369 = vld [vmem:[%s250 + $0x178] sm:$0xf]
        %v370 = vld [vmem:[%s250 + $0x17c] sm:$0xf]
        %v371 = vld [vmem:[%s250 + $0x180] sm:$0xf]
        %v372 = vld [vmem:[%s250 + $0x184] sm:$0xf]
        %v373 = vld [vmem:[%s250 + $0x188] sm:$0xf]
        %v374 = vld [vmem:[%s250 + $0x18c] sm:$0xf]
        %v375 = vld [vmem:[%s250 + $0x190] sm:$0xf]
        %v376 = vld [vmem:[%s250 + $0x194] sm:$0xf]
        %v377 = vld [vmem:[%s250 + $0x198] sm:$0xf]
        %v378 = vld [vmem:[%s250 + $0x19c] sm:$0xf]
        %v379 = vld [vmem:[%s250 + $0x1a0] sm:$0xf]
        %v380 = vld [vmem:[%s250 + $0x1a4] sm:$0xf]
        %v381 = vld [vmem:[%s250 + $0x1a8] sm:$0xf]
        %v382 = vld [vmem:[%s250 + $0x1ac] sm:$0xf]
        %v383 = vld [vmem:[%s250 + $0x1b0] sm:$0xf]
        %v384 = vld [vmem:[%s250 + $0x1b4] sm:$0xf]
        %v385 = vld [vmem:[%s250 + $0x1b8] sm:$0xf]
        %v386 = vld [vmem:[%s250 + $0x1bc] sm:$0xf]
        %v387 = vld [vmem:[%s250 + $0x1c0] sm:$0xf]
        %v388 = vld [vmem:[%s250 + $0x1c4] sm:$0xf]
        %v389 = vld [vmem:[%s250 + $0x1c8] sm:$0xf]
        %v390 = vld [vmem:[%s250 + $0x1cc] sm:$0xf]
        %v391 = vld [vmem:[%s250 + $0x1d0] sm:$0xf]
        %v392 = vld [vmem:[%s250 + $0x1d4] sm:$0xf]
        %v393 = vld [vmem:[%s250 + $0x1d8] sm:$0xf]
        %v394 = vld [vmem:[%s250 + $0x1dc] sm:$0xf]
        %v395 = vld [vmem:[%s250 + $0x1e0] sm:$0xf]
        %v396 = vld [vmem:[%s250 + $0x1e4] sm:$0xf]
        %v397 = vld [vmem:[%s250 + $0x1e8] sm:$0xf]
        %v398 = vld [vmem:[%s250 + $0x1ec] sm:$0xf]
        %v399 = vld [vmem:[%s250 + $0x1f0] sm:$0xf]
        %v400 = vld [vmem:[%s250 + $0x1f4] sm:$0xf]
        %v401 = vld [vmem:[%s1] sm:$0xf]
        %v402 = vld [vmem:[%s1 + $0x4] sm:$0xf]
        %v403 = vld [vmem:[%s1 + $0x8] sm:$0xf]
        %v404 = vld [vmem:[%s1 + $0xc] sm:$0xf]
        %v405 = vld [vmem:[%s1 + $0x10] sm:$0xf]
        %v406 = vld [vmem:[%s1 + $0x14] sm:$0xf]
        %v407 = vld [vmem:[%s1 + $0x18] sm:$0xf]
        %v408 = vld [vmem:[%s1 + $0x1c] sm:$0xf]
        %v409 = vld [vmem:[%s1 + $0x20] sm:$0xf]
        %v410 = vld [vmem:[%s1 + $0x24] sm:$0xf]
        %v411 = vld [vmem:[%s1 + $0x28] sm:$0xf]
        %v412 = vld [vmem:[%s1 + $0x2c] sm:$0xf]
        %v413 = vld [vmem:[%s1 + $0x30] sm:$0xf]
        %v414 = vld [vmem:[%s1 + $0x34] sm:$0xf]
        %v415 = vld [vmem:[%s1 + $0x38] sm:$0xf]
        %v416 = vld [vmem:[%s1 + $0x3c] sm:$0xf]
        %v543 = vunpack.c.l.b16 %v275
        %v544 = vunpack.c.l.b16 %v276
        %v545 = vunpack.c.l.b16 %v277
        %v546 = vunpack.c.l.b16 %v278
        %v547 = vunpack.c.l.b16 %v279
        %v548 = vunpack.c.l.b16 %v280
        %v549 = vunpack.c.l.b16 %v281
        %v550 = vunpack.c.l.b16 %v282
        %v551 = vunpack.c.l.b16 %v283
        %v552 = vunpack.c.l.b16 %v284
        %v553 = vunpack.c.l.b16 %v285
        %v554 = vunpack.c.l.b16 %v286
        %v555 = vunpack.c.l.b16 %v287
        %v556 = vunpack.c.l.b16 %v288
        %v557 = vunpack.c.l.b16 %v289
        %v558 = vunpack.c.l.b16 %v290
        %v559 = vunpack.c.l.b16 %v291
        %v560 = vunpack.c.l.b16 %v292
        %v561 = vunpack.c.l.b16 %v293
        %v562 = vunpack.c.l.b16 %v294
        %v563 = vunpack.c.l.b16 %v295
        %v564 = vunpack.c.l.b16 %v296
        %v565 = vunpack.c.l.b16 %v297
        %v566 = vunpack.c.l.b16 %v298
        %v567 = vunpack.c.l.b16 %v299
        %v568 = vunpack.c.l.b16 %v300
        %v569 = vunpack.c.l.b16 %v301
        %v570 = vunpack.c.l.b16 %v302
        %v571 = vunpack.c.l.b16 %v303
        %v572 = vunpack.c.l.b16 %v304
        %v573 = vunpack.c.l.b16 %v305
        %v574 = vunpack.c.l.b16 %v306
        %v575 = vunpack.c.l.b16 %v307
        %v576 = vunpack.c.l.b16 %v308
        %v577 = vunpack.c.l.b16 %v309
        %v578 = vunpack.c.l.b16 %v310
        %v579 = vunpack.c.l.b16 %v311
        %v580 = vunpack.c.l.b16 %v312
        %v581 = vunpack.c.l.b16 %v313
        %v582 = vunpack.c.l.b16 %v314
        %v583 = vunpack.c.l.b16 %v315
        %v584 = vunpack.c.l.b16 %v316
        %v585 = vunpack.c.l.b16 %v317
        %v586 = vunpack.c.l.b16 %v318
        %v587 = vunpack.c.l.b16 %v319
        %v588 = vunpack.c.l.b16 %v320
        %v589 = vunpack.c.l.b16 %v321
        %v590 = vunpack.c.l.b16 %v322
        %v591 = vunpack.c.l.b16 %v323
        %v592 = vunpack.c.l.b16 %v324
        %v593 = vunpack.c.l.b16 %v325
        %v594 = vunpack.c.l.b16 %v326
        %v595 = vunpack.c.l.b16 %v327
        %v596 = vunpack.c.l.b16 %v328
        %v597 = vunpack.c.l.b16 %v329
        %v598 = vunpack.c.l.b16 %v330
        %v599 = vunpack.c.l.b16 %v331
        %v600 = vunpack.c.l.b16 %v332
        %v601 = vunpack.c.l.b16 %v333
        %v602 = vunpack.c.l.b16 %v334
        %v603 = vunpack.c.l.b16 %v335
        %v604 = vunpack.c.l.b16 %v336
        %v605 = vunpack.c.l.b16 %v337
        %v606 = vunpack.c.l.b16 %v338
        %v607 = vunpack.c.l.b16 %v339
        %v608 = vunpack.c.l.b16 %v340
        %v609 = vunpack.c.l.b16 %v341
        %v610 = vunpack.c.l.b16 %v342
        %v611 = vunpack.c.l.b16 %v343
        %v612 = vunpack.c.l.b16 %v344
        %v613 = vunpack.c.l.b16 %v345
        %v614 = vunpack.c.l.b16 %v346
        %v615 = vunpack.c.l.b16 %v347
        %v616 = vunpack.c.l.b16 %v348
        %v617 = vunpack.c.l.b16 %v349
        %v618 = vunpack.c.l.b16 %v350
        %v619 = vunpack.c.l.b16 %v351
        %v620 = vunpack.c.l.b16 %v352
        %v621 = vunpack.c.l.b16 %v353
        %v622 = vunpack.c.l.b16 %v354
        %v623 = vunpack.c.l.b16 %v355
        %v624 = vunpack.c.l.b16 %v356
        %v625 = vunpack.c.l.b16 %v357
        %v626 = vunpack.c.l.b16 %v358
        %v627 = vunpack.c.l.b16 %v359
        %v628 = vunpack.c.l.b16 %v360
        %v629 = vunpack.c.l.b16 %v361
        %v630 = vunpack.c.l.b16 %v362
        %v631 = vunpack.c.l.b16 %v363
        %v632 = vunpack.c.l.b16 %v364
        %v633 = vunpack.c.l.b16 %v365
        %v634 = vunpack.c.l.b16 %v366
        %v635 = vunpack.c.l.b16 %v367
        %v636 = vunpack.c.l.b16 %v368
        %v637 = vunpack.c.l.b16 %v369
        %v638 = vunpack.c.l.b16 %v370
        %v639 = vunpack.c.l.b16 %v371
        %v640 = vunpack.c.l.b16 %v372
        %v641 = vunpack.c.l.b16 %v373
        %v642 = vunpack.c.l.b16 %v374
        %v643 = vunpack.c.l.b16 %v375
        %v644 = vunpack.c.l.b16 %v376
        %v645 = vunpack.c.l.b16 %v377
        %v646 = vunpack.c.l.b16 %v378
        %v647 = vunpack.c.l.b16 %v379
        %v648 = vunpack.c.l.b16 %v380
        %v649 = vunpack.c.l.b16 %v381
        %v650 = vunpack.c.l.b16 %v382
        %v651 = vunpack.c.l.b16 %v383
        %v652 = vunpack.c.l.b16 %v384
        %v653 = vunpack.c.l.b16 %v385
        %v654 = vunpack.c.l.b16 %v386
        %v655 = vunpack.c.l.b16 %v387
        %v656 = vunpack.c.l.b16 %v388
        %v657 = vunpack.c.l.b16 %v389
        %v658 = vunpack.c.l.b16 %v390
        %v659 = vunpack.c.l.b16 %v391
        %v660 = vunpack.c.l.b16 %v392
        %v661 = vunpack.c.l.b16 %v393
        %v662 = vunpack.c.l.b16 %v394
        %v663 = vunpack.c.l.b16 %v395
        %v664 = vunpack.c.l.b16 %v396
        %v665 = vunpack.c.l.b16 %v397
        %v666 = vunpack.c.l.b16 %v398
        %v667 = vunpack.c.l.b16 %v399
        %v668 = vunpack.c.l.b16 %v400
        %v669 = vpack.c.b16 %v544, %v543
        %v670 = vpack.c.b16 %v546, %v545
        %v671 = vpack.c.b16 %v548, %v547
        %v672 = vpack.c.b16 %v550, %v549
        %v673 = vpack.c.b16 %v552, %v551
        %v674 = vpack.c.b16 %v554, %v553
        %v675 = vpack.c.b16 %v556, %v555
        %v676 = vpack.c.b16 %v558, %v557
        %v677 = vpack.c.b16 %v560, %v559
        %v678 = vpack.c.b16 %v562, %v561
        %v679 = vpack.c.b16 %v564, %v563
        %v680 = vpack.c.b16 %v566, %v565
        %v681 = vpack.c.b16 %v568, %v567
        %v682 = vpack.c.b16 %v570, %v569
        %v683 = vpack.c.b16 %v572, %v571
        %v684 = vpack.c.b16 %v574, %v573
        %v685 = vpack.c.b16 %v576, %v575
        %v686 = vpack.c.b16 %v578, %v577
        %v687 = vpack.c.b16 %v580, %v579
        %v688 = vpack.c.b16 %v582, %v581
        %v689 = vpack.c.b16 %v584, %v583
        %v690 = vpack.c.b16 %v586, %v585
        %v691 = vpack.c.b16 %v588, %v587
        %v692 = vpack.c.b16 %v590, %v589
        %v693 = vpack.c.b16 %v592, %v591
        %v694 = vpack.c.b16 %v594, %v593
        %v695 = vpack.c.b16 %v596, %v595
        %v696 = vpack.c.b16 %v598, %v597
        %v697 = vpack.c.b16 %v600, %v599
        %v698 = vpack.c.b16 %v602, %v601
        %v699 = vpack.c.b16 %v604, %v603
        %v700 = vpack.c.b16 %v606, %v605
        %v701 = vpack.c.b16 %v608, %v607
        %v702 = vpack.c.b16 %v610, %v609
        %v703 = vpack.c.b16 %v612, %v611
        %v704 = vpack.c.b16 %v614, %v613
        %v705 = vpack.c.b16 %v616, %v615
        %v706 = vpack.c.b16 %v618, %v617
        %v707 = vpack.c.b16 %v620, %v619
        %v708 = vpack.c.b16 %v622, %v621
        %v709 = vpack.c.b16 %v624, %v623
        %v710 = vpack.c.b16 %v626, %v625
        %v711 = vpack.c.b16 %v628, %v627
        %v712 = vpack.c.b16 %v630, %v629
        %v713 = vpack.c.b16 %v632, %v631
        %v714 = vpack.c.b16 %v634, %v633
        %v715 = vpack.c.b16 %v636, %v635
        %v716 = vpack.c.b16 %v638, %v637
        %v717 = vpack.c.b16 %v640, %v639
        %v718 = vpack.c.b16 %v642, %v641
        %v719 = vpack.c.b16 %v644, %v643
        %v720 = vpack.c.b16 %v646, %v645
        %v721 = vpack.c.b16 %v648, %v647
        %v722 = vpack.c.b16 %v650, %v649
        %v723 = vpack.c.b16 %v652, %v651
        %v724 = vpack.c.b16 %v654, %v653
        %v725 = vpack.c.b16 %v656, %v655
        %v726 = vpack.c.b16 %v658, %v657
        %v727 = vpack.c.b16 %v660, %v659
        %v728 = vpack.c.b16 %v662, %v661
        %v729 = vpack.c.b16 %v664, %v663
        %v730 = vpack.c.b16 %v666, %v665
        %v731 = vpack.c.b16 %v668, %v667
        %v811 = vunpack.c.l.b16 %v401
        %v812 = vunpack.c.l.b16 %v402
        %v813 = vunpack.c.l.b16 %v403
        %v814 = vunpack.c.l.b16 %v404
        %v815 = vunpack.c.l.b16 %v405
        %v816 = vunpack.c.l.b16 %v406
        %v817 = vunpack.c.l.b16 %v407
        %v818 = vunpack.c.l.b16 %v408
        %v819 = vunpack.c.l.b16 %v409
        %v820 = vunpack.c.l.b16 %v410
        %v821 = vunpack.c.l.b16 %v411
        %v822 = vunpack.c.l.b16 %v412
        %v823 = vunpack.c.l.b16 %v413
        %v824 = vunpack.c.l.b16 %v414
        %v825 = vunpack.c.l.b16 %v415
        %v826 = vunpack.c.l.b16 %v416
        %v827 = vpack.c.b16 %v812, %v811
        %v828 = vpack.c.b16 %v814, %v813
        %v829 = vpack.c.b16 %v816, %v815
        %v830 = vpack.c.b16 %v818, %v817
        %v831 = vpack.c.b16 %v820, %v819
        %v832 = vpack.c.b16 %v822, %v821
        %v833 = vpack.c.b16 %v824, %v823
        %v834 = vpack.c.b16 %v826, %v825
        %843 = vmatprep.subr.bf16.mxu0 0
        %844 = vmatpush1.bf16.msra.mxu0 %v834
        %845 = vmatprep.subr.bf16.mxu0 0
        %846 = vmatpush1.bf16.msra.mxu0 %v833
        %847 = vmatprep.subr.bf16.mxu0 0
        %848 = vmatpush1.bf16.msra.mxu0 %v832
        %849 = vmatprep.subr.bf16.mxu0 0
        %850 = vmatpush1.bf16.msra.mxu0 %v831
        %851 = vmatprep.subr.bf16.mxu0 0
        %852 = vmatpush1.bf16.msra.mxu0 %v830
        %853 = vmatprep.subr.bf16.mxu0 0
        %854 = vmatpush1.bf16.msra.mxu0 %v829
        %855 = vmatprep.subr.bf16.mxu0 0
        %856 = vmatpush1.bf16.msra.mxu0 %v828
        %857 = vmatprep.subr.bf16.mxu0 0
        %858 = vmatpush1.bf16.msra.mxu0 %v827
        %859 = vmatprep.subr.bf16.mxu0 0
        %860 = vmatpush2.bf16.msra.mxu0 0
        %861 = vmatprep.subr.bf16.mxu0 0
        %862 = vmatpush2.bf16.msra.mxu0 0
        %863 = vmatprep.subr.bf16.mxu0 0
        %864 = vmatpush2.bf16.msra.mxu0 0
        %865 = vmatprep.subr.bf16.mxu0 0
        %866 = vmatpush2.bf16.msra.mxu0 0
        %867 = vmatprep.subr.bf16.mxu0 0
        %868 = vmatpush2.bf16.msra.mxu0 0
        %869 = vmatprep.subr.bf16.mxu0 0
        %870 = vmatpush2.bf16.msra.mxu0 0
        %871 = vmatprep.subr.bf16.mxu0 0
        %872 = vmatpush2.bf16.msra.mxu0 0
        %873 = vmatprep.subr.bf16.mxu0 0
        %874 = vmatpush2.bf16.msra.mxu0 0
        %875 = vmatprep.mubr.bf16.mxu0 0
        %876 = vmatmul.mubr.bf16.gmra.mxu0 %v669
        %v877 = vpop.f32.mrf.mxu0
        %v878 = vadd.f32 0.0, %v877
        %v879 = vpop.f32.mrf.mxu0
        %v880 = vpop.f32.mrf.mxu0
        %v881 = vadd.f32 0.0, %v880
        %v882 = vpop.f32.mrf.mxu0
        %883 = vmatprep.mubr.bf16.mxu0 0
        %884 = vmatmul.mubr.bf16.gmra.mxu0 %v670
        %v885 = vpop.f32.mrf.mxu0
        %v886 = vadd.f32 0.0, %v885
        %v887 = vpop.f32.mrf.mxu0
        %v888 = vpop.f32.mrf.mxu0
        %v889 = vadd.f32 0.0, %v888
        %v890 = vpop.f32.mrf.mxu0
        %891 = vmatprep.mubr.bf16.mxu0 0
        %892 = vmatmul.mubr.bf16.gmra.mxu0 %v671
        %v893 = vpop.f32.mrf.mxu0
        %v894 = vadd.f32 0.0, %v893
        %v895 = vpop.f32.mrf.mxu0
        %v896 = vpop.f32.mrf.mxu0
        %v897 = vadd.f32 0.0, %v896
        %v898 = vpop.f32.mrf.mxu0
        %899 = vmatprep.mubr.bf16.mxu0 0
        %900 = vmatmul.mubr.bf16.gmra.mxu0 %v672
        %v901 = vpop.f32.mrf.mxu0
        %v902 = vadd.f32 0.0, %v901
        %v903 = vpop.f32.mrf.mxu0
        %v904 = vpop.f32.mrf.mxu0
        %v905 = vadd.f32 0.0, %v904
        %v906 = vpop.f32.mrf.mxu0
        %907 = vmatprep.mubr.bf16.mxu0 0
        %908 = vmatmul.mubr.bf16.gmra.mxu0 %v673
        %v909 = vpop.f32.mrf.mxu0
        %v910 = vadd.f32 0.0, %v909
        %v911 = vpop.f32.mrf.mxu0
        %v912 = vpop.f32.mrf.mxu0
        %v913 = vadd.f32 0.0, %v912
        %v914 = vpop.f32.mrf.mxu0
        %915 = vmatprep.mubr.bf16.mxu0 0
        %916 = vmatmul.mubr.bf16.gmra.mxu0 %v674
        %v917 = vpop.f32.mrf.mxu0
        %v918 = vadd.f32 0.0, %v917
        %v919 = vpop.f32.mrf.mxu0
        %v920 = vpop.f32.mrf.mxu0
        %v921 = vadd.f32 0.0, %v920
        %v922 = vpop.f32.mrf.mxu0
        %923 = vmatprep.mubr.bf16.mxu0 0
        %924 = vmatmul.mubr.bf16.gmra.mxu0 %v675
        %v925 = vpop.f32.mrf.mxu0
        %v926 = vadd.f32 0.0, %v925
        %v927 = vpop.f32.mrf.mxu0
        %v928 = vpop.f32.mrf.mxu0
        %v929 = vadd.f32 0.0, %v928
        %v930 = vpop.f32.mrf.mxu0
        %931 = vmatprep.mubr.bf16.mxu0 0
        %932 = vmatmul.mubr.bf16.gmra.mxu0 %v676
        %v933 = vpop.f32.mrf.mxu0
        %v934 = vadd.f32 0.0, %v933
        %v935 = vpop.f32.mrf.mxu0
        %v936 = vpop.f32.mrf.mxu0
        %v937 = vadd.f32 0.0, %v936
        %v938 = vpop.f32.mrf.mxu0
        %939 = vmatprep.mubr.bf16.mxu0 0
        %940 = vmatmul.mubr.bf16.gmra.mxu0 %v677
        %v941 = vpop.f32.mrf.mxu0
        %v942 = vadd.f32 0.0, %v941
        %v943 = vpop.f32.mrf.mxu0
        %v944 = vpop.f32.mrf.mxu0
        %v945 = vadd.f32 0.0, %v944
        %v946 = vpop.f32.mrf.mxu0
        %947 = vmatprep.mubr.bf16.mxu0 0
        %948 = vmatmul.mubr.bf16.gmra.mxu0 %v678
        %v949 = vpop.f32.mrf.mxu0
        %v950 = vadd.f32 0.0, %v949
        %v951 = vpop.f32.mrf.mxu0
        %v952 = vpop.f32.mrf.mxu0
        %v953 = vadd.f32 0.0, %v952
        %v954 = vpop.f32.mrf.mxu0
        %955 = vmatprep.mubr.bf16.mxu0 0
        %956 = vmatmul.mubr.bf16.gmra.mxu0 %v679
        %v957 = vpop.f32.mrf.mxu0
        %v958 = vadd.f32 0.0, %v957
        %v959 = vpop.f32.mrf.mxu0
        %v960 = vpop.f32.mrf.mxu0
        %v961 = vadd.f32 0.0, %v960
        %v962 = vpop.f32.mrf.mxu0
        %963 = vmatprep.mubr.bf16.mxu0 0
        %964 = vmatmul.mubr.bf16.gmra.mxu0 %v680
        %v965 = vpop.f32.mrf.mxu0
        %v966 = vadd.f32 0.0, %v965
        %v967 = vpop.f32.mrf.mxu0
        %v968 = vpop.f32.mrf.mxu0
        %v969 = vadd.f32 0.0, %v968
        %v970 = vpop.f32.mrf.mxu0
        %971 = vmatprep.mubr.bf16.mxu0 0
        %972 = vmatmul.mubr.bf16.gmra.mxu0 %v681
        %v973 = vpop.f32.mrf.mxu0
        %v974 = vadd.f32 0.0, %v973
        %v975 = vpop.f32.mrf.mxu0
        %v976 = vpop.f32.mrf.mxu0
        %v977 = vadd.f32 0.0, %v976
        %v978 = vpop.f32.mrf.mxu0
        %979 = vmatprep.mubr.bf16.mxu0 0
        %980 = vmatmul.mubr.bf16.gmra.mxu0 %v682
        %v981 = vpop.f32.mrf.mxu0
        %v982 = vadd.f32 0.0, %v981
        %v983 = vpop.f32.mrf.mxu0
        %v984 = vpop.f32.mrf.mxu0
        %v985 = vadd.f32 0.0, %v984
        %v986 = vpop.f32.mrf.mxu0
        %987 = vmatprep.mubr.bf16.mxu0 0
        %988 = vmatmul.mubr.bf16.gmra.mxu0 %v683
        %v989 = vpop.f32.mrf.mxu0
        %v990 = vadd.f32 0.0, %v989
        %v991 = vpop.f32.mrf.mxu0
        %v992 = vpop.f32.mrf.mxu0
        %v993 = vadd.f32 0.0, %v992
        %v994 = vpop.f32.mrf.mxu0
        %995 = vmatprep.mubr.bf16.mxu0 0
        %996 = vmatmul.mubr.bf16.gmra.mxu0 %v684
        %v997 = vpop.f32.mrf.mxu0
        %v998 = vadd.f32 0.0, %v997
        %v999 = vpop.f32.mrf.mxu0
        %v1000 = vpop.f32.mrf.mxu0
        %v1001 = vadd.f32 0.0, %v1000
        %v1002 = vpop.f32.mrf.mxu0
        %1003 = vmatprep.mubr.bf16.mxu0 0
        %1004 = vmatmul.mubr.bf16.gmra.mxu0 %v685
        %v1005 = vpop.f32.mrf.mxu0
        %v1006 = vadd.f32 0.0, %v1005
        %v1007 = vpop.f32.mrf.mxu0
        %v1008 = vpop.f32.mrf.mxu0
        %v1009 = vadd.f32 0.0, %v1008
        %v1010 = vpop.f32.mrf.mxu0
        %1011 = vmatprep.mubr.bf16.mxu0 0
        %1012 = vmatmul.mubr.bf16.gmra.mxu0 %v686
        %v1013 = vpop.f32.mrf.mxu0
        %v1014 = vadd.f32 0.0, %v1013
        %v1015 = vpop.f32.mrf.mxu0
        %v1016 = vpop.f32.mrf.mxu0
        %v1017 = vadd.f32 0.0, %v1016
        %v1018 = vpop.f32.mrf.mxu0
        %1019 = vmatprep.mubr.bf16.mxu0 0
        %1020 = vmatmul.mubr.bf16.gmra.mxu0 %v687
        %v1021 = vpop.f32.mrf.mxu0
        %v1022 = vadd.f32 0.0, %v1021
        %v1023 = vpop.f32.mrf.mxu0
        %v1024 = vpop.f32.mrf.mxu0
        %v1025 = vadd.f32 0.0, %v1024
        %v1026 = vpop.f32.mrf.mxu0
        %1027 = vmatprep.mubr.bf16.mxu0 0
        %1028 = vmatmul.mubr.bf16.gmra.mxu0 %v688
        %v1029 = vpop.f32.mrf.mxu0
        %v1030 = vadd.f32 0.0, %v1029
        %v1031 = vpop.f32.mrf.mxu0
        %v1032 = vpop.f32.mrf.mxu0
        %v1033 = vadd.f32 0.0, %v1032
        %v1034 = vpop.f32.mrf.mxu0
        %1035 = vmatprep.mubr.bf16.mxu0 0
        %1036 = vmatmul.mubr.bf16.gmra.mxu0 %v689
        %v1037 = vpop.f32.mrf.mxu0
        %v1038 = vadd.f32 0.0, %v1037
        %v1039 = vpop.f32.mrf.mxu0
        %v1040 = vpop.f32.mrf.mxu0
        %v1041 = vadd.f32 0.0, %v1040
        %v1042 = vpop.f32.mrf.mxu0
        %1043 = vmatprep.mubr.bf16.mxu0 0
        %1044 = vmatmul.mubr.bf16.gmra.mxu0 %v690
        %v1045 = vpop.f32.mrf.mxu0
        %v1046 = vadd.f32 0.0, %v1045
        %v1047 = vpop.f32.mrf.mxu0
        %v1048 = vpop.f32.mrf.mxu0
        %v1049 = vadd.f32 0.0, %v1048
        %v1050 = vpop.f32.mrf.mxu0
        %1051 = vmatprep.mubr.bf16.mxu0 0
        %1052 = vmatmul.mubr.bf16.gmra.mxu0 %v691
        %v1053 = vpop.f32.mrf.mxu0
        %v1054 = vadd.f32 0.0, %v1053
        %v1055 = vpop.f32.mrf.mxu0
        %v1056 = vpop.f32.mrf.mxu0
        %v1057 = vadd.f32 0.0, %v1056
        %v1058 = vpop.f32.mrf.mxu0
        %1059 = vmatprep.mubr.bf16.mxu0 0
        %1060 = vmatmul.mubr.bf16.gmra.mxu0 %v692
        %v1061 = vpop.f32.mrf.mxu0
        %v1062 = vadd.f32 0.0, %v1061
        %v1063 = vpop.f32.mrf.mxu0
        %v1064 = vpop.f32.mrf.mxu0
        %v1065 = vadd.f32 0.0, %v1064
        %v1066 = vpop.f32.mrf.mxu0
        %1067 = vmatprep.mubr.bf16.mxu0 0
        %1068 = vmatmul.mubr.bf16.gmra.mxu0 %v693
        %v1069 = vpop.f32.mrf.mxu0
        %v1070 = vadd.f32 0.0, %v1069
        %v1071 = vpop.f32.mrf.mxu0
        %v1072 = vpop.f32.mrf.mxu0
        %v1073 = vadd.f32 0.0, %v1072
        %v1074 = vpop.f32.mrf.mxu0
        %1075 = vmatprep.mubr.bf16.mxu0 0
        %1076 = vmatmul.mubr.bf16.gmra.mxu0 %v694
        %v1077 = vpop.f32.mrf.mxu0
        %v1078 = vadd.f32 0.0, %v1077
        %v1079 = vpop.f32.mrf.mxu0
        %v1080 = vpop.f32.mrf.mxu0
        %v1081 = vadd.f32 0.0, %v1080
        %v1082 = vpop.f32.mrf.mxu0
        %1083 = vmatprep.mubr.bf16.mxu0 0
        %1084 = vmatmul.mubr.bf16.gmra.mxu0 %v695
        %v1085 = vpop.f32.mrf.mxu0
        %v1086 = vadd.f32 0.0, %v1085
        %v1087 = vpop.f32.mrf.mxu0
        %v1088 = vpop.f32.mrf.mxu0
        %v1089 = vadd.f32 0.0, %v1088
        %v1090 = vpop.f32.mrf.mxu0
        %1091 = vmatprep.mubr.bf16.mxu0 0
        %1092 = vmatmul.mubr.bf16.gmra.mxu0 %v696
        %v1093 = vpop.f32.mrf.mxu0
        %v1094 = vadd.f32 0.0, %v1093
        %v1095 = vpop.f32.mrf.mxu0
        %v1096 = vpop.f32.mrf.mxu0
        %v1097 = vadd.f32 0.0, %v1096
        %v1098 = vpop.f32.mrf.mxu0
        %1099 = vmatprep.mubr.bf16.mxu0 0
        %1100 = vmatmul.mubr.bf16.gmra.mxu0 %v697
        %v1101 = vpop.f32.mrf.mxu0
        %v1102 = vadd.f32 0.0, %v1101
        %v1103 = vpop.f32.mrf.mxu0
        %v1104 = vpop.f32.mrf.mxu0
        %v1105 = vadd.f32 0.0, %v1104
        %v1106 = vpop.f32.mrf.mxu0
        %1107 = vmatprep.mubr.bf16.mxu0 0
        %1108 = vmatmul.mubr.bf16.gmra.mxu0 %v698
        %v1109 = vpop.f32.mrf.mxu0
        %v1110 = vadd.f32 0.0, %v1109
        %v1111 = vpop.f32.mrf.mxu0
        %v1112 = vpop.f32.mrf.mxu0
        %v1113 = vadd.f32 0.0, %v1112
        %v1114 = vpop.f32.mrf.mxu0
        %1115 = vmatprep.mubr.bf16.mxu0 0
        %1116 = vmatmul.mubr.bf16.gmra.mxu0 %v699
        %v1117 = vpop.f32.mrf.mxu0
        %v1118 = vadd.f32 0.0, %v1117
        %v1119 = vpop.f32.mrf.mxu0
        %v1120 = vpop.f32.mrf.mxu0
        %v1121 = vadd.f32 0.0, %v1120
        %v1122 = vpop.f32.mrf.mxu0
        %1123 = vmatprep.mubr.bf16.mxu0 0
        %1124 = vmatmul.mubr.bf16.gmra.mxu0 %v700
        %v1125 = vpop.f32.mrf.mxu0
        %v1126 = vadd.f32 0.0, %v1125
        %v1127 = vpop.f32.mrf.mxu0
        %v1128 = vpop.f32.mrf.mxu0
        %v1129 = vadd.f32 0.0, %v1128
        %v1130 = vpop.f32.mrf.mxu0
        %1131 = vmatprep.mubr.bf16.mxu0 0
        %1132 = vmatmul.mubr.bf16.gmra.mxu0 %v701
        %v1133 = vpop.f32.mrf.mxu0
        %v1134 = vadd.f32 0.0, %v1133
        %v1135 = vpop.f32.mrf.mxu0
        %v1136 = vpop.f32.mrf.mxu0
        %v1137 = vadd.f32 0.0, %v1136
        %v1138 = vpop.f32.mrf.mxu0
        %1139 = vmatprep.mubr.bf16.mxu0 0
        %1140 = vmatmul.mubr.bf16.gmra.mxu0 %v702
        %v1141 = vpop.f32.mrf.mxu0
        %v1142 = vadd.f32 0.0, %v1141
        %v1143 = vpop.f32.mrf.mxu0
        %v1144 = vpop.f32.mrf.mxu0
        %v1145 = vadd.f32 0.0, %v1144
        %v1146 = vpop.f32.mrf.mxu0
        %1147 = vmatprep.mubr.bf16.mxu0 0
        %1148 = vmatmul.mubr.bf16.gmra.mxu0 %v703
        %v1149 = vpop.f32.mrf.mxu0
        %v1150 = vadd.f32 0.0, %v1149
        %v1151 = vpop.f32.mrf.mxu0
        %v1152 = vpop.f32.mrf.mxu0
        %v1153 = vadd.f32 0.0, %v1152
        %v1154 = vpop.f32.mrf.mxu0
        %1155 = vmatprep.mubr.bf16.mxu0 0
        %1156 = vmatmul.mubr.bf16.gmra.mxu0 %v704
        %v1157 = vpop.f32.mrf.mxu0
        %v1158 = vadd.f32 0.0, %v1157
        %v1159 = vpop.f32.mrf.mxu0
        %v1160 = vpop.f32.mrf.mxu0
        %v1161 = vadd.f32 0.0, %v1160
        %v1162 = vpop.f32.mrf.mxu0
        %1163 = vmatprep.mubr.bf16.mxu0 0
        %1164 = vmatmul.mubr.bf16.gmra.mxu0 %v705
        %v1165 = vpop.f32.mrf.mxu0
        %v1166 = vadd.f32 0.0, %v1165
        %v1167 = vpop.f32.mrf.mxu0
        %v1168 = vpop.f32.mrf.mxu0
        %v1169 = vadd.f32 0.0, %v1168
        %v1170 = vpop.f32.mrf.mxu0
        %1171 = vmatprep.mubr.bf16.mxu0 0
        %1172 = vmatmul.mubr.bf16.gmra.mxu0 %v706
        %v1173 = vpop.f32.mrf.mxu0
        %v1174 = vadd.f32 0.0, %v1173
        %v1175 = vpop.f32.mrf.mxu0
        %v1176 = vpop.f32.mrf.mxu0
        %v1177 = vadd.f32 0.0, %v1176
        %v1178 = vpop.f32.mrf.mxu0
        %1179 = vmatprep.mubr.bf16.mxu0 0
        %1180 = vmatmul.mubr.bf16.gmra.mxu0 %v707
        %v1181 = vpop.f32.mrf.mxu0
        %v1182 = vadd.f32 0.0, %v1181
        %v1183 = vpop.f32.mrf.mxu0
        %v1184 = vpop.f32.mrf.mxu0
        %v1185 = vadd.f32 0.0, %v1184
        %v1186 = vpop.f32.mrf.mxu0
        %1187 = vmatprep.mubr.bf16.mxu0 0
        %1188 = vmatmul.mubr.bf16.gmra.mxu0 %v708
        %v1189 = vpop.f32.mrf.mxu0
        %v1190 = vadd.f32 0.0, %v1189
        %v1191 = vpop.f32.mrf.mxu0
        %v1192 = vpop.f32.mrf.mxu0
        %v1193 = vadd.f32 0.0, %v1192
        %v1194 = vpop.f32.mrf.mxu0
        %1195 = vmatprep.mubr.bf16.mxu0 0
        %1196 = vmatmul.mubr.bf16.gmra.mxu0 %v709
        %v1197 = vpop.f32.mrf.mxu0
        %v1198 = vadd.f32 0.0, %v1197
        %v1199 = vpop.f32.mrf.mxu0
        %v1200 = vpop.f32.mrf.mxu0
        %v1201 = vadd.f32 0.0, %v1200
        %v1202 = vpop.f32.mrf.mxu0
        %1203 = vmatprep.mubr.bf16.mxu0 0
        %1204 = vmatmul.mubr.bf16.gmra.mxu0 %v710
        %v1205 = vpop.f32.mrf.mxu0
        %v1206 = vadd.f32 0.0, %v1205
        %v1207 = vpop.f32.mrf.mxu0
        %v1208 = vpop.f32.mrf.mxu0
        %v1209 = vadd.f32 0.0, %v1208
        %v1210 = vpop.f32.mrf.mxu0
        %1211 = vmatprep.mubr.bf16.mxu0 0
        %1212 = vmatmul.mubr.bf16.gmra.mxu0 %v711
        %v1213 = vpop.f32.mrf.mxu0
        %v1214 = vadd.f32 0.0, %v1213
        %v1215 = vpop.f32.mrf.mxu0
        %v1216 = vpop.f32.mrf.mxu0
        %v1217 = vadd.f32 0.0, %v1216
        %v1218 = vpop.f32.mrf.mxu0
        %1219 = vmatprep.mubr.bf16.mxu0 0
        %1220 = vmatmul.mubr.bf16.gmra.mxu0 %v712
        %v1221 = vpop.f32.mrf.mxu0
        %v1222 = vadd.f32 0.0, %v1221
        %v1223 = vpop.f32.mrf.mxu0
        %v1224 = vpop.f32.mrf.mxu0
        %v1225 = vadd.f32 0.0, %v1224
        %v1226 = vpop.f32.mrf.mxu0
        %1227 = vmatprep.mubr.bf16.mxu0 0
        %1228 = vmatmul.mubr.bf16.gmra.mxu0 %v713
        %v1229 = vpop.f32.mrf.mxu0
        %v1230 = vadd.f32 0.0, %v1229
        %v1231 = vpop.f32.mrf.mxu0
        %v1232 = vpop.f32.mrf.mxu0
        %v1233 = vadd.f32 0.0, %v1232
        %v1234 = vpop.f32.mrf.mxu0
        %1235 = vmatprep.mubr.bf16.mxu0 0
        %1236 = vmatmul.mubr.bf16.gmra.mxu0 %v714
        %v1237 = vpop.f32.mrf.mxu0
        %v1238 = vadd.f32 0.0, %v1237
        %v1239 = vpop.f32.mrf.mxu0
        %v1240 = vpop.f32.mrf.mxu0
        %v1241 = vadd.f32 0.0, %v1240
        %v1242 = vpop.f32.mrf.mxu0
        %1243 = vmatprep.mubr.bf16.mxu0 0
        %1244 = vmatmul.mubr.bf16.gmra.mxu0 %v715
        %v1245 = vpop.f32.mrf.mxu0
        %v1246 = vadd.f32 0.0, %v1245
        %v1247 = vpop.f32.mrf.mxu0
        %v1248 = vpop.f32.mrf.mxu0
        %v1249 = vadd.f32 0.0, %v1248
        %v1250 = vpop.f32.mrf.mxu0
        %1251 = vmatprep.mubr.bf16.mxu0 0
        %1252 = vmatmul.mubr.bf16.gmra.mxu0 %v716
        %v1253 = vpop.f32.mrf.mxu0
        %v1254 = vadd.f32 0.0, %v1253
        %v1255 = vpop.f32.mrf.mxu0
        %v1256 = vpop.f32.mrf.mxu0
        %v1257 = vadd.f32 0.0, %v1256
        %v1258 = vpop.f32.mrf.mxu0
        %1259 = vmatprep.mubr.bf16.mxu0 0
        %1260 = vmatmul.mubr.bf16.gmra.mxu0 %v717
        %v1261 = vpop.f32.mrf.mxu0
        %v1262 = vadd.f32 0.0, %v1261
        %v1263 = vpop.f32.mrf.mxu0
        %v1264 = vpop.f32.mrf.mxu0
        %v1265 = vadd.f32 0.0, %v1264
        %v1266 = vpop.f32.mrf.mxu0
        %1267 = vmatprep.mubr.bf16.mxu0 0
        %1268 = vmatmul.mubr.bf16.gmra.mxu0 %v718
        %v1269 = vpop.f32.mrf.mxu0
        %v1270 = vadd.f32 0.0, %v1269
        %v1271 = vpop.f32.mrf.mxu0
        %v1272 = vpop.f32.mrf.mxu0
        %v1273 = vadd.f32 0.0, %v1272
        %v1274 = vpop.f32.mrf.mxu0
        %1275 = vmatprep.mubr.bf16.mxu0 0
        %1276 = vmatmul.mubr.bf16.gmra.mxu0 %v719
        %v1277 = vpop.f32.mrf.mxu0
        %v1278 = vadd.f32 0.0, %v1277
        %v1279 = vpop.f32.mrf.mxu0
        %v1280 = vpop.f32.mrf.mxu0
        %v1281 = vadd.f32 0.0, %v1280
        %v1282 = vpop.f32.mrf.mxu0
        %1283 = vmatprep.mubr.bf16.mxu0 0
        %1284 = vmatmul.mubr.bf16.gmra.mxu0 %v720
        %v1285 = vpop.f32.mrf.mxu0
        %v1286 = vadd.f32 0.0, %v1285
        %v1287 = vpop.f32.mrf.mxu0
        %v1288 = vpop.f32.mrf.mxu0
        %v1289 = vadd.f32 0.0, %v1288
        %v1290 = vpop.f32.mrf.mxu0
        %1291 = vmatprep.mubr.bf16.mxu0 0
        %1292 = vmatmul.mubr.bf16.gmra.mxu0 %v721
        %v1293 = vpop.f32.mrf.mxu0
        %v1294 = vadd.f32 0.0, %v1293
        %v1295 = vpop.f32.mrf.mxu0
        %v1296 = vpop.f32.mrf.mxu0
        %v1297 = vadd.f32 0.0, %v1296
        %v1298 = vpop.f32.mrf.mxu0
        %1299 = vmatprep.mubr.bf16.mxu0 0
        %1300 = vmatmul.mubr.bf16.gmra.mxu0 %v722
        %v1301 = vpop.f32.mrf.mxu0
        %v1302 = vadd.f32 0.0, %v1301
        %v1303 = vpop.f32.mrf.mxu0
        %v1304 = vpop.f32.mrf.mxu0
        %v1305 = vadd.f32 0.0, %v1304
        %v1306 = vpop.f32.mrf.mxu0
        %1307 = vmatprep.mubr.bf16.mxu0 0
        %1308 = vmatmul.mubr.bf16.gmra.mxu0 %v723
        %v1309 = vpop.f32.mrf.mxu0
        %v1310 = vadd.f32 0.0, %v1309
        %v1311 = vpop.f32.mrf.mxu0
        %v1312 = vpop.f32.mrf.mxu0
        %v1313 = vadd.f32 0.0, %v1312
        %v1314 = vpop.f32.mrf.mxu0
        %1315 = vmatprep.mubr.bf16.mxu0 0
        %1316 = vmatmul.mubr.bf16.gmra.mxu0 %v724
        %v1317 = vpop.f32.mrf.mxu0
        %v1318 = vadd.f32 0.0, %v1317
        %v1319 = vpop.f32.mrf.mxu0
        %v1320 = vpop.f32.mrf.mxu0
        %v1321 = vadd.f32 0.0, %v1320
        %v1322 = vpop.f32.mrf.mxu0
        %1323 = vmatprep.mubr.bf16.mxu0 0
        %1324 = vmatmul.mubr.bf16.gmra.mxu0 %v725
        %v1325 = vpop.f32.mrf.mxu0
        %v1326 = vadd.f32 0.0, %v1325
        %v1327 = vpop.f32.mrf.mxu0
        %v1328 = vpop.f32.mrf.mxu0
        %v1329 = vadd.f32 0.0, %v1328
        %v1330 = vpop.f32.mrf.mxu0
        %1331 = vmatprep.mubr.bf16.mxu0 0
        %1332 = vmatmul.mubr.bf16.gmra.mxu0 %v726
        %v1333 = vpop.f32.mrf.mxu0
        %v1334 = vadd.f32 0.0, %v1333
        %v1335 = vpop.f32.mrf.mxu0
        %v1336 = vpop.f32.mrf.mxu0
        %v1337 = vadd.f32 0.0, %v1336
        %v1338 = vpop.f32.mrf.mxu0
        %1339 = vmatprep.mubr.bf16.mxu0 0
        %1340 = vmatmul.mubr.bf16.gmra.mxu0 %v727
        %v1341 = vpop.f32.mrf.mxu0
        %v1342 = vadd.f32 0.0, %v1341
        %v1343 = vpop.f32.mrf.mxu0
        %v1344 = vpop.f32.mrf.mxu0
        %v1345 = vadd.f32 0.0, %v1344
        %v1346 = vpop.f32.mrf.mxu0
        %1347 = vmatprep.mubr.bf16.mxu0 0
        %1348 = vmatmul.mubr.bf16.gmra.mxu0 %v728
        %v1349 = vpop.f32.mrf.mxu0
        %v1350 = vadd.f32 0.0, %v1349
        %v1351 = vpop.f32.mrf.mxu0
        %v1352 = vpop.f32.mrf.mxu0
        %v1353 = vadd.f32 0.0, %v1352
        %v1354 = vpop.f32.mrf.mxu0
        %1355 = vmatprep.mubr.bf16.mxu0 0
        %1356 = vmatmul.mubr.bf16.gmra.mxu0 %v729
        %v1357 = vpop.f32.mrf.mxu0
        %v1358 = vadd.f32 0.0, %v1357
        %v1359 = vpop.f32.mrf.mxu0
        %v1360 = vpop.f32.mrf.mxu0
        %v1361 = vadd.f32 0.0, %v1360
        %v1362 = vpop.f32.mrf.mxu0
        %1363 = vmatprep.mubr.bf16.mxu0 0
        %1364 = vmatmul.mubr.bf16.gmra.mxu0 %v730
        %v1365 = vpop.f32.mrf.mxu0
        %v1366 = vadd.f32 0.0, %v1365
        %v1367 = vpop.f32.mrf.mxu0
        %v1368 = vpop.f32.mrf.mxu0
        %v1369 = vadd.f32 0.0, %v1368
        %v1370 = vpop.f32.mrf.mxu0
        %1371 = vmatprep.mubr.bf16.mxu0 0
        %1372 = vmatmul.mubr.bf16.gmra.mxu0 %v731
        %v1373 = vpop.f32.mrf.mxu0
        %v1374 = vadd.f32 0.0, %v1373
        %v1375 = vpop.f32.mrf.mxu0
        %v1376 = vpop.f32.mrf.mxu0
        %v1377 = vadd.f32 0.0, %v1376
        %v1378 = vpop.f32.mrf.mxu0
        %1379 = vdwg.mxu0
        %s1380 = smul.u32 %s21, 1008
        %s1381 = scalar_lea.vmem [#allocation2], %s1380
        %1382 = vst [vmem:[%s1381] sm:$0xff] %v878
        %1383 = vst [vmem:[%s1381 + $0x8] sm:$0xff] %v881
        %1384 = vst [vmem:[%s1381 + $0x10] sm:$0xff] %v886
        %1385 = vst [vmem:[%s1381 + $0x18] sm:$0xff] %v889
        %1386 = vst [vmem:[%s1381 + $0x20] sm:$0xff] %v894
        %1387 = vst [vmem:[%s1381 + $0x28] sm:$0xff] %v897
        %1388 = vst [vmem:[%s1381 + $0x30] sm:$0xff] %v902
        %1389 = vst [vmem:[%s1381 + $0x38] sm:$0xff] %v905
        %1390 = vst [vmem:[%s1381 + $0x40] sm:$0xff] %v910
        %1391 = vst [vmem:[%s1381 + $0x48] sm:$0xff] %v913
        %1392 = vst [vmem:[%s1381 + $0x50] sm:$0xff] %v918
        %1393 = vst [vmem:[%s1381 + $0x58] sm:$0xff] %v921
        %1394 = vst [vmem:[%s1381 + $0x60] sm:$0xff] %v926
        %1395 = vst [vmem:[%s1381 + $0x68] sm:$0xff] %v929
        %1396 = vst [vmem:[%s1381 + $0x70] sm:$0xff] %v934
        %1397 = vst [vmem:[%s1381 + $0x78] sm:$0xff] %v937
        %1398 = vst [vmem:[%s1381 + $0x80] sm:$0xff] %v942
        %1399 = vst [vmem:[%s1381 + $0x88] sm:$0xff] %v945
        %1400 = vst [vmem:[%s1381 + $0x90] sm:$0xff] %v950
        %1401 = vst [vmem:[%s1381 + $0x98] sm:$0xff] %v953
        %1402 = vst [vmem:[%s1381 + $0xa0] sm:$0xff] %v958
        %1403 = vst [vmem:[%s1381 + $0xa8] sm:$0xff] %v961
        %1404 = vst [vmem:[%s1381 + $0xb0] sm:$0xff] %v966
        %1405 = vst [vmem:[%s1381 + $0xb8] sm:$0xff] %v969
        %1406 = vst [vmem:[%s1381 + $0xc0] sm:$0xff] %v974
        %1407 = vst [vmem:[%s1381 + $0xc8] sm:$0xff] %v977
        %1408 = vst [vmem:[%s1381 + $0xd0] sm:$0xff] %v982
        %1409 = vst [vmem:[%s1381 + $0xd8] sm:$0xff] %v985
        %1410 = vst [vmem:[%s1381 + $0xe0] sm:$0xff] %v990
        %1411 = vst [vmem:[%s1381 + $0xe8] sm:$0xff] %v993
        %1412 = vst [vmem:[%s1381 + $0xf0] sm:$0xff] %v998
        %1413 = vst [vmem:[%s1381 + $0xf8] sm:$0xff] %v1001
        %1414 = vst [vmem:[%s1381 + $0x100] sm:$0xff] %v1006
        %1415 = vst [vmem:[%s1381 + $0x108] sm:$0xff] %v1009
        %1416 = vst [vmem:[%s1381 + $0x110] sm:$0xff] %v1014
        %1417 = vst [vmem:[%s1381 + $0x118] sm:$0xff] %v1017
        %1418 = vst [vmem:[%s1381 + $0x120] sm:$0xff] %v1022
        %1419 = vst [vmem:[%s1381 + $0x128] sm:$0xff] %v1025
        %1420 = vst [vmem:[%s1381 + $0x130] sm:$0xff] %v1030
        %1421 = vst [vmem:[%s1381 + $0x138] sm:$0xff] %v1033
        %1422 = vst [vmem:[%s1381 + $0x140] sm:$0xff] %v1038
        %1423 = vst [vmem:[%s1381 + $0x148] sm:$0xff] %v1041
        %1424 = vst [vmem:[%s1381 + $0x150] sm:$0xff] %v1046
        %1425 = vst [vmem:[%s1381 + $0x158] sm:$0xff] %v1049
        %1426 = vst [vmem:[%s1381 + $0x160] sm:$0xff] %v1054
        %1427 = vst [vmem:[%s1381 + $0x168] sm:$0xff] %v1057
        %1428 = vst [vmem:[%s1381 + $0x170] sm:$0xff] %v1062
        %1429 = vst [vmem:[%s1381 + $0x178] sm:$0xff] %v1065
        %1430 = vst [vmem:[%s1381 + $0x180] sm:$0xff] %v1070
        %1431 = vst [vmem:[%s1381 + $0x188] sm:$0xff] %v1073
        %1432 = vst [vmem:[%s1381 + $0x190] sm:$0xff] %v1078
        %1433 = vst [vmem:[%s1381 + $0x198] sm:$0xff] %v1081
        %1434 = vst [vmem:[%s1381 + $0x1a0] sm:$0xff] %v1086
        %1435 = vst [vmem:[%s1381 + $0x1a8] sm:$0xff] %v1089
        %1436 = vst [vmem:[%s1381 + $0x1b0] sm:$0xff] %v1094
        %1437 = vst [vmem:[%s1381 + $0x1b8] sm:$0xff] %v1097
        %1438 = vst [vmem:[%s1381 + $0x1c0] sm:$0xff] %v1102
        %1439 = vst [vmem:[%s1381 + $0x1c8] sm:$0xff] %v1105
        %1440 = vst [vmem:[%s1381 + $0x1d0] sm:$0xff] %v1110
        %1441 = vst [vmem:[%s1381 + $0x1d8] sm:$0xff] %v1113
        %1442 = vst [vmem:[%s1381 + $0x1e0] sm:$0xff] %v1118
        %1443 = vst [vmem:[%s1381 + $0x1e8] sm:$0xff] %v1121
        %1444 = vst [vmem:[%s1381 + $0x1f0] sm:$0xff] %v1126
        %1445 = vst [vmem:[%s1381 + $0x1f8] sm:$0xff] %v1129
        %1446 = vst [vmem:[%s1381 + $0x200] sm:$0xff] %v1134
        %1447 = vst [vmem:[%s1381 + $0x208] sm:$0xff] %v1137
        %1448 = vst [vmem:[%s1381 + $0x210] sm:$0xff] %v1142
        %1449 = vst [vmem:[%s1381 + $0x218] sm:$0xff] %v1145
        %1450 = vst [vmem:[%s1381 + $0x220] sm:$0xff] %v1150
        %1451 = vst [vmem:[%s1381 + $0x228] sm:$0xff] %v1153
        %1452 = vst [vmem:[%s1381 + $0x230] sm:$0xff] %v1158
        %1453 = vst [vmem:[%s1381 + $0x238] sm:$0xff] %v1161
        %1454 = vst [vmem:[%s1381 + $0x240] sm:$0xff] %v1166
        %1455 = vst [vmem:[%s1381 + $0x248] sm:$0xff] %v1169
        %1456 = vst [vmem:[%s1381 + $0x250] sm:$0xff] %v1174
        %1457 = vst [vmem:[%s1381 + $0x258] sm:$0xff] %v1177
        %1458 = vst [vmem:[%s1381 + $0x260] sm:$0xff] %v1182
        %1459 = vst [vmem:[%s1381 + $0x268] sm:$0xff] %v1185
        %1460 = vst [vmem:[%s1381 + $0x270] sm:$0xff] %v1190
        %1461 = vst [vmem:[%s1381 + $0x278] sm:$0xff] %v1193
        %1462 = vst [vmem:[%s1381 + $0x280] sm:$0xff] %v1198
        %1463 = vst [vmem:[%s1381 + $0x288] sm:$0xff] %v1201
        %1464 = vst [vmem:[%s1381 + $0x290] sm:$0xff] %v1206
        %1465 = vst [vmem:[%s1381 + $0x298] sm:$0xff] %v1209
        %1466 = vst [vmem:[%s1381 + $0x2a0] sm:$0xff] %v1214
        %1467 = vst [vmem:[%s1381 + $0x2a8] sm:$0xff] %v1217
        %1468 = vst [vmem:[%s1381 + $0x2b0] sm:$0xff] %v1222
        %1469 = vst [vmem:[%s1381 + $0x2b8] sm:$0xff] %v1225
        %1470 = vst [vmem:[%s1381 + $0x2c0] sm:$0xff] %v1230
        %1471 = vst [vmem:[%s1381 + $0x2c8] sm:$0xff] %v1233
        %1472 = vst [vmem:[%s1381 + $0x2d0] sm:$0xff] %v1238
        %1473 = vst [vmem:[%s1381 + $0x2d8] sm:$0xff] %v1241
        %1474 = vst [vmem:[%s1381 + $0x2e0] sm:$0xff] %v1246
        %1475 = vst [vmem:[%s1381 + $0x2e8] sm:$0xff] %v1249
        %1476 = vst [vmem:[%s1381 + $0x2f0] sm:$0xff] %v1254
        %1477 = vst [vmem:[%s1381 + $0x2f8] sm:$0xff] %v1257
        %1478 = vst [vmem:[%s1381 + $0x300] sm:$0xff] %v1262
        %1479 = vst [vmem:[%s1381 + $0x308] sm:$0xff] %v1265
        %1480 = vst [vmem:[%s1381 + $0x310] sm:$0xff] %v1270
        %1481 = vst [vmem:[%s1381 + $0x318] sm:$0xff] %v1273
        %1482 = vst [vmem:[%s1381 + $0x320] sm:$0xff] %v1278
        %1483 = vst [vmem:[%s1381 + $0x328] sm:$0xff] %v1281
        %1484 = vst [vmem:[%s1381 + $0x330] sm:$0xff] %v1286
        %1485 = vst [vmem:[%s1381 + $0x338] sm:$0xff] %v1289
        %1486 = vst [vmem:[%s1381 + $0x340] sm:$0xff] %v1294
        %1487 = vst [vmem:[%s1381 + $0x348] sm:$0xff] %v1297
        %1488 = vst [vmem:[%s1381 + $0x350] sm:$0xff] %v1302
        %1489 = vst [vmem:[%s1381 + $0x358] sm:$0xff] %v1305
        %1490 = vst [vmem:[%s1381 + $0x360] sm:$0xff] %v1310
        %1491 = vst [vmem:[%s1381 + $0x368] sm:$0xff] %v1313
        %1492 = vst [vmem:[%s1381 + $0x370] sm:$0xff] %v1318
        %1493 = vst [vmem:[%s1381 + $0x378] sm:$0xff] %v1321
        %1494 = vst [vmem:[%s1381 + $0x380] sm:$0xff] %v1326
        %1495 = vst [vmem:[%s1381 + $0x388] sm:$0xff] %v1329
        %1496 = vst [vmem:[%s1381 + $0x390] sm:$0xff] %v1334
        %1497 = vst [vmem:[%s1381 + $0x398] sm:$0xff] %v1337
        %1498 = vst [vmem:[%s1381 + $0x3a0] sm:$0xff] %v1342
        %1499 = vst [vmem:[%s1381 + $0x3a8] sm:$0xff] %v1345
        %1500 = vst [vmem:[%s1381 + $0x3b0] sm:$0xff] %v1350
        %1501 = vst [vmem:[%s1381 + $0x3b8] sm:$0xff] %v1353
        %1502 = vst [vmem:[%s1381 + $0x3c0] sm:$0xff] %v1358
        %1503 = vst [vmem:[%s1381 + $0x3c8] sm:$0xff] %v1361
        %1504 = vst [vmem:[%s1381 + $0x3d0] sm:$0xff] %v1366
        %1505 = vst [vmem:[%s1381 + $0x3d8] sm:$0xff] %v1369
        %1506 = vst [vmem:[%s1381 + $0x3e0] sm:$0xff] %v1374
        %1507 = vst [vmem:[%s1381 + $0x3e8] sm:$0xff] %v1377
        %v1508 = vld [vmem:[#allocation4] sm:$0x3]
        %v1509 = vadd.f32 %v878, %v881
        %v1510 = vadd.f32 %v1509, %v886
        %v1511 = vadd.f32 %v1510, %v889
        %v1512 = vadd.f32 %v1511, %v894
        %v1513 = vadd.f32 %v1512, %v897
        %v1514 = vadd.f32 %v1513, %v902
        %v1515 = vadd.f32 %v1514, %v905
        %v1516 = vadd.f32 %v1515, %v910
        %v1517 = vadd.f32 %v1516, %v913
        %v1518 = vadd.f32 %v1517, %v918
        %v1519 = vadd.f32 %v1518, %v921
        %v1520 = vadd.f32 %v1519, %v926
        %v1521 = vadd.f32 %v1520, %v929
        %v1522 = vadd.f32 %v1521, %v934
        %v1523 = vadd.f32 %v1522, %v937
        %v1524 = vadd.f32 %v1523, %v942
        %v1525 = vadd.f32 %v1524, %v945
        %v1526 = vadd.f32 %v1525, %v950
        %v1527 = vadd.f32 %v1526, %v953
        %v1528 = vadd.f32 %v1527, %v958
        %v1529 = vadd.f32 %v1528, %v961
        %v1530 = vadd.f32 %v1529, %v966
        %v1531 = vadd.f32 %v1530, %v969
        %v1532 = vadd.f32 %v1531, %v974
        %v1533 = vadd.f32 %v1532, %v977
        %v1534 = vadd.f32 %v1533, %v982
        %v1535 = vadd.f32 %v1534, %v985
        %v1536 = vadd.f32 %v1535, %v990
        %v1537 = vadd.f32 %v1536, %v993
        %v1538 = vadd.f32 %v1537, %v998
        %v1539 = vadd.f32 %v1538, %v1001
        %v1540 = vadd.f32 %v1539, %v1006
        %v1541 = vadd.f32 %v1540, %v1009
        %v1542 = vadd.f32 %v1541, %v1014
        %v1543 = vadd.f32 %v1542, %v1017
        %v1544 = vadd.f32 %v1543, %v1022
        %v1545 = vadd.f32 %v1544, %v1025
        %v1546 = vadd.f32 %v1545, %v1030
        %v1547 = vadd.f32 %v1546, %v1033
        %v1548 = vadd.f32 %v1547, %v1038
        %v1549 = vadd.f32 %v1548, %v1041
        %v1550 = vadd.f32 %v1549, %v1046
        %v1551 = vadd.f32 %v1550, %v1049
        %v1552 = vadd.f32 %v1551, %v1054
        %v1553 = vadd.f32 %v1552, %v1057
        %v1554 = vadd.f32 %v1553, %v1062
        %v1555 = vadd.f32 %v1554, %v1065
        %v1556 = vadd.f32 %v1555, %v1070
        %v1557 = vadd.f32 %v1556, %v1073
        %v1558 = vadd.f32 %v1557, %v1078
        %v1559 = vadd.f32 %v1558, %v1081
        %v1560 = vadd.f32 %v1559, %v1086
        %v1561 = vadd.f32 %v1560, %v1089
        %v1562 = vadd.f32 %v1561, %v1094
        %v1563 = vadd.f32 %v1562, %v1097
        %v1564 = vadd.f32 %v1563, %v1102
        %v1565 = vadd.f32 %v1564, %v1105
        %v1566 = vadd.f32 %v1565, %v1110
        %v1567 = vadd.f32 %v1566, %v1113
        %v1568 = vadd.f32 %v1567, %v1118
        %v1569 = vadd.f32 %v1568, %v1121
        %v1570 = vadd.f32 %v1569, %v1126
        %v1571 = vadd.f32 %v1570, %v1129
        %v1572 = vadd.f32 %v1571, %v1134
        %v1573 = vadd.f32 %v1572, %v1137
        %v1574 = vadd.f32 %v1573, %v1142
        %v1575 = vadd.f32 %v1574, %v1145
        %v1576 = vadd.f32 %v1575, %v1150
        %v1577 = vadd.f32 %v1576, %v1153
        %v1578 = vadd.f32 %v1577, %v1158
        %v1579 = vadd.f32 %v1578, %v1161
        %v1580 = vadd.f32 %v1579, %v1166
        %v1581 = vadd.f32 %v1580, %v1169
        %v1582 = vadd.f32 %v1581, %v1174
        %v1583 = vadd.f32 %v1582, %v1177
        %v1584 = vadd.f32 %v1583, %v1182
        %v1585 = vadd.f32 %v1584, %v1185
        %v1586 = vadd.f32 %v1585, %v1190
        %v1587 = vadd.f32 %v1586, %v1193
        %v1588 = vadd.f32 %v1587, %v1198
        %v1589 = vadd.f32 %v1588, %v1201
        %v1590 = vadd.f32 %v1589, %v1206
        %v1591 = vadd.f32 %v1590, %v1209
        %v1592 = vadd.f32 %v1591, %v1214
        %v1593 = vadd.f32 %v1592, %v1217
        %v1594 = vadd.f32 %v1593, %v1222
        %v1595 = vadd.f32 %v1594, %v1225
        %v1596 = vadd.f32 %v1595, %v1230
        %v1597 = vadd.f32 %v1596, %v1233
        %v1598 = vadd.f32 %v1597, %v1238
        %v1599 = vadd.f32 %v1598, %v1241
        %v1600 = vadd.f32 %v1599, %v1246
        %v1601 = vadd.f32 %v1600, %v1249
        %v1602 = vadd.f32 %v1601, %v1254
        %v1603 = vadd.f32 %v1602, %v1257
        %v1604 = vadd.f32 %v1603, %v1262
        %v1605 = vadd.f32 %v1604, %v1265
        %v1606 = vadd.f32 %v1605, %v1270
        %v1607 = vadd.f32 %v1606, %v1273
        %v1608 = vadd.f32 %v1607, %v1278
        %v1609 = vadd.f32 %v1608, %v1281
        %v1610 = vadd.f32 %v1609, %v1286
        %v1611 = vadd.f32 %v1610, %v1289
        %v1612 = vadd.f32 %v1611, %v1294
        %v1613 = vadd.f32 %v1612, %v1297
        %v1614 = vadd.f32 %v1613, %v1302
        %v1615 = vadd.f32 %v1614, %v1305
        %v1616 = vadd.f32 %v1615, %v1310
        %v1617 = vadd.f32 %v1616, %v1313
        %v1618 = vadd.f32 %v1617, %v1318
        %v1619 = vadd.f32 %v1618, %v1321
        %v1620 = vadd.f32 %v1619, %v1326
        %v1621 = vadd.f32 %v1620, %v1329
        %v1622 = vadd.f32 %v1621, %v1334
        %v1623 = vadd.f32 %v1622, %v1337
        %v1624 = vadd.f32 %v1623, %v1342
        %v1625 = vadd.f32 %v1624, %v1345
        %v1626 = vadd.f32 %v1625, %v1350
        %v1627 = vadd.f32 %v1626, %v1353
        %v1628 = vadd.f32 %v1627, %v1358
        %v1629 = vadd.f32 %v1628, %v1361
        %v1630 = vadd.f32 %v1629, %v1366
        %v1631 = vadd.f32 %v1630, %v1369
        %v1632 = vadd.f32 %v1631, %v1374
        %v1633 = vadd.f32 %v1632, %v1377
        %v1634 = vrot.slane %v1633, 4
        %v1635 = vadd.f32 %v1633, %v1634
        %v1636 = vrot.slane %v1635, 2
        %v1637 = vadd.f32 %v1635, %v1636
        %v1638 = vrot.slane %v1637, 1
        %v1639 = vadd.f32 %v1637, %v1638
        %v1640 = vmul.f32 %v878, %v878
        %v1641 = vmul.f32 %v881, %v881
        %v1642 = vmul.f32 %v886, %v886
        %v1643 = vmul.f32 %v889, %v889
        %v1644 = vmul.f32 %v894, %v894
        %v1645 = vmul.f32 %v897, %v897
        %v1646 = vmul.f32 %v902, %v902
        %v1647 = vmul.f32 %v905, %v905
        %v1648 = vmul.f32 %v910, %v910
        %v1649 = vmul.f32 %v913, %v913
        %v1650 = vmul.f32 %v918, %v918
        %v1651 = vmul.f32 %v921, %v921
        %v1652 = vmul.f32 %v926, %v926
        %v1653 = vmul.f32 %v929, %v929
        %v1654 = vmul.f32 %v934, %v934
        %v1655 = vmul.f32 %v937, %v937
        %v1656 = vmul.f32 %v942, %v942
        %v1657 = vmul.f32 %v945, %v945
        %v1658 = vmul.f32 %v950, %v950
        %v1659 = vmul.f32 %v953, %v953
        %v1660 = vmul.f32 %v958, %v958
        %v1661 = vmul.f32 %v961, %v961
        %v1662 = vmul.f32 %v966, %v966
        %v1663 = vmul.f32 %v969, %v969
        %v1664 = vmul.f32 %v974, %v974
        %v1665 = vmul.f32 %v977, %v977
        %v1666 = vmul.f32 %v982, %v982
        %v1667 = vmul.f32 %v985, %v985
        %v1668 = vmul.f32 %v990, %v990
        %v1669 = vmul.f32 %v993, %v993
        %v1670 = vmul.f32 %v998, %v998
        %v1671 = vmul.f32 %v1001, %v1001
        %v1672 = vmul.f32 %v1006, %v1006
        %v1673 = vmul.f32 %v1009, %v1009
        %v1674 = vmul.f32 %v1014, %v1014
        %v1675 = vmul.f32 %v1017, %v1017
        %v1676 = vmul.f32 %v1022, %v1022
        %v1677 = vmul.f32 %v1025, %v1025
        %v1678 = vmul.f32 %v1030, %v1030
        %v1679 = vmul.f32 %v1033, %v1033
        %v1680 = vmul.f32 %v1038, %v1038
        %v1681 = vmul.f32 %v1041, %v1041
        %v1682 = vmul.f32 %v1046, %v1046
        %v1683 = vmul.f32 %v1049, %v1049
        %v1684 = vmul.f32 %v1054, %v1054
        %v1685 = vmul.f32 %v1057, %v1057
        %v1686 = vmul.f32 %v1062, %v1062
        %v1687 = vmul.f32 %v1065, %v1065
        %v1688 = vmul.f32 %v1070, %v1070
        %v1689 = vmul.f32 %v1073, %v1073
        %v1690 = vmul.f32 %v1078, %v1078
        %v1691 = vmul.f32 %v1081, %v1081
        %v1692 = vmul.f32 %v1086, %v1086
        %v1693 = vmul.f32 %v1089, %v1089
        %v1694 = vmul.f32 %v1094, %v1094
        %v1695 = vmul.f32 %v1097, %v1097
        %v1696 = vmul.f32 %v1102, %v1102
        %v1697 = vmul.f32 %v1105, %v1105
        %v1698 = vmul.f32 %v1110, %v1110
        %v1699 = vmul.f32 %v1113, %v1113
        %v1700 = vmul.f32 %v1118, %v1118
        %v1701 = vmul.f32 %v1121, %v1121
        %v1702 = vmul.f32 %v1126, %v1126
        %v1703 = vmul.f32 %v1129, %v1129
        %v1704 = vmul.f32 %v1134, %v1134
        %v1705 = vmul.f32 %v1137, %v1137
        %v1706 = vmul.f32 %v1142, %v1142
        %v1707 = vmul.f32 %v1145, %v1145
        %v1708 = vmul.f32 %v1150, %v1150
        %v1709 = vmul.f32 %v1153, %v1153
        %v1710 = vmul.f32 %v1158, %v1158
        %v1711 = vmul.f32 %v1161, %v1161
        %v1712 = vmul.f32 %v1166, %v1166
        %v1713 = vmul.f32 %v1169, %v1169
        %v1714 = vmul.f32 %v1174, %v1174
        %v1715 = vmul.f32 %v1177, %v1177
        %v1716 = vmul.f32 %v1182, %v1182
        %v1717 = vmul.f32 %v1185, %v1185
        %v1718 = vmul.f32 %v1190, %v1190
        %v1719 = vmul.f32 %v1193, %v1193
        %v1720 = vmul.f32 %v1198, %v1198
        %v1721 = vmul.f32 %v1201, %v1201
        %v1722 = vmul.f32 %v1206, %v1206
        %v1723 = vmul.f32 %v1209, %v1209
        %v1724 = vmul.f32 %v1214, %v1214
        %v1725 = vmul.f32 %v1217, %v1217
        %v1726 = vmul.f32 %v1222, %v1222
        %v1727 = vmul.f32 %v1225, %v1225
        %v1728 = vmul.f32 %v1230, %v1230
        %v1729 = vmul.f32 %v1233, %v1233
        %v1730 = vmul.f32 %v1238, %v1238
        %v1731 = vmul.f32 %v1241, %v1241
        %v1732 = vmul.f32 %v1246, %v1246
        %v1733 = vmul.f32 %v1249, %v1249
        %v1734 = vmul.f32 %v1254, %v1254
        %v1735 = vmul.f32 %v1257, %v1257
        %v1736 = vmul.f32 %v1262, %v1262
        %v1737 = vmul.f32 %v1265, %v1265
        %v1738 = vmul.f32 %v1270, %v1270
        %v1739 = vmul.f32 %v1273, %v1273
        %v1740 = vmul.f32 %v1278, %v1278
        %v1741 = vmul.f32 %v1281, %v1281
        %v1742 = vmul.f32 %v1286, %v1286
        %v1743 = vmul.f32 %v1289, %v1289
        %v1744 = vmul.f32 %v1294, %v1294
        %v1745 = vmul.f32 %v1297, %v1297
        %v1746 = vmul.f32 %v1302, %v1302
        %v1747 = vmul.f32 %v1305, %v1305
        %v1748 = vmul.f32 %v1310, %v1310
        %v1749 = vmul.f32 %v1313, %v1313
        %v1750 = vmul.f32 %v1318, %v1318
        %v1751 = vmul.f32 %v1321, %v1321
        %v1752 = vmul.f32 %v1326, %v1326
        %v1753 = vmul.f32 %v1329, %v1329
        %v1754 = vmul.f32 %v1334, %v1334
        %v1755 = vmul.f32 %v1337, %v1337
        %v1756 = vmul.f32 %v1342, %v1342
        %v1757 = vmul.f32 %v1345, %v1345
        %v1758 = vmul.f32 %v1350, %v1350
        %v1759 = vmul.f32 %v1353, %v1353
        %v1760 = vmul.f32 %v1358, %v1358
        %v1761 = vmul.f32 %v1361, %v1361
        %v1762 = vmul.f32 %v1366, %v1366
        %v1763 = vmul.f32 %v1369, %v1369
        %v1764 = vmul.f32 %v1374, %v1374
        %v1765 = vmul.f32 %v1377, %v1377
        %v1766 = vadd.f32 %v1640, %v1641
        %v1767 = vadd.f32 %v1766, %v1642
        %v1768 = vadd.f32 %v1767, %v1643
        %v1769 = vadd.f32 %v1768, %v1644
        %v1770 = vadd.f32 %v1769, %v1645
        %v1771 = vadd.f32 %v1770, %v1646
        %v1772 = vadd.f32 %v1771, %v1647
        %v1773 = vadd.f32 %v1772, %v1648
        %v1774 = vadd.f32 %v1773, %v1649
        %v1775 = vadd.f32 %v1774, %v1650
        %v1776 = vadd.f32 %v1775, %v1651
        %v1777 = vadd.f32 %v1776, %v1652
        %v1778 = vadd.f32 %v1777, %v1653
        %v1779 = vadd.f32 %v1778, %v1654
        %v1780 = vadd.f32 %v1779, %v1655
        %v1781 = vadd.f32 %v1780, %v1656
        %v1782 = vadd.f32 %v1781, %v1657
        %v1783 = vadd.f32 %v1782, %v1658
        %v1784 = vadd.f32 %v1783, %v1659
        %v1785 = vadd.f32 %v1784, %v1660
        %v1786 = vadd.f32 %v1785, %v1661
        %v1787 = vadd.f32 %v1786, %v1662
        %v1788 = vadd.f32 %v1787, %v1663
        %v1789 = vadd.f32 %v1788, %v1664
        %v1790 = vadd.f32 %v1789, %v1665
        %v1791 = vadd.f32 %v1790, %v1666
        %v1792 = vadd.f32 %v1791, %v1667
        %v1793 = vadd.f32 %v1792, %v1668
        %v1794 = vadd.f32 %v1793, %v1669
        %v1795 = vadd.f32 %v1794, %v1670
        %v1796 = vadd.f32 %v1795, %v1671
        %v1797 = vadd.f32 %v1796, %v1672
        %v1798 = vadd.f32 %v1797, %v1673
        %v1799 = vadd.f32 %v1798, %v1674
        %v1800 = vadd.f32 %v1799, %v1675
        %v1801 = vadd.f32 %v1800, %v1676
        %v1802 = vadd.f32 %v1801, %v1677
        %v1803 = vadd.f32 %v1802, %v1678
        %v1804 = vadd.f32 %v1803, %v1679
        %v1805 = vadd.f32 %v1804, %v1680
        %v1806 = vadd.f32 %v1805, %v1681
        %v1807 = vadd.f32 %v1806, %v1682
        %v1808 = vadd.f32 %v1807, %v1683
        %v1809 = vadd.f32 %v1808, %v1684
        %v1810 = vadd.f32 %v1809, %v1685
        %v1811 = vadd.f32 %v1810, %v1686
        %v1812 = vadd.f32 %v1811, %v1687
        %v1813 = vadd.f32 %v1812, %v1688
        %v1814 = vadd.f32 %v1813, %v1689
        %v1815 = vadd.f32 %v1814, %v1690
        %v1816 = vadd.f32 %v1815, %v1691
        %v1817 = vadd.f32 %v1816, %v1692
        %v1818 = vadd.f32 %v1817, %v1693
        %v1819 = vadd.f32 %v1818, %v1694
        %v1820 = vadd.f32 %v1819, %v1695
        %v1821 = vadd.f32 %v1820, %v1696
        %v1822 = vadd.f32 %v1821, %v1697
        %v1823 = vadd.f32 %v1822, %v1698
        %v1824 = vadd.f32 %v1823, %v1699
        %v1825 = vadd.f32 %v1824, %v1700
        %v1826 = vadd.f32 %v1825, %v1701
        %v1827 = vadd.f32 %v1826, %v1702
        %v1828 = vadd.f32 %v1827, %v1703
        %v1829 = vadd.f32 %v1828, %v1704
        %v1830 = vadd.f32 %v1829, %v1705
        %v1831 = vadd.f32 %v1830, %v1706
        %v1832 = vadd.f32 %v1831, %v1707
        %v1833 = vadd.f32 %v1832, %v1708
        %v1834 = vadd.f32 %v1833, %v1709
        %v1835 = vadd.f32 %v1834, %v1710
        %v1836 = vadd.f32 %v1835, %v1711
        %v1837 = vadd.f32 %v1836, %v1712
        %v1838 = vadd.f32 %v1837, %v1713
        %v1839 = vadd.f32 %v1838, %v1714
        %v1840 = vadd.f32 %v1839, %v1715
        %v1841 = vadd.f32 %v1840, %v1716
        %v1842 = vadd.f32 %v1841, %v1717
        %v1843 = vadd.f32 %v1842, %v1718
        %v1844 = vadd.f32 %v1843, %v1719
        %v1845 = vadd.f32 %v1844, %v1720
        %v1846 = vadd.f32 %v1845, %v1721
        %v1847 = vadd.f32 %v1846, %v1722
        %v1848 = vadd.f32 %v1847, %v1723
        %v1849 = vadd.f32 %v1848, %v1724
        %v1850 = vadd.f32 %v1849, %v1725
        %v1851 = vadd.f32 %v1850, %v1726
        %v1852 = vadd.f32 %v1851, %v1727
        %v1853 = vadd.f32 %v1852, %v1728
        %v1854 = vadd.f32 %v1853, %v1729
        %v1855 = vadd.f32 %v1854, %v1730
        %v1856 = vadd.f32 %v1855, %v1731
        %v1857 = vadd.f32 %v1856, %v1732
        %v1858 = vadd.f32 %v1857, %v1733
        %v1859 = vadd.f32 %v1858, %v1734
        %v1860 = vadd.f32 %v1859, %v1735
        %v1861 = vadd.f32 %v1860, %v1736
        %v1862 = vadd.f32 %v1861, %v1737
        %v1863 = vadd.f32 %v1862, %v1738
        %v1864 = vadd.f32 %v1863, %v1739
        %v1865 = vadd.f32 %v1864, %v1740
        %v1866 = vadd.f32 %v1865, %v1741
        %v1867 = vadd.f32 %v1866, %v1742
        %v1868 = vadd.f32 %v1867, %v1743
        %v1869 = vadd.f32 %v1868, %v1744
        %v1870 = vadd.f32 %v1869, %v1745
        %v1871 = vadd.f32 %v1870, %v1746
        %v1872 = vadd.f32 %v1871, %v1747
        %v1873 = vadd.f32 %v1872, %v1748
        %v1874 = vadd.f32 %v1873, %v1749
        %v1875 = vadd.f32 %v1874, %v1750
        %v1876 = vadd.f32 %v1875, %v1751
        %v1877 = vadd.f32 %v1876, %v1752
        %v1878 = vadd.f32 %v1877, %v1753
        %v1879 = vadd.f32 %v1878, %v1754
        %v1880 = vadd.f32 %v1879, %v1755
        %v1881 = vadd.f32 %v1880, %v1756
        %v1882 = vadd.f32 %v1881, %v1757
        %v1883 = vadd.f32 %v1882, %v1758
        %v1884 = vadd.f32 %v1883, %v1759
        %v1885 = vadd.f32 %v1884, %v1760
        %v1886 = vadd.f32 %v1885, %v1761
        %v1887 = vadd.f32 %v1886, %v1762
        %v1888 = vadd.f32 %v1887, %v1763
        %v1889 = vadd.f32 %v1888, %v1764
        %v1890 = vadd.f32 %v1889, %v1765
        %v1891 = vrot.slane %v1890, 4
        %v1892 = vadd.f32 %v1890, %v1891
        %v1893 = vrot.slane %v1892, 2
        %v1894 = vadd.f32 %v1892, %v1893
        %v1895 = vrot.slane %v1894, 1
        %v1896 = vadd.f32 %v1894, %v1895
        %vm1897 = vcmask 1040384
        %v1898 = vsel %vm1897, %v1639, %v1896
        %v1899 = vadd.f32 %v1508, %v1898
        %1900 = vst [vmem:[#allocation4] sm:$0x3] %v1899
      $region44: #{apply_node_func.1} parent=39 // pred_fallthru
        _
      %p1901 = scmp.eq.s32.totalorder %s20, 1
      // Predicated region
      $region49: #{apply_node_func.1} parent=39 // pred_check
        %p1902 = pneg %p1901
      $region50: #{apply_node_func.1} parent=39 // pred_check_branch
        %1904 = sbr.rel (%p1902) target = $region52
      $region51: #{apply_node_func.1} parent=39 // pred_region
        %p1905 = scmp.eq.s32.totalorder %s21, 0
        // Predicated region
        $region53: #{apply_node_func.1} parent=51 // pred_check
          %p1906 = pneg %p1905
        $region54: #{apply_node_func.1} parent=51 // pred_check_branch
          %1908 = sbr.rel (%p1906) target = $region56
        $region55: #{apply_node_func.1} parent=51 // pred_region
          %v1909 = vld [vmem:[#allocation4] sm:$0x1]
          %v1910 = vmul.f32 %v1909, 0.000999001
          %v1911 = vld [vmem:[#allocation4 + $0x1] sm:$0x1]
          %v1912 = vmul.f32 %v1911, 0.000999001
          %v1913 = vmul.f32 %v1910, %v1910
          %v1914 = vsub.f32 %v1912, %v1913
          %v1915 = vmax.f32 %v1914, 0.0
          %v1916 = vld [vmem:[%s3] sm:$0x1]
          %v1917 = vadd.f32 %v1915, 1e-05
          %v1918 = vrsqrt.pop %v1917
          %v1919 = vmul.f32 %v1916, %v1918
          %v1920 = vld [vmem:[%s3 + $0x1] sm:$0x1]
          %v1921 = vmul.f32 %v1910, %v1919
          %v1922 = vsub.f32 %v1920, %v1921
          %v1924 = vrot.slane %v1922, 7
          %vm1926 = vcmask 1040384
          %v1927 = vsel %vm1926, %v1919, %v1924
          %1928 = vst [vmem:[#allocation6] sm:$0x3] %v1927
        $region56: #{apply_node_func.1} parent=51 // pred_fallthru
          _
        %s1929 = smul.u32 %s21, 1008
        %s1930 = scalar_lea.vmem [#allocation2], %s1929
        %v1931 = vld [vmem:[%s1930] sm:$0xff]
        %v1932 = vld [vmem:[%s1930 + $0x8] sm:$0xff]
        %v1933 = vld [vmem:[%s1930 + $0x10] sm:$0xff]
        %v1934 = vld [vmem:[%s1930 + $0x18] sm:$0xff]
        %v1935 = vld [vmem:[%s1930 + $0x20] sm:$0xff]
        %v1936 = vld [vmem:[%s1930 + $0x28] sm:$0xff]
        %v1937 = vld [vmem:[%s1930 + $0x30] sm:$0xff]
        %v1938 = vld [vmem:[%s1930 + $0x38] sm:$0xff]
        %v1939 = vld [vmem:[%s1930 + $0x40] sm:$0xff]
        %v1940 = vld [vmem:[%s1930 + $0x48] sm:$0xff]
        %v1941 = vld [vmem:[%s1930 + $0x50] sm:$0xff]
        %v1942 = vld [vmem:[%s1930 + $0x58] sm:$0xff]
        %v1943 = vld [vmem:[%s1930 + $0x60] sm:$0xff]
        %v1944 = vld [vmem:[%s1930 + $0x68] sm:$0xff]
        %v1945 = vld [vmem:[%s1930 + $0x70] sm:$0xff]
        %v1946 = vld [vmem:[%s1930 + $0x78] sm:$0xff]
        %v1947 = vld [vmem:[%s1930 + $0x80] sm:$0xff]
        %v1948 = vld [vmem:[%s1930 + $0x88] sm:$0xff]
        %v1949 = vld [vmem:[%s1930 + $0x90] sm:$0xff]
        %v1950 = vld [vmem:[%s1930 + $0x98] sm:$0xff]
        %v1951 = vld [vmem:[%s1930 + $0xa0] sm:$0xff]
        %v1952 = vld [vmem:[%s1930 + $0xa8] sm:$0xff]
        %v1953 = vld [vmem:[%s1930 + $0xb0] sm:$0xff]
        %v1954 = vld [vmem:[%s1930 + $0xb8] sm:$0xff]
        %v1955 = vld [vmem:[%s1930 + $0xc0] sm:$0xff]
        %v1956 = vld [vmem:[%s1930 + $0xc8] sm:$0xff]
        %v1957 = vld [vmem:[%s1930 + $0xd0] sm:$0xff]
        %v1958 = vld [vmem:[%s1930 + $0xd8] sm:$0xff]
        %v1959 = vld [vmem:[%s1930 + $0xe0] sm:$0xff]
        %v1960 = vld [vmem:[%s1930 + $0xe8] sm:$0xff]
        %v1961 = vld [vmem:[%s1930 + $0xf0] sm:$0xff]
        %v1962 = vld [vmem:[%s1930 + $0xf8] sm:$0xff]
        %v1963 = vld [vmem:[%s1930 + $0x100] sm:$0xff]
        %v1964 = vld [vmem:[%s1930 + $0x108] sm:$0xff]
        %v1965 = vld [vmem:[%s1930 + $0x110] sm:$0xff]
        %v1966 = vld [vmem:[%s1930 + $0x118] sm:$0xff]
        %v1967 = vld [vmem:[%s1930 + $0x120] sm:$0xff]
        %v1968 = vld [vmem:[%s1930 + $0x128] sm:$0xff]
        %v1969 = vld [vmem:[%s1930 + $0x130] sm:$0xff]
        %v1970 = vld [vmem:[%s1930 + $0x138] sm:$0xff]
        %v1971 = vld [vmem:[%s1930 + $0x140] sm:$0xff]
        %v1972 = vld [vmem:[%s1930 + $0x148] sm:$0xff]
        %v1973 = vld [vmem:[%s1930 + $0x150] sm:$0xff]
        %v1974 = vld [vmem:[%s1930 + $0x158] sm:$0xff]
        %v1975 = vld [vmem:[%s1930 + $0x160] sm:$0xff]
        %v1976 = vld [vmem:[%s1930 + $0x168] sm:$0xff]
        %v1977 = vld [vmem:[%s1930 + $0x170] sm:$0xff]
        %v1978 = vld [vmem:[%s1930 + $0x178] sm:$0xff]
        %v1979 = vld [vmem:[%s1930 + $0x180] sm:$0xff]
        %v1980 = vld [vmem:[%s1930 + $0x188] sm:$0xff]
        %v1981 = vld [vmem:[%s1930 + $0x190] sm:$0xff]
        %v1982 = vld [vmem:[%s1930 + $0x198] sm:$0xff]
        %v1983 = vld [vmem:[%s1930 + $0x1a0] sm:$0xff]
        %v1984 = vld [vmem:[%s1930 + $0x1a8] sm:$0xff]
        %v1985 = vld [vmem:[%s1930 + $0x1b0] sm:$0xff]
        %v1986 = vld [vmem:[%s1930 + $0x1b8] sm:$0xff]
        %v1987 = vld [vmem:[%s1930 + $0x1c0] sm:$0xff]
        %v1988 = vld [vmem:[%s1930 + $0x1c8] sm:$0xff]
        %v1989 = vld [vmem:[%s1930 + $0x1d0] sm:$0xff]
        %v1990 = vld [vmem:[%s1930 + $0x1d8] sm:$0xff]
        %v1991 = vld [vmem:[%s1930 + $0x1e0] sm:$0xff]
        %v1992 = vld [vmem:[%s1930 + $0x1e8] sm:$0xff]
        %v1993 = vld [vmem:[%s1930 + $0x1f0] sm:$0xff]
        %v1994 = vld [vmem:[%s1930 + $0x1f8] sm:$0xff]
        %v1995 = vld [vmem:[%s1930 + $0x200] sm:$0xff]
        %v1996 = vld [vmem:[%s1930 + $0x208] sm:$0xff]
        %v1997 = vld [vmem:[%s1930 + $0x210] sm:$0xff]
        %v1998 = vld [vmem:[%s1930 + $0x218] sm:$0xff]
        %v1999 = vld [vmem:[%s1930 + $0x220] sm:$0xff]
        %v2000 = vld [vmem:[%s1930 + $0x228] sm:$0xff]
        %v2001 = vld [vmem:[%s1930 + $0x230] sm:$0xff]
        %v2002 = vld [vmem:[%s1930 + $0x238] sm:$0xff]
        %v2003 = vld [vmem:[%s1930 + $0x240] sm:$0xff]
        %v2004 = vld [vmem:[%s1930 + $0x248] sm:$0xff]
        %v2005 = vld [vmem:[%s1930 + $0x250] sm:$0xff]
        %v2006 = vld [vmem:[%s1930 + $0x258] sm:$0xff]
        %v2007 = vld [vmem:[%s1930 + $0x260] sm:$0xff]
        %v2008 = vld [vmem:[%s1930 + $0x268] sm:$0xff]
        %v2009 = vld [vmem:[%s1930 + $0x270] sm:$0xff]
        %v2010 = vld [vmem:[%s1930 + $0x278] sm:$0xff]
        %v2011 = vld [vmem:[%s1930 + $0x280] sm:$0xff]
        %v2012 = vld [vmem:[%s1930 + $0x288] sm:$0xff]
        %v2013 = vld [vmem:[%s1930 + $0x290] sm:$0xff]
        %v2014 = vld [vmem:[%s1930 + $0x298] sm:$0xff]
        %v2015 = vld [vmem:[%s1930 + $0x2a0] sm:$0xff]
        %v2016 = vld [vmem:[%s1930 + $0x2a8] sm:$0xff]
        %v2017 = vld [vmem:[%s1930 + $0x2b0] sm:$0xff]
        %v2018 = vld [vmem:[%s1930 + $0x2b8] sm:$0xff]
        %v2019 = vld [vmem:[%s1930 + $0x2c0] sm:$0xff]
        %v2020 = vld [vmem:[%s1930 + $0x2c8] sm:$0xff]
        %v2021 = vld [vmem:[%s1930 + $0x2d0] sm:$0xff]
        %v2022 = vld [vmem:[%s1930 + $0x2d8] sm:$0xff]
        %v2023 = vld [vmem:[%s1930 + $0x2e0] sm:$0xff]
        %v2024 = vld [vmem:[%s1930 + $0x2e8] sm:$0xff]
        %v2025 = vld [vmem:[%s1930 + $0x2f0] sm:$0xff]
        %v2026 = vld [vmem:[%s1930 + $0x2f8] sm:$0xff]
        %v2027 = vld [vmem:[%s1930 + $0x300] sm:$0xff]
        %v2028 = vld [vmem:[%s1930 + $0x308] sm:$0xff]
        %v2029 = vld [vmem:[%s1930 + $0x310] sm:$0xff]
        %v2030 = vld [vmem:[%s1930 + $0x318] sm:$0xff]
        %v2031 = vld [vmem:[%s1930 + $0x320] sm:$0xff]
        %v2032 = vld [vmem:[%s1930 + $0x328] sm:$0xff]
        %v2033 = vld [vmem:[%s1930 + $0x330] sm:$0xff]
        %v2034 = vld [vmem:[%s1930 + $0x338] sm:$0xff]
        %v2035 = vld [vmem:[%s1930 + $0x340] sm:$0xff]
        %v2036 = vld [vmem:[%s1930 + $0x348] sm:$0xff]
        %v2037 = vld [vmem:[%s1930 + $0x350] sm:$0xff]
        %v2038 = vld [vmem:[%s1930 + $0x358] sm:$0xff]
        %v2039 = vld [vmem:[%s1930 + $0x360] sm:$0xff]
        %v2040 = vld [vmem:[%s1930 + $0x368] sm:$0xff]
        %v2041 = vld [vmem:[%s1930 + $0x370] sm:$0xff]
        %v2042 = vld [vmem:[%s1930 + $0x378] sm:$0xff]
        %v2043 = vld [vmem:[%s1930 + $0x380] sm:$0xff]
        %v2044 = vld [vmem:[%s1930 + $0x388] sm:$0xff]
        %v2045 = vld [vmem:[%s1930 + $0x390] sm:$0xff]
        %v2046 = vld [vmem:[%s1930 + $0x398] sm:$0xff]
        %v2047 = vld [vmem:[%s1930 + $0x3a0] sm:$0xff]
        %v2048 = vld [vmem:[%s1930 + $0x3a8] sm:$0xff]
        %v2049 = vld [vmem:[%s1930 + $0x3b0] sm:$0xff]
        %v2050 = vld [vmem:[%s1930 + $0x3b8] sm:$0xff]
        %v2051 = vld [vmem:[%s1930 + $0x3c0] sm:$0xff]
        %v2052 = vld [vmem:[%s1930 + $0x3c8] sm:$0xff]
        %v2053 = vld [vmem:[%s1930 + $0x3d0] sm:$0xff]
        %v2054 = vld [vmem:[%s1930 + $0x3d8] sm:$0xff]
        %v2055 = vld [vmem:[%s1930 + $0x3e0] sm:$0xff]
        %v2056 = vld [vmem:[%s1930 + $0x3e8] sm:$0xff]
        %v2057 = vld [vmem:[#allocation6] sm:$0x1]
        %v2058 = vlaneseq
        %v2059 = vshrl.u32 %v2058, 7
        %v2060 = vsub.s32 0, %v2059
        %v2061 = vrot.slane %v2057, %v2060
        %v2062 = vmul.f32 %v1931, %v2061
        %v2063 = vmul.f32 %v1932, %v2061
        %v2064 = vmul.f32 %v1933, %v2061
        %v2065 = vmul.f32 %v1934, %v2061
        %v2066 = vmul.f32 %v1935, %v2061
        %v2067 = vmul.f32 %v1936, %v2061
        %v2068 = vmul.f32 %v1937, %v2061
        %v2069 = vmul.f32 %v1938, %v2061
        %v2070 = vmul.f32 %v1939, %v2061
        %v2071 = vmul.f32 %v1940, %v2061
        %v2072 = vmul.f32 %v1941, %v2061
        %v2073 = vmul.f32 %v1942, %v2061
        %v2074 = vmul.f32 %v1943, %v2061
        %v2075 = vmul.f32 %v1944, %v2061
        %v2076 = vmul.f32 %v1945, %v2061
        %v2077 = vmul.f32 %v1946, %v2061
        %v2078 = vmul.f32 %v1947, %v2061
        %v2079 = vmul.f32 %v1948, %v2061
        %v2080 = vmul.f32 %v1949, %v2061
        %v2081 = vmul.f32 %v1950, %v2061
        %v2082 = vmul.f32 %v1951, %v2061
        %v2083 = vmul.f32 %v1952, %v2061
        %v2084 = vmul.f32 %v1953, %v2061
        %v2085 = vmul.f32 %v1954, %v2061
        %v2086 = vmul.f32 %v1955, %v2061
        %v2087 = vmul.f32 %v1956, %v2061
        %v2088 = vmul.f32 %v1957, %v2061
        %v2089 = vmul.f32 %v1958, %v2061
        %v2090 = vmul.f32 %v1959, %v2061
        %v2091 = vmul.f32 %v1960, %v2061
        %v2092 = vmul.f32 %v1961, %v2061
        %v2093 = vmul.f32 %v1962, %v2061
        %v2094 = vmul.f32 %v1963, %v2061
        %v2095 = vmul.f32 %v1964, %v2061
        %v2096 = vmul.f32 %v1965, %v2061
        %v2097 = vmul.f32 %v1966, %v2061
        %v2098 = vmul.f32 %v1967, %v2061
        %v2099 = vmul.f32 %v1968, %v2061
        %v2100 = vmul.f32 %v1969, %v2061
        %v2101 = vmul.f32 %v1970, %v2061
        %v2102 = vmul.f32 %v1971, %v2061
        %v2103 = vmul.f32 %v1972, %v2061
        %v2104 = vmul.f32 %v1973, %v2061
        %v2105 = vmul.f32 %v1974, %v2061
        %v2106 = vmul.f32 %v1975, %v2061
        %v2107 = vmul.f32 %v1976, %v2061
        %v2108 = vmul.f32 %v1977, %v2061
        %v2109 = vmul.f32 %v1978, %v2061
        %v2110 = vmul.f32 %v1979, %v2061
        %v2111 = vmul.f32 %v1980, %v2061
        %v2112 = vmul.f32 %v1981, %v2061
        %v2113 = vmul.f32 %v1982, %v2061
        %v2114 = vmul.f32 %v1983, %v2061
        %v2115 = vmul.f32 %v1984, %v2061
        %v2116 = vmul.f32 %v1985, %v2061
        %v2117 = vmul.f32 %v1986, %v2061
        %v2118 = vmul.f32 %v1987, %v2061
        %v2119 = vmul.f32 %v1988, %v2061
        %v2120 = vmul.f32 %v1989, %v2061
        %v2121 = vmul.f32 %v1990, %v2061
        %v2122 = vmul.f32 %v1991, %v2061
        %v2123 = vmul.f32 %v1992, %v2061
        %v2124 = vmul.f32 %v1993, %v2061
        %v2125 = vmul.f32 %v1994, %v2061
        %v2126 = vmul.f32 %v1995, %v2061
        %v2127 = vmul.f32 %v1996, %v2061
        %v2128 = vmul.f32 %v1997, %v2061
        %v2129 = vmul.f32 %v1998, %v2061
        %v2130 = vmul.f32 %v1999, %v2061
        %v2131 = vmul.f32 %v2000, %v2061
        %v2132 = vmul.f32 %v2001, %v2061
        %v2133 = vmul.f32 %v2002, %v2061
        %v2134 = vmul.f32 %v2003, %v2061
        %v2135 = vmul.f32 %v2004, %v2061
        %v2136 = vmul.f32 %v2005, %v2061
        %v2137 = vmul.f32 %v2006, %v2061
        %v2138 = vmul.f32 %v2007, %v2061
        %v2139 = vmul.f32 %v2008, %v2061
        %v2140 = vmul.f32 %v2009, %v2061
        %v2141 = vmul.f32 %v2010, %v2061
        %v2142 = vmul.f32 %v2011, %v2061
        %v2143 = vmul.f32 %v2012, %v2061
        %v2144 = vmul.f32 %v2013, %v2061
        %v2145 = vmul.f32 %v2014, %v2061
        %v2146 = vmul.f32 %v2015, %v2061
        %v2147 = vmul.f32 %v2016, %v2061
        %v2148 = vmul.f32 %v2017, %v2061
        %v2149 = vmul.f32 %v2018, %v2061
        %v2150 = vmul.f32 %v2019, %v2061
        %v2151 = vmul.f32 %v2020, %v2061
        %v2152 = vmul.f32 %v2021, %v2061
        %v2153 = vmul.f32 %v2022, %v2061
        %v2154 = vmul.f32 %v2023, %v2061
        %v2155 = vmul.f32 %v2024, %v2061
        %v2156 = vmul.f32 %v2025, %v2061
        %v2157 = vmul.f32 %v2026, %v2061
        %v2158 = vmul.f32 %v2027, %v2061
        %v2159 = vmul.f32 %v2028, %v2061
        %v2160 = vmul.f32 %v2029, %v2061
        %v2161 = vmul.f32 %v2030, %v2061
        %v2162 = vmul.f32 %v2031, %v2061
        %v2163 = vmul.f32 %v2032, %v2061
        %v2164 = vmul.f32 %v2033, %v2061
        %v2165 = vmul.f32 %v2034, %v2061
        %v2166 = vmul.f32 %v2035, %v2061
        %v2167 = vmul.f32 %v2036, %v2061
        %v2168 = vmul.f32 %v2037, %v2061
        %v2169 = vmul.f32 %v2038, %v2061
        %v2170 = vmul.f32 %v2039, %v2061
        %v2171 = vmul.f32 %v2040, %v2061
        %v2172 = vmul.f32 %v2041, %v2061
        %v2173 = vmul.f32 %v2042, %v2061
        %v2174 = vmul.f32 %v2043, %v2061
        %v2175 = vmul.f32 %v2044, %v2061
        %v2176 = vmul.f32 %v2045, %v2061
        %v2177 = vmul.f32 %v2046, %v2061
        %v2178 = vmul.f32 %v2047, %v2061
        %v2179 = vmul.f32 %v2048, %v2061
        %v2180 = vmul.f32 %v2049, %v2061
        %v2181 = vmul.f32 %v2050, %v2061
        %v2182 = vmul.f32 %v2051, %v2061
        %v2183 = vmul.f32 %v2052, %v2061
        %v2184 = vmul.f32 %v2053, %v2061
        %v2185 = vmul.f32 %v2054, %v2061
        %v2186 = vmul.f32 %v2055, %v2061
        %v2187 = vmul.f32 %v2056, %v2061
        %v2188 = vld [vmem:[#allocation6 + $0x1] sm:$0x1]
        %v2189 = vlaneseq
        %v2190 = vshrl.u32 %v2189, 7
        %v2191 = vsub.s32 0, %v2190
        %v2192 = vrot.slane %v2188, %v2191
        %v2193 = vadd.f32 %v2062, %v2192
        %v2194 = vadd.f32 %v2063, %v2192
        %v2195 = vadd.f32 %v2064, %v2192
        %v2196 = vadd.f32 %v2065, %v2192
        %v2197 = vadd.f32 %v2066, %v2192
        %v2198 = vadd.f32 %v2067, %v2192
        %v2199 = vadd.f32 %v2068, %v2192
        %v2200 = vadd.f32 %v2069, %v2192
        %v2201 = vadd.f32 %v2070, %v2192
        %v2202 = vadd.f32 %v2071, %v2192
        %v2203 = vadd.f32 %v2072, %v2192
        %v2204 = vadd.f32 %v2073, %v2192
        %v2205 = vadd.f32 %v2074, %v2192
        %v2206 = vadd.f32 %v2075, %v2192
        %v2207 = vadd.f32 %v2076, %v2192
        %v2208 = vadd.f32 %v2077, %v2192
        %v2209 = vadd.f32 %v2078, %v2192
        %v2210 = vadd.f32 %v2079, %v2192
        %v2211 = vadd.f32 %v2080, %v2192
        %v2212 = vadd.f32 %v2081, %v2192
        %v2213 = vadd.f32 %v2082, %v2192
        %v2214 = vadd.f32 %v2083, %v2192
        %v2215 = vadd.f32 %v2084, %v2192
        %v2216 = vadd.f32 %v2085, %v2192
        %v2217 = vadd.f32 %v2086, %v2192
        %v2218 = vadd.f32 %v2087, %v2192
        %v2219 = vadd.f32 %v2088, %v2192
        %v2220 = vadd.f32 %v2089, %v2192
        %v2221 = vadd.f32 %v2090, %v2192
        %v2222 = vadd.f32 %v2091, %v2192
        %v2223 = vadd.f32 %v2092, %v2192
        %v2224 = vadd.f32 %v2093, %v2192
        %v2225 = vadd.f32 %v2094, %v2192
        %v2226 = vadd.f32 %v2095, %v2192
        %v2227 = vadd.f32 %v2096, %v2192
        %v2228 = vadd.f32 %v2097, %v2192
        %v2229 = vadd.f32 %v2098, %v2192
        %v2230 = vadd.f32 %v2099, %v2192
        %v2231 = vadd.f32 %v2100, %v2192
        %v2232 = vadd.f32 %v2101, %v2192
        %v2233 = vadd.f32 %v2102, %v2192
        %v2234 = vadd.f32 %v2103, %v2192
        %v2235 = vadd.f32 %v2104, %v2192
        %v2236 = vadd.f32 %v2105, %v2192
        %v2237 = vadd.f32 %v2106, %v2192
        %v2238 = vadd.f32 %v2107, %v2192
        %v2239 = vadd.f32 %v2108, %v2192
        %v2240 = vadd.f32 %v2109, %v2192
        %v2241 = vadd.f32 %v2110, %v2192
        %v2242 = vadd.f32 %v2111, %v2192
        %v2243 = vadd.f32 %v2112, %v2192
        %v2244 = vadd.f32 %v2113, %v2192
        %v2245 = vadd.f32 %v2114, %v2192
        %v2246 = vadd.f32 %v2115, %v2192
        %v2247 = vadd.f32 %v2116, %v2192
        %v2248 = vadd.f32 %v2117, %v2192
        %v2249 = vadd.f32 %v2118, %v2192
        %v2250 = vadd.f32 %v2119, %v2192
        %v2251 = vadd.f32 %v2120, %v2192
        %v2252 = vadd.f32 %v2121, %v2192
        %v2253 = vadd.f32 %v2122, %v2192
        %v2254 = vadd.f32 %v2123, %v2192
        %v2255 = vadd.f32 %v2124, %v2192
        %v2256 = vadd.f32 %v2125, %v2192
        %v2257 = vadd.f32 %v2126, %v2192
        %v2258 = vadd.f32 %v2127, %v2192
        %v2259 = vadd.f32 %v2128, %v2192
        %v2260 = vadd.f32 %v2129, %v2192
        %v2261 = vadd.f32 %v2130, %v2192
        %v2262 = vadd.f32 %v2131, %v2192
        %v2263 = vadd.f32 %v2132, %v2192
        %v2264 = vadd.f32 %v2133, %v2192
        %v2265 = vadd.f32 %v2134, %v2192
        %v2266 = vadd.f32 %v2135, %v2192
        %v2267 = vadd.f32 %v2136, %v2192
        %v2268 = vadd.f32 %v2137, %v2192
        %v2269 = vadd.f32 %v2138, %v2192
        %v2270 = vadd.f32 %v2139, %v2192
        %v2271 = vadd.f32 %v2140, %v2192
        %v2272 = vadd.f32 %v2141, %v2192
        %v2273 = vadd.f32 %v2142, %v2192
        %v2274 = vadd.f32 %v2143, %v2192
        %v2275 = vadd.f32 %v2144, %v2192
        %v2276 = vadd.f32 %v2145, %v2192
        %v2277 = vadd.f32 %v2146, %v2192
        %v2278 = vadd.f32 %v2147, %v2192
        %v2279 = vadd.f32 %v2148, %v2192
        %v2280 = vadd.f32 %v2149, %v2192
        %v2281 = vadd.f32 %v2150, %v2192
        %v2282 = vadd.f32 %v2151, %v2192
        %v2283 = vadd.f32 %v2152, %v2192
        %v2284 = vadd.f32 %v2153, %v2192
        %v2285 = vadd.f32 %v2154, %v2192
        %v2286 = vadd.f32 %v2155, %v2192
        %v2287 = vadd.f32 %v2156, %v2192
        %v2288 = vadd.f32 %v2157, %v2192
        %v2289 = vadd.f32 %v2158, %v2192
        %v2290 = vadd.f32 %v2159, %v2192
        %v2291 = vadd.f32 %v2160, %v2192
        %v2292 = vadd.f32 %v2161, %v2192
        %v2293 = vadd.f32 %v2162, %v2192
        %v2294 = vadd.f32 %v2163, %v2192
        %v2295 = vadd.f32 %v2164, %v2192
        %v2296 = vadd.f32 %v2165, %v2192
        %v2297 = vadd.f32 %v2166, %v2192
        %v2298 = vadd.f32 %v2167, %v2192
        %v2299 = vadd.f32 %v2168, %v2192
        %v2300 = vadd.f32 %v2169, %v2192
        %v2301 = vadd.f32 %v2170, %v2192
        %v2302 = vadd.f32 %v2171, %v2192
        %v2303 = vadd.f32 %v2172, %v2192
        %v2304 = vadd.f32 %v2173, %v2192
        %v2305 = vadd.f32 %v2174, %v2192
        %v2306 = vadd.f32 %v2175, %v2192
        %v2307 = vadd.f32 %v2176, %v2192
        %v2308 = vadd.f32 %v2177, %v2192
        %v2309 = vadd.f32 %v2178, %v2192
        %v2310 = vadd.f32 %v2179, %v2192
        %v2311 = vadd.f32 %v2180, %v2192
        %v2312 = vadd.f32 %v2181, %v2192
        %v2313 = vadd.f32 %v2182, %v2192
        %v2314 = vadd.f32 %v2183, %v2192
        %v2315 = vadd.f32 %v2184, %v2192
        %v2316 = vadd.f32 %v2185, %v2192
        %v2317 = vadd.f32 %v2186, %v2192
        %v2318 = vadd.f32 %v2187, %v2192
        %v2319 = vmax.f32 %v2193, 0.0
        %v2320 = vmax.f32 %v2194, 0.0
        %v2321 = vmax.f32 %v2195, 0.0
        %v2322 = vmax.f32 %v2196, 0.0
        %v2323 = vmax.f32 %v2197, 0.0
        %v2324 = vmax.f32 %v2198, 0.0
        %v2325 = vmax.f32 %v2199, 0.0
        %v2326 = vmax.f32 %v2200, 0.0
        %v2327 = vmax.f32 %v2201, 0.0
        %v2328 = vmax.f32 %v2202, 0.0
        %v2329 = vmax.f32 %v2203, 0.0
        %v2330 = vmax.f32 %v2204, 0.0
        %v2331 = vmax.f32 %v2205, 0.0
        %v2332 = vmax.f32 %v2206, 0.0
        %v2333 = vmax.f32 %v2207, 0.0
        %v2334 = vmax.f32 %v2208, 0.0
        %v2335 = vmax.f32 %v2209, 0.0
        %v2336 = vmax.f32 %v2210, 0.0
        %v2337 = vmax.f32 %v2211, 0.0
        %v2338 = vmax.f32 %v2212, 0.0
        %v2339 = vmax.f32 %v2213, 0.0
        %v2340 = vmax.f32 %v2214, 0.0
        %v2341 = vmax.f32 %v2215, 0.0
        %v2342 = vmax.f32 %v2216, 0.0
        %v2343 = vmax.f32 %v2217, 0.0
        %v2344 = vmax.f32 %v2218, 0.0
        %v2345 = vmax.f32 %v2219, 0.0
        %v2346 = vmax.f32 %v2220, 0.0
        %v2347 = vmax.f32 %v2221, 0.0
        %v2348 = vmax.f32 %v2222, 0.0
        %v2349 = vmax.f32 %v2223, 0.0
        %v2350 = vmax.f32 %v2224, 0.0
        %v2351 = vmax.f32 %v2225, 0.0
        %v2352 = vmax.f32 %v2226, 0.0
        %v2353 = vmax.f32 %v2227, 0.0
        %v2354 = vmax.f32 %v2228, 0.0
        %v2355 = vmax.f32 %v2229, 0.0
        %v2356 = vmax.f32 %v2230, 0.0
        %v2357 = vmax.f32 %v2231, 0.0
        %v2358 = vmax.f32 %v2232, 0.0
        %v2359 = vmax.f32 %v2233, 0.0
        %v2360 = vmax.f32 %v2234, 0.0
        %v2361 = vmax.f32 %v2235, 0.0
        %v2362 = vmax.f32 %v2236, 0.0
        %v2363 = vmax.f32 %v2237, 0.0
        %v2364 = vmax.f32 %v2238, 0.0
        %v2365 = vmax.f32 %v2239, 0.0
        %v2366 = vmax.f32 %v2240, 0.0
        %v2367 = vmax.f32 %v2241, 0.0
        %v2368 = vmax.f32 %v2242, 0.0
        %v2369 = vmax.f32 %v2243, 0.0
        %v2370 = vmax.f32 %v2244, 0.0
        %v2371 = vmax.f32 %v2245, 0.0
        %v2372 = vmax.f32 %v2246, 0.0
        %v2373 = vmax.f32 %v2247, 0.0
        %v2374 = vmax.f32 %v2248, 0.0
        %v2375 = vmax.f32 %v2249, 0.0
        %v2376 = vmax.f32 %v2250, 0.0
        %v2377 = vmax.f32 %v2251, 0.0
        %v2378 = vmax.f32 %v2252, 0.0
        %v2379 = vmax.f32 %v2253, 0.0
        %v2380 = vmax.f32 %v2254, 0.0
        %v2381 = vmax.f32 %v2255, 0.0
        %v2382 = vmax.f32 %v2256, 0.0
        %v2383 = vmax.f32 %v2257, 0.0
        %v2384 = vmax.f32 %v2258, 0.0
        %v2385 = vmax.f32 %v2259, 0.0
        %v2386 = vmax.f32 %v2260, 0.0
        %v2387 = vmax.f32 %v2261, 0.0
        %v2388 = vmax.f32 %v2262, 0.0
        %v2389 = vmax.f32 %v2263, 0.0
        %v2390 = vmax.f32 %v2264, 0.0
        %v2391 = vmax.f32 %v2265, 0.0
        %v2392 = vmax.f32 %v2266, 0.0
        %v2393 = vmax.f32 %v2267, 0.0
        %v2394 = vmax.f32 %v2268, 0.0
        %v2395 = vmax.f32 %v2269, 0.0
        %v2396 = vmax.f32 %v2270, 0.0
        %v2397 = vmax.f32 %v2271, 0.0
        %v2398 = vmax.f32 %v2272, 0.0
        %v2399 = vmax.f32 %v2273, 0.0
        %v2400 = vmax.f32 %v2274, 0.0
        %v2401 = vmax.f32 %v2275, 0.0
        %v2402 = vmax.f32 %v2276, 0.0
        %v2403 = vmax.f32 %v2277, 0.0
        %v2404 = vmax.f32 %v2278, 0.0
        %v2405 = vmax.f32 %v2279, 0.0
        %v2406 = vmax.f32 %v2280, 0.0
        %v2407 = vmax.f32 %v2281, 0.0
        %v2408 = vmax.f32 %v2282, 0.0
        %v2409 = vmax.f32 %v2283, 0.0
        %v2410 = vmax.f32 %v2284, 0.0
        %v2411 = vmax.f32 %v2285, 0.0
        %v2412 = vmax.f32 %v2286, 0.0
        %v2413 = vmax.f32 %v2287, 0.0
        %v2414 = vmax.f32 %v2288, 0.0
        %v2415 = vmax.f32 %v2289, 0.0
        %v2416 = vmax.f32 %v2290, 0.0
        %v2417 = vmax.f32 %v2291, 0.0
        %v2418 = vmax.f32 %v2292, 0.0
        %v2419 = vmax.f32 %v2293, 0.0
        %v2420 = vmax.f32 %v2294, 0.0
        %v2421 = vmax.f32 %v2295, 0.0
        %v2422 = vmax.f32 %v2296, 0.0
        %v2423 = vmax.f32 %v2297, 0.0
        %v2424 = vmax.f32 %v2298, 0.0
        %v2425 = vmax.f32 %v2299, 0.0
        %v2426 = vmax.f32 %v2300, 0.0
        %v2427 = vmax.f32 %v2301, 0.0
        %v2428 = vmax.f32 %v2302, 0.0
        %v2429 = vmax.f32 %v2303, 0.0
        %v2430 = vmax.f32 %v2304, 0.0
        %v2431 = vmax.f32 %v2305, 0.0
        %v2432 = vmax.f32 %v2306, 0.0
        %v2433 = vmax.f32 %v2307, 0.0
        %v2434 = vmax.f32 %v2308, 0.0
        %v2435 = vmax.f32 %v2309, 0.0
        %v2436 = vmax.f32 %v2310, 0.0
        %v2437 = vmax.f32 %v2311, 0.0
        %v2438 = vmax.f32 %v2312, 0.0
        %v2439 = vmax.f32 %v2313, 0.0
        %v2440 = vmax.f32 %v2314, 0.0
        %v2441 = vmax.f32 %v2315, 0.0
        %v2442 = vmax.f32 %v2316, 0.0
        %v2443 = vmax.f32 %v2317, 0.0
        %v2444 = vmax.f32 %v2318, 0.0
        %s2445 = ssub.s32 1001, %s1929
        %v2446 = vlaneseq
        %v2447 = vshrl.u32 %v2446, 7
        %v2448 = vadd.s32 %v2447, 8
        %v2449 = vadd.s32 %v2447, 16
        %v2450 = vadd.s32 %v2447, 24
        %v2451 = vadd.s32 %v2447, 32
        %v2452 = vadd.s32 %v2447, 40
        %v2453 = vadd.s32 %v2447, 48
        %v2454 = vadd.s32 %v2447, 56
        %v2455 = vadd.s32 %v2447, 64
        %v2456 = vadd.s32 %v2447, 72
        %v2457 = vadd.s32 %v2447, 80
        %v2458 = vadd.s32 %v2447, 88
        %v2459 = vadd.s32 %v2447, 96
        %v2460 = vadd.s32 %v2447, 104
        %v2461 = vadd.s32 %v2447, 112
        %v2462 = vadd.s32 %v2447, 120
        %v2463 = vadd.s32 %v2447, 128
        %v2464 = vadd.s32 %v2447, 136
        %v2465 = vadd.s32 %v2447, 144
        %v2466 = vadd.s32 %v2447, 152
        %v2467 = vadd.s32 %v2447, 160
        %v2468 = vadd.s32 %v2447, 168
        %v2469 = vadd.s32 %v2447, 176
        %v2470 = vadd.s32 %v2447, 184
        %v2471 = vadd.s32 %v2447, 192
        %v2472 = vadd.s32 %v2447, 200
        %v2473 = vadd.s32 %v2447, 208
        %v2474 = vadd.s32 %v2447, 216
        %v2475 = vadd.s32 %v2447, 224
        %v2476 = vadd.s32 %v2447, 232
        %v2477 = vadd.s32 %v2447, 240
        %v2478 = vadd.s32 %v2447, 248
        %v2479 = vadd.s32 %v2447, 256
        %v2480 = vadd.s32 %v2447, 264
        %v2481 = vadd.s32 %v2447, 272
        %v2482 = vadd.s32 %v2447, 280
        %v2483 = vadd.s32 %v2447, 288
        %v2484 = vadd.s32 %v2447, 296
        %v2485 = vadd.s32 %v2447, 304
        %v2486 = vadd.s32 %v2447, 312
        %v2487 = vadd.s32 %v2447, 320
        %v2488 = vadd.s32 %v2447, 328
        %v2489 = vadd.s32 %v2447, 336
        %v2490 = vadd.s32 %v2447, 344
        %v2491 = vadd.s32 %v2447, 352
        %v2492 = vadd.s32 %v2447, 360
        %v2493 = vadd.s32 %v2447, 368
        %v2494 = vadd.s32 %v2447, 376
        %v2495 = vadd.s32 %v2447, 384
        %v2496 = vadd.s32 %v2447, 392
        %v2497 = vadd.s32 %v2447, 400
        %v2498 = vadd.s32 %v2447, 408
        %v2499 = vadd.s32 %v2447, 416
        %v2500 = vadd.s32 %v2447, 424
        %v2501 = vadd.s32 %v2447, 432
        %v2502 = vadd.s32 %v2447, 440
        %v2503 = vadd.s32 %v2447, 448
        %v2504 = vadd.s32 %v2447, 456
        %v2505 = vadd.s32 %v2447, 464
        %v2506 = vadd.s32 %v2447, 472
        %v2507 = vadd.s32 %v2447, 480
        %v2508 = vadd.s32 %v2447, 488
        %v2509 = vadd.s32 %v2447, 496
        %v2510 = vadd.s32 %v2447, 504
        %v2511 = vadd.s32 %v2447, 512
        %v2512 = vadd.s32 %v2447, 520
        %v2513 = vadd.s32 %v2447, 528
        %v2514 = vadd.s32 %v2447, 536
        %v2515 = vadd.s32 %v2447, 544
        %v2516 = vadd.s32 %v2447, 552
        %v2517 = vadd.s32 %v2447, 560
        %v2518 = vadd.s32 %v2447, 568
        %v2519 = vadd.s32 %v2447, 576
        %v2520 = vadd.s32 %v2447, 584
        %v2521 = vadd.s32 %v2447, 592
        %v2522 = vadd.s32 %v2447, 600
        %v2523 = vadd.s32 %v2447, 608
        %v2524 = vadd.s32 %v2447, 616
        %v2525 = vadd.s32 %v2447, 624
        %v2526 = vadd.s32 %v2447, 632
        %v2527 = vadd.s32 %v2447, 640
        %v2528 = vadd.s32 %v2447, 648
        %v2529 = vadd.s32 %v2447, 656
        %v2530 = vadd.s32 %v2447, 664
        %v2531 = vadd.s32 %v2447, 672
        %v2532 = vadd.s32 %v2447, 680
        %v2533 = vadd.s32 %v2447, 688
        %v2534 = vadd.s32 %v2447, 696
        %v2535 = vadd.s32 %v2447, 704
        %v2536 = vadd.s32 %v2447, 712
        %v2537 = vadd.s32 %v2447, 720
        %v2538 = vadd.s32 %v2447, 728
        %v2539 = vadd.s32 %v2447, 736
        %v2540 = vadd.s32 %v2447, 744
        %v2541 = vadd.s32 %v2447, 752
        %v2542 = vadd.s32 %v2447, 760
        %v2543 = vadd.s32 %v2447, 768
        %v2544 = vadd.s32 %v2447, 776
        %v2545 = vadd.s32 %v2447, 784
        %v2546 = vadd.s32 %v2447, 792
        %v2547 = vadd.s32 %v2447, 800
        %v2548 = vadd.s32 %v2447, 808
        %v2549 = vadd.s32 %v2447, 816
        %v2550 = vadd.s32 %v2447, 824
        %v2551 = vadd.s32 %v2447, 832
        %v2552 = vadd.s32 %v2447, 840
        %v2553 = vadd.s32 %v2447, 848
        %v2554 = vadd.s32 %v2447, 856
        %v2555 = vadd.s32 %v2447, 864
        %v2556 = vadd.s32 %v2447, 872
        %v2557 = vadd.s32 %v2447, 880
        %v2558 = vadd.s32 %v2447, 888
        %v2559 = vadd.s32 %v2447, 896
        %v2560 = vadd.s32 %v2447, 904
        %v2561 = vadd.s32 %v2447, 912
        %v2562 = vadd.s32 %v2447, 920
        %v2563 = vadd.s32 %v2447, 928
        %v2564 = vadd.s32 %v2447, 936
        %v2565 = vadd.s32 %v2447, 944
        %v2566 = vadd.s32 %v2447, 952
        %v2567 = vadd.s32 %v2447, 960
        %v2568 = vadd.s32 %v2447, 968
        %v2569 = vadd.s32 %v2447, 976
        %v2570 = vadd.s32 %v2447, 984
        %v2571 = vadd.s32 %v2447, 992
        %v2572 = vadd.s32 %v2447, 1000
        %v2573 = vstv %s2445
        %vm2574 = vcmp.lt.s32.totalorder %v2447, %v2573
        %vm2575 = vcmp.lt.s32.totalorder %v2448, %v2573
        %vm2576 = vcmp.lt.s32.totalorder %v2449, %v2573
        %vm2577 = vcmp.lt.s32.totalorder %v2450, %v2573
        %vm2578 = vcmp.lt.s32.totalorder %v2451, %v2573
        %vm2579 = vcmp.lt.s32.totalorder %v2452, %v2573
        %vm2580 = vcmp.lt.s32.totalorder %v2453, %v2573
        %vm2581 = vcmp.lt.s32.totalorder %v2454, %v2573
        %vm2582 = vcmp.lt.s32.totalorder %v2455, %v2573
        %vm2583 = vcmp.lt.s32.totalorder %v2456, %v2573
        %vm2584 = vcmp.lt.s32.totalorder %v2457, %v2573
        %vm2585 = vcmp.lt.s32.totalorder %v2458, %v2573
        %vm2586 = vcmp.lt.s32.totalorder %v2459, %v2573
        %vm2587 = vcmp.lt.s32.totalorder %v2460, %v2573
        %vm2588 = vcmp.lt.s32.totalorder %v2461, %v2573
        %vm2589 = vcmp.lt.s32.totalorder %v2462, %v2573
        %vm2590 = vcmp.lt.s32.totalorder %v2463, %v2573
        %vm2591 = vcmp.lt.s32.totalorder %v2464, %v2573
        %vm2592 = vcmp.lt.s32.totalorder %v2465, %v2573
        %vm2593 = vcmp.lt.s32.totalorder %v2466, %v2573
        %vm2594 = vcmp.lt.s32.totalorder %v2467, %v2573
        %vm2595 = vcmp.lt.s32.totalorder %v2468, %v2573
        %vm2596 = vcmp.lt.s32.totalorder %v2469, %v2573
        %vm2597 = vcmp.lt.s32.totalorder %v2470, %v2573
        %vm2598 = vcmp.lt.s32.totalorder %v2471, %v2573
        %vm2599 = vcmp.lt.s32.totalorder %v2472, %v2573
        %vm2600 = vcmp.lt.s32.totalorder %v2473, %v2573
        %vm2601 = vcmp.lt.s32.totalorder %v2474, %v2573
        %vm2602 = vcmp.lt.s32.totalorder %v2475, %v2573
        %vm2603 = vcmp.lt.s32.totalorder %v2476, %v2573
        %vm2604 = vcmp.lt.s32.totalorder %v2477, %v2573
        %vm2605 = vcmp.lt.s32.totalorder %v2478, %v2573
        %vm2606 = vcmp.lt.s32.totalorder %v2479, %v2573
        %vm2607 = vcmp.lt.s32.totalorder %v2480, %v2573
        %vm2608 = vcmp.lt.s32.totalorder %v2481, %v2573
        %vm2609 = vcmp.lt.s32.totalorder %v2482, %v2573
        %vm2610 = vcmp.lt.s32.totalorder %v2483, %v2573
        %vm2611 = vcmp.lt.s32.totalorder %v2484, %v2573
        %vm2612 = vcmp.lt.s32.totalorder %v2485, %v2573
        %vm2613 = vcmp.lt.s32.totalorder %v2486, %v2573
        %vm2614 = vcmp.lt.s32.totalorder %v2487, %v2573
        %vm2615 = vcmp.lt.s32.totalorder %v2488, %v2573
        %vm2616 = vcmp.lt.s32.totalorder %v2489, %v2573
        %vm2617 = vcmp.lt.s32.totalorder %v2490, %v2573
        %vm2618 = vcmp.lt.s32.totalorder %v2491, %v2573
        %vm2619 = vcmp.lt.s32.totalorder %v2492, %v2573
        %vm2620 = vcmp.lt.s32.totalorder %v2493, %v2573
        %vm2621 = vcmp.lt.s32.totalorder %v2494, %v2573
        %vm2622 = vcmp.lt.s32.totalorder %v2495, %v2573
        %vm2623 = vcmp.lt.s32.totalorder %v2496, %v2573
        %vm2624 = vcmp.lt.s32.totalorder %v2497, %v2573
        %vm2625 = vcmp.lt.s32.totalorder %v2498, %v2573
        %vm2626 = vcmp.lt.s32.totalorder %v2499, %v2573
        %vm2627 = vcmp.lt.s32.totalorder %v2500, %v2573
        %vm2628 = vcmp.lt.s32.totalorder %v2501, %v2573
        %vm2629 = vcmp.lt.s32.totalorder %v2502, %v2573
        %vm2630 = vcmp.lt.s32.totalorder %v2503, %v2573
        %vm2631 = vcmp.lt.s32.totalorder %v2504, %v2573
        %vm2632 = vcmp.lt.s32.totalorder %v2505, %v2573
        %vm2633 = vcmp.lt.s32.totalorder %v2506, %v2573
        %vm2634 = vcmp.lt.s32.totalorder %v2507, %v2573
        %vm2635 = vcmp.lt.s32.totalorder %v2508, %v2573
        %vm2636 = vcmp.lt.s32.totalorder %v2509, %v2573
        %vm2637 = vcmp.lt.s32.totalorder %v2510, %v2573
        %vm2638 = vcmp.lt.s32.totalorder %v2511, %v2573
        %vm2639 = vcmp.lt.s32.totalorder %v2512, %v2573
        %vm2640 = vcmp.lt.s32.totalorder %v2513, %v2573
        %vm2641 = vcmp.lt.s32.totalorder %v2514, %v2573
        %vm2642 = vcmp.lt.s32.totalorder %v2515, %v2573
        %vm2643 = vcmp.lt.s32.totalorder %v2516, %v2573
        %vm2644 = vcmp.lt.s32.totalorder %v2517, %v2573
        %vm2645 = vcmp.lt.s32.totalorder %v2518, %v2573
        %vm2646 = vcmp.lt.s32.totalorder %v2519, %v2573
        %vm2647 = vcmp.lt.s32.totalorder %v2520, %v2573
        %vm2648 = vcmp.lt.s32.totalorder %v2521, %v2573
        %vm2649 = vcmp.lt.s32.totalorder %v2522, %v2573
        %vm2650 = vcmp.lt.s32.totalorder %v2523, %v2573
        %vm2651 = vcmp.lt.s32.totalorder %v2524, %v2573
        %vm2652 = vcmp.lt.s32.totalorder %v2525, %v2573
        %vm2653 = vcmp.lt.s32.totalorder %v2526, %v2573
        %vm2654 = vcmp.lt.s32.totalorder %v2527, %v2573
        %vm2655 = vcmp.lt.s32.totalorder %v2528, %v2573
        %vm2656 = vcmp.lt.s32.totalorder %v2529, %v2573
        %vm2657 = vcmp.lt.s32.totalorder %v2530, %v2573
        %vm2658 = vcmp.lt.s32.totalorder %v2531, %v2573
        %vm2659 = vcmp.lt.s32.totalorder %v2532, %v2573
        %vm2660 = vcmp.lt.s32.totalorder %v2533, %v2573
        %vm2661 = vcmp.lt.s32.totalorder %v2534, %v2573
        %vm2662 = vcmp.lt.s32.totalorder %v2535, %v2573
        %vm2663 = vcmp.lt.s32.totalorder %v2536, %v2573
        %vm2664 = vcmp.lt.s32.totalorder %v2537, %v2573
        %vm2665 = vcmp.lt.s32.totalorder %v2538, %v2573
        %vm2666 = vcmp.lt.s32.totalorder %v2539, %v2573
        %vm2667 = vcmp.lt.s32.totalorder %v2540, %v2573
        %vm2668 = vcmp.lt.s32.totalorder %v2541, %v2573
        %vm2669 = vcmp.lt.s32.totalorder %v2542, %v2573
        %vm2670 = vcmp.lt.s32.totalorder %v2543, %v2573
        %vm2671 = vcmp.lt.s32.totalorder %v2544, %v2573
        %vm2672 = vcmp.lt.s32.totalorder %v2545, %v2573
        %vm2673 = vcmp.lt.s32.totalorder %v2546, %v2573
        %vm2674 = vcmp.lt.s32.totalorder %v2547, %v2573
        %vm2675 = vcmp.lt.s32.totalorder %v2548, %v2573
        %vm2676 = vcmp.lt.s32.totalorder %v2549, %v2573
        %vm2677 = vcmp.lt.s32.totalorder %v2550, %v2573
        %vm2678 = vcmp.lt.s32.totalorder %v2551, %v2573
        %vm2679 = vcmp.lt.s32.totalorder %v2552, %v2573
        %vm2680 = vcmp.lt.s32.totalorder %v2553, %v2573
        %vm2681 = vcmp.lt.s32.totalorder %v2554, %v2573
        %vm2682 = vcmp.lt.s32.totalorder %v2555, %v2573
        %vm2683 = vcmp.lt.s32.totalorder %v2556, %v2573
        %vm2684 = vcmp.lt.s32.totalorder %v2557, %v2573
        %vm2685 = vcmp.lt.s32.totalorder %v2558, %v2573
        %vm2686 = vcmp.lt.s32.totalorder %v2559, %v2573
        %vm2687 = vcmp.lt.s32.totalorder %v2560, %v2573
        %vm2688 = vcmp.lt.s32.totalorder %v2561, %v2573
        %vm2689 = vcmp.lt.s32.totalorder %v2562, %v2573
        %vm2690 = vcmp.lt.s32.totalorder %v2563, %v2573
        %vm2691 = vcmp.lt.s32.totalorder %v2564, %v2573
        %vm2692 = vcmp.lt.s32.totalorder %v2565, %v2573
        %vm2693 = vcmp.lt.s32.totalorder %v2566, %v2573
        %vm2694 = vcmp.lt.s32.totalorder %v2567, %v2573
        %vm2695 = vcmp.lt.s32.totalorder %v2568, %v2573
        %vm2696 = vcmp.lt.s32.totalorder %v2569, %v2573
        %vm2697 = vcmp.lt.s32.totalorder %v2570, %v2573
        %vm2698 = vcmp.lt.s32.totalorder %v2571, %v2573
        %vm2699 = vcmp.lt.s32.totalorder %v2572, %v2573
        %v2700 = vsel %vm2574, 1, 0
        %v2701 = vsel %vm2575, 1, 0
        %v2702 = vsel %vm2576, 1, 0
        %v2703 = vsel %vm2577, 1, 0
        %v2704 = vsel %vm2578, 1, 0
        %v2705 = vsel %vm2579, 1, 0
        %v2706 = vsel %vm2580, 1, 0
        %v2707 = vsel %vm2581, 1, 0
        %v2708 = vsel %vm2582, 1, 0
        %v2709 = vsel %vm2583, 1, 0
        %v2710 = vsel %vm2584, 1, 0
        %v2711 = vsel %vm2585, 1, 0
        %v2712 = vsel %vm2586, 1, 0
        %v2713 = vsel %vm2587, 1, 0
        %v2714 = vsel %vm2588, 1, 0
        %v2715 = vsel %vm2589, 1, 0
        %v2716 = vsel %vm2590, 1, 0
        %v2717 = vsel %vm2591, 1, 0
        %v2718 = vsel %vm2592, 1, 0
        %v2719 = vsel %vm2593, 1, 0
        %v2720 = vsel %vm2594, 1, 0
        %v2721 = vsel %vm2595, 1, 0
        %v2722 = vsel %vm2596, 1, 0
        %v2723 = vsel %vm2597, 1, 0
        %v2724 = vsel %vm2598, 1, 0
        %v2725 = vsel %vm2599, 1, 0
        %v2726 = vsel %vm2600, 1, 0
        %v2727 = vsel %vm2601, 1, 0
        %v2728 = vsel %vm2602, 1, 0
        %v2729 = vsel %vm2603, 1, 0
        %v2730 = vsel %vm2604, 1, 0
        %v2731 = vsel %vm2605, 1, 0
        %v2732 = vsel %vm2606, 1, 0
        %v2733 = vsel %vm2607, 1, 0
        %v2734 = vsel %vm2608, 1, 0
        %v2735 = vsel %vm2609, 1, 0
        %v2736 = vsel %vm2610, 1, 0
        %v2737 = vsel %vm2611, 1, 0
        %v2738 = vsel %vm2612, 1, 0
        %v2739 = vsel %vm2613, 1, 0
        %v2740 = vsel %vm2614, 1, 0
        %v2741 = vsel %vm2615, 1, 0
        %v2742 = vsel %vm2616, 1, 0
        %v2743 = vsel %vm2617, 1, 0
        %v2744 = vsel %vm2618, 1, 0
        %v2745 = vsel %vm2619, 1, 0
        %v2746 = vsel %vm2620, 1, 0
        %v2747 = vsel %vm2621, 1, 0
        %v2748 = vsel %vm2622, 1, 0
        %v2749 = vsel %vm2623, 1, 0
        %v2750 = vsel %vm2624, 1, 0
        %v2751 = vsel %vm2625, 1, 0
        %v2752 = vsel %vm2626, 1, 0
        %v2753 = vsel %vm2627, 1, 0
        %v2754 = vsel %vm2628, 1, 0
        %v2755 = vsel %vm2629, 1, 0
        %v2756 = vsel %vm2630, 1, 0
        %v2757 = vsel %vm2631, 1, 0
        %v2758 = vsel %vm2632, 1, 0
        %v2759 = vsel %vm2633, 1, 0
        %v2760 = vsel %vm2634, 1, 0
        %v2761 = vsel %vm2635, 1, 0
        %v2762 = vsel %vm2636, 1, 0
        %v2763 = vsel %vm2637, 1, 0
        %v2764 = vsel %vm2638, 1, 0
        %v2765 = vsel %vm2639, 1, 0
        %v2766 = vsel %vm2640, 1, 0
        %v2767 = vsel %vm2641, 1, 0
        %v2768 = vsel %vm2642, 1, 0
        %v2769 = vsel %vm2643, 1, 0
        %v2770 = vsel %vm2644, 1, 0
        %v2771 = vsel %vm2645, 1, 0
        %v2772 = vsel %vm2646, 1, 0
        %v2773 = vsel %vm2647, 1, 0
        %v2774 = vsel %vm2648, 1, 0
        %v2775 = vsel %vm2649, 1, 0
        %v2776 = vsel %vm2650, 1, 0
        %v2777 = vsel %vm2651, 1, 0
        %v2778 = vsel %vm2652, 1, 0
        %v2779 = vsel %vm2653, 1, 0
        %v2780 = vsel %vm2654, 1, 0
        %v2781 = vsel %vm2655, 1, 0
        %v2782 = vsel %vm2656, 1, 0
        %v2783 = vsel %vm2657, 1, 0
        %v2784 = vsel %vm2658, 1, 0
        %v2785 = vsel %vm2659, 1, 0
        %v2786 = vsel %vm2660, 1, 0
        %v2787 = vsel %vm2661, 1, 0
        %v2788 = vsel %vm2662, 1, 0
        %v2789 = vsel %vm2663, 1, 0
        %v2790 = vsel %vm2664, 1, 0
        %v2791 = vsel %vm2665, 1, 0
        %v2792 = vsel %vm2666, 1, 0
        %v2793 = vsel %vm2667, 1, 0
        %v2794 = vsel %vm2668, 1, 0
        %v2795 = vsel %vm2669, 1, 0
        %v2796 = vsel %vm2670, 1, 0
        %v2797 = vsel %vm2671, 1, 0
        %v2798 = vsel %vm2672, 1, 0
        %v2799 = vsel %vm2673, 1, 0
        %v2800 = vsel %vm2674, 1, 0
        %v2801 = vsel %vm2675, 1, 0
        %v2802 = vsel %vm2676, 1, 0
        %v2803 = vsel %vm2677, 1, 0
        %v2804 = vsel %vm2678, 1, 0
        %v2805 = vsel %vm2679, 1, 0
        %v2806 = vsel %vm2680, 1, 0
        %v2807 = vsel %vm2681, 1, 0
        %v2808 = vsel %vm2682, 1, 0
        %v2809 = vsel %vm2683, 1, 0
        %v2810 = vsel %vm2684, 1, 0
        %v2811 = vsel %vm2685, 1, 0
        %v2812 = vsel %vm2686, 1, 0
        %v2813 = vsel %vm2687, 1, 0
        %v2814 = vsel %vm2688, 1, 0
        %v2815 = vsel %vm2689, 1, 0
        %v2816 = vsel %vm2690, 1, 0
        %v2817 = vsel %vm2691, 1, 0
        %v2818 = vsel %vm2692, 1, 0
        %v2819 = vsel %vm2693, 1, 0
        %v2820 = vsel %vm2694, 1, 0
        %v2821 = vsel %vm2695, 1, 0
        %v2822 = vsel %vm2696, 1, 0
        %v2823 = vsel %vm2697, 1, 0
        %v2824 = vsel %vm2698, 1, 0
        %v2825 = vsel %vm2699, 1, 0
        %vm2826 = vcmp.eq.s32.totalorder %v2700, 1
        %vm2827 = vcmp.eq.s32.totalorder %v2701, 1
        %vm2828 = vcmp.eq.s32.totalorder %v2702, 1
        %vm2829 = vcmp.eq.s32.totalorder %v2703, 1
        %vm2830 = vcmp.eq.s32.totalorder %v2704, 1
        %vm2831 = vcmp.eq.s32.totalorder %v2705, 1
        %vm2832 = vcmp.eq.s32.totalorder %v2706, 1
        %vm2833 = vcmp.eq.s32.totalorder %v2707, 1
        %vm2834 = vcmp.eq.s32.totalorder %v2708, 1
        %vm2835 = vcmp.eq.s32.totalorder %v2709, 1
        %vm2836 = vcmp.eq.s32.totalorder %v2710, 1
        %vm2837 = vcmp.eq.s32.totalorder %v2711, 1
        %vm2838 = vcmp.eq.s32.totalorder %v2712, 1
        %vm2839 = vcmp.eq.s32.totalorder %v2713, 1
        %vm2840 = vcmp.eq.s32.totalorder %v2714, 1
        %vm2841 = vcmp.eq.s32.totalorder %v2715, 1
        %vm2842 = vcmp.eq.s32.totalorder %v2716, 1
        %vm2843 = vcmp.eq.s32.totalorder %v2717, 1
        %vm2844 = vcmp.eq.s32.totalorder %v2718, 1
        %vm2845 = vcmp.eq.s32.totalorder %v2719, 1
        %vm2846 = vcmp.eq.s32.totalorder %v2720, 1
        %vm2847 = vcmp.eq.s32.totalorder %v2721, 1
        %vm2848 = vcmp.eq.s32.totalorder %v2722, 1
        %vm2849 = vcmp.eq.s32.totalorder %v2723, 1
        %vm2850 = vcmp.eq.s32.totalorder %v2724, 1
        %vm2851 = vcmp.eq.s32.totalorder %v2725, 1
        %vm2852 = vcmp.eq.s32.totalorder %v2726, 1
        %vm2853 = vcmp.eq.s32.totalorder %v2727, 1
        %vm2854 = vcmp.eq.s32.totalorder %v2728, 1
        %vm2855 = vcmp.eq.s32.totalorder %v2729, 1
        %vm2856 = vcmp.eq.s32.totalorder %v2730, 1
        %vm2857 = vcmp.eq.s32.totalorder %v2731, 1
        %vm2858 = vcmp.eq.s32.totalorder %v2732, 1
        %vm2859 = vcmp.eq.s32.totalorder %v2733, 1
        %vm2860 = vcmp.eq.s32.totalorder %v2734, 1
        %vm2861 = vcmp.eq.s32.totalorder %v2735, 1
        %vm2862 = vcmp.eq.s32.totalorder %v2736, 1
        %vm2863 = vcmp.eq.s32.totalorder %v2737, 1
        %vm2864 = vcmp.eq.s32.totalorder %v2738, 1
        %vm2865 = vcmp.eq.s32.totalorder %v2739, 1
        %vm2866 = vcmp.eq.s32.totalorder %v2740, 1
        %vm2867 = vcmp.eq.s32.totalorder %v2741, 1
        %vm2868 = vcmp.eq.s32.totalorder %v2742, 1
        %vm2869 = vcmp.eq.s32.totalorder %v2743, 1
        %vm2870 = vcmp.eq.s32.totalorder %v2744, 1
        %vm2871 = vcmp.eq.s32.totalorder %v2745, 1
        %vm2872 = vcmp.eq.s32.totalorder %v2746, 1
        %vm2873 = vcmp.eq.s32.totalorder %v2747, 1
        %vm2874 = vcmp.eq.s32.totalorder %v2748, 1
        %vm2875 = vcmp.eq.s32.totalorder %v2749, 1
        %vm2876 = vcmp.eq.s32.totalorder %v2750, 1
        %vm2877 = vcmp.eq.s32.totalorder %v2751, 1
        %vm2878 = vcmp.eq.s32.totalorder %v2752, 1
        %vm2879 = vcmp.eq.s32.totalorder %v2753, 1
        %vm2880 = vcmp.eq.s32.totalorder %v2754, 1
        %vm2881 = vcmp.eq.s32.totalorder %v2755, 1
        %vm2882 = vcmp.eq.s32.totalorder %v2756, 1
        %vm2883 = vcmp.eq.s32.totalorder %v2757, 1
        %vm2884 = vcmp.eq.s32.totalorder %v2758, 1
        %vm2885 = vcmp.eq.s32.totalorder %v2759, 1
        %vm2886 = vcmp.eq.s32.totalorder %v2760, 1
        %vm2887 = vcmp.eq.s32.totalorder %v2761, 1
        %vm2888 = vcmp.eq.s32.totalorder %v2762, 1
        %vm2889 = vcmp.eq.s32.totalorder %v2763, 1
        %vm2890 = vcmp.eq.s32.totalorder %v2764, 1
        %vm2891 = vcmp.eq.s32.totalorder %v2765, 1
        %vm2892 = vcmp.eq.s32.totalorder %v2766, 1
        %vm2893 = vcmp.eq.s32.totalorder %v2767, 1
        %vm2894 = vcmp.eq.s32.totalorder %v2768, 1
        %vm2895 = vcmp.eq.s32.totalorder %v2769, 1
        %vm2896 = vcmp.eq.s32.totalorder %v2770, 1
        %vm2897 = vcmp.eq.s32.totalorder %v2771, 1
        %vm2898 = vcmp.eq.s32.totalorder %v2772, 1
        %vm2899 = vcmp.eq.s32.totalorder %v2773, 1
        %vm2900 = vcmp.eq.s32.totalorder %v2774, 1
        %vm2901 = vcmp.eq.s32.totalorder %v2775, 1
        %vm2902 = vcmp.eq.s32.totalorder %v2776, 1
        %vm2903 = vcmp.eq.s32.totalorder %v2777, 1
        %vm2904 = vcmp.eq.s32.totalorder %v2778, 1
        %vm2905 = vcmp.eq.s32.totalorder %v2779, 1
        %vm2906 = vcmp.eq.s32.totalorder %v2780, 1
        %vm2907 = vcmp.eq.s32.totalorder %v2781, 1
        %vm2908 = vcmp.eq.s32.totalorder %v2782, 1
        %vm2909 = vcmp.eq.s32.totalorder %v2783, 1
        %vm2910 = vcmp.eq.s32.totalorder %v2784, 1
        %vm2911 = vcmp.eq.s32.totalorder %v2785, 1
        %vm2912 = vcmp.eq.s32.totalorder %v2786, 1
        %vm2913 = vcmp.eq.s32.totalorder %v2787, 1
        %vm2914 = vcmp.eq.s32.totalorder %v2788, 1
        %vm2915 = vcmp.eq.s32.totalorder %v2789, 1
        %vm2916 = vcmp.eq.s32.totalorder %v2790, 1
        %vm2917 = vcmp.eq.s32.totalorder %v2791, 1
        %vm2918 = vcmp.eq.s32.totalorder %v2792, 1
        %vm2919 = vcmp.eq.s32.totalorder %v2793, 1
        %vm2920 = vcmp.eq.s32.totalorder %v2794, 1
        %vm2921 = vcmp.eq.s32.totalorder %v2795, 1
        %vm2922 = vcmp.eq.s32.totalorder %v2796, 1
        %vm2923 = vcmp.eq.s32.totalorder %v2797, 1
        %vm2924 = vcmp.eq.s32.totalorder %v2798, 1
        %vm2925 = vcmp.eq.s32.totalorder %v2799, 1
        %vm2926 = vcmp.eq.s32.totalorder %v2800, 1
        %vm2927 = vcmp.eq.s32.totalorder %v2801, 1
        %vm2928 = vcmp.eq.s32.totalorder %v2802, 1
        %vm2929 = vcmp.eq.s32.totalorder %v2803, 1
        %vm2930 = vcmp.eq.s32.totalorder %v2804, 1
        %vm2931 = vcmp.eq.s32.totalorder %v2805, 1
        %vm2932 = vcmp.eq.s32.totalorder %v2806, 1
        %vm2933 = vcmp.eq.s32.totalorder %v2807, 1
        %vm2934 = vcmp.eq.s32.totalorder %v2808, 1
        %vm2935 = vcmp.eq.s32.totalorder %v2809, 1
        %vm2936 = vcmp.eq.s32.totalorder %v2810, 1
        %vm2937 = vcmp.eq.s32.totalorder %v2811, 1
        %vm2938 = vcmp.eq.s32.totalorder %v2812, 1
        %vm2939 = vcmp.eq.s32.totalorder %v2813, 1
        %vm2940 = vcmp.eq.s32.totalorder %v2814, 1
        %vm2941 = vcmp.eq.s32.totalorder %v2815, 1
        %vm2942 = vcmp.eq.s32.totalorder %v2816, 1
        %vm2943 = vcmp.eq.s32.totalorder %v2817, 1
        %vm2944 = vcmp.eq.s32.totalorder %v2818, 1
        %vm2945 = vcmp.eq.s32.totalorder %v2819, 1
        %vm2946 = vcmp.eq.s32.totalorder %v2820, 1
        %vm2947 = vcmp.eq.s32.totalorder %v2821, 1
        %vm2948 = vcmp.eq.s32.totalorder %v2822, 1
        %vm2949 = vcmp.eq.s32.totalorder %v2823, 1
        %vm2950 = vcmp.eq.s32.totalorder %v2824, 1
        %vm2951 = vcmp.eq.s32.totalorder %v2825, 1
        %v2952 = vsel %vm2826, %v2319, 0.0
        %v2953 = vsel %vm2827, %v2320, 0.0
        %v2954 = vsel %vm2828, %v2321, 0.0
        %v2955 = vsel %vm2829, %v2322, 0.0
        %v2956 = vsel %vm2830, %v2323, 0.0
        %v2957 = vsel %vm2831, %v2324, 0.0
        %v2958 = vsel %vm2832, %v2325, 0.0
        %v2959 = vsel %vm2833, %v2326, 0.0
        %v2960 = vsel %vm2834, %v2327, 0.0
        %v2961 = vsel %vm2835, %v2328, 0.0
        %v2962 = vsel %vm2836, %v2329, 0.0
        %v2963 = vsel %vm2837, %v2330, 0.0
        %v2964 = vsel %vm2838, %v2331, 0.0
        %v2965 = vsel %vm2839, %v2332, 0.0
        %v2966 = vsel %vm2840, %v2333, 0.0
        %v2967 = vsel %vm2841, %v2334, 0.0
        %v2968 = vsel %vm2842, %v2335, 0.0
        %v2969 = vsel %vm2843, %v2336, 0.0
        %v2970 = vsel %vm2844, %v2337, 0.0
        %v2971 = vsel %vm2845, %v2338, 0.0
        %v2972 = vsel %vm2846, %v2339, 0.0
        %v2973 = vsel %vm2847, %v2340, 0.0
        %v2974 = vsel %vm2848, %v2341, 0.0
        %v2975 = vsel %vm2849, %v2342, 0.0
        %v2976 = vsel %vm2850, %v2343, 0.0
        %v2977 = vsel %vm2851, %v2344, 0.0
        %v2978 = vsel %vm2852, %v2345, 0.0
        %v2979 = vsel %vm2853, %v2346, 0.0
        %v2980 = vsel %vm2854, %v2347, 0.0
        %v2981 = vsel %vm2855, %v2348, 0.0
        %v2982 = vsel %vm2856, %v2349, 0.0
        %v2983 = vsel %vm2857, %v2350, 0.0
        %v2984 = vsel %vm2858, %v2351, 0.0
        %v2985 = vsel %vm2859, %v2352, 0.0
        %v2986 = vsel %vm2860, %v2353, 0.0
        %v2987 = vsel %vm2861, %v2354, 0.0
        %v2988 = vsel %vm2862, %v2355, 0.0
        %v2989 = vsel %vm2863, %v2356, 0.0
        %v2990 = vsel %vm2864, %v2357, 0.0
        %v2991 = vsel %vm2865, %v2358, 0.0
        %v2992 = vsel %vm2866, %v2359, 0.0
        %v2993 = vsel %vm2867, %v2360, 0.0
        %v2994 = vsel %vm2868, %v2361, 0.0
        %v2995 = vsel %vm2869, %v2362, 0.0
        %v2996 = vsel %vm2870, %v2363, 0.0
        %v2997 = vsel %vm2871, %v2364, 0.0
        %v2998 = vsel %vm2872, %v2365, 0.0
        %v2999 = vsel %vm2873, %v2366, 0.0
        %v3000 = vsel %vm2874, %v2367, 0.0
        %v3001 = vsel %vm2875, %v2368, 0.0
        %v3002 = vsel %vm2876, %v2369, 0.0
        %v3003 = vsel %vm2877, %v2370, 0.0
        %v3004 = vsel %vm2878, %v2371, 0.0
        %v3005 = vsel %vm2879, %v2372, 0.0
        %v3006 = vsel %vm2880, %v2373, 0.0
        %v3007 = vsel %vm2881, %v2374, 0.0
        %v3008 = vsel %vm2882, %v2375, 0.0
        %v3009 = vsel %vm2883, %v2376, 0.0
        %v3010 = vsel %vm2884, %v2377, 0.0
        %v3011 = vsel %vm2885, %v2378, 0.0
        %v3012 = vsel %vm2886, %v2379, 0.0
        %v3013 = vsel %vm2887, %v2380, 0.0
        %v3014 = vsel %vm2888, %v2381, 0.0
        %v3015 = vsel %vm2889, %v2382, 0.0
        %v3016 = vsel %vm2890, %v2383, 0.0
        %v3017 = vsel %vm2891, %v2384, 0.0
        %v3018 = vsel %vm2892, %v2385, 0.0
        %v3019 = vsel %vm2893, %v2386, 0.0
        %v3020 = vsel %vm2894, %v2387, 0.0
        %v3021 = vsel %vm2895, %v2388, 0.0
        %v3022 = vsel %vm2896, %v2389, 0.0
        %v3023 = vsel %vm2897, %v2390, 0.0
        %v3024 = vsel %vm2898, %v2391, 0.0
        %v3025 = vsel %vm2899, %v2392, 0.0
        %v3026 = vsel %vm2900, %v2393, 0.0
        %v3027 = vsel %vm2901, %v2394, 0.0
        %v3028 = vsel %vm2902, %v2395, 0.0
        %v3029 = vsel %vm2903, %v2396, 0.0
        %v3030 = vsel %vm2904, %v2397, 0.0
        %v3031 = vsel %vm2905, %v2398, 0.0
        %v3032 = vsel %vm2906, %v2399, 0.0
        %v3033 = vsel %vm2907, %v2400, 0.0
        %v3034 = vsel %vm2908, %v2401, 0.0
        %v3035 = vsel %vm2909, %v2402, 0.0
        %v3036 = vsel %vm2910, %v2403, 0.0
        %v3037 = vsel %vm2911, %v2404, 0.0
        %v3038 = vsel %vm2912, %v2405, 0.0
        %v3039 = vsel %vm2913, %v2406, 0.0
        %v3040 = vsel %vm2914, %v2407, 0.0
        %v3041 = vsel %vm2915, %v2408, 0.0
        %v3042 = vsel %vm2916, %v2409, 0.0
        %v3043 = vsel %vm2917, %v2410, 0.0
        %v3044 = vsel %vm2918, %v2411, 0.0
        %v3045 = vsel %vm2919, %v2412, 0.0
        %v3046 = vsel %vm2920, %v2413, 0.0
        %v3047 = vsel %vm2921, %v2414, 0.0
        %v3048 = vsel %vm2922, %v2415, 0.0
        %v3049 = vsel %vm2923, %v2416, 0.0
        %v3050 = vsel %vm2924, %v2417, 0.0
        %v3051 = vsel %vm2925, %v2418, 0.0
        %v3052 = vsel %vm2926, %v2419, 0.0
        %v3053 = vsel %vm2927, %v2420, 0.0
        %v3054 = vsel %vm2928, %v2421, 0.0
        %v3055 = vsel %vm2929, %v2422, 0.0
        %v3056 = vsel %vm2930, %v2423, 0.0
        %v3057 = vsel %vm2931, %v2424, 0.0
        %v3058 = vsel %vm2932, %v2425, 0.0
        %v3059 = vsel %vm2933, %v2426, 0.0
        %v3060 = vsel %vm2934, %v2427, 0.0
        %v3061 = vsel %vm2935, %v2428, 0.0
        %v3062 = vsel %vm2936, %v2429, 0.0
        %v3063 = vsel %vm2937, %v2430, 0.0
        %v3064 = vsel %vm2938, %v2431, 0.0
        %v3065 = vsel %vm2939, %v2432, 0.0
        %v3066 = vsel %vm2940, %v2433, 0.0
        %v3067 = vsel %vm2941, %v2434, 0.0
        %v3068 = vsel %vm2942, %v2435, 0.0
        %v3069 = vsel %vm2943, %v2436, 0.0
        %v3070 = vsel %vm2944, %v2437, 0.0
        %v3071 = vsel %vm2945, %v2438, 0.0
        %v3072 = vsel %vm2946, %v2439, 0.0
        %v3073 = vsel %vm2947, %v2440, 0.0
        %v3074 = vsel %vm2948, %v2441, 0.0
        %v3075 = vsel %vm2949, %v2442, 0.0
        %v3076 = vsel %vm2950, %v2443, 0.0
        %v3077 = vsel %vm2951, %v2444, 0.0
        %v3078 = vpack.c.bf16 %v2953, %v2952
        %v3079 = vpack.c.bf16 %v2955, %v2954
        %v3080 = vpack.c.bf16 %v2957, %v2956
        %v3081 = vpack.c.bf16 %v2959, %v2958
        %v3082 = vpack.c.bf16 %v2961, %v2960
        %v3083 = vpack.c.bf16 %v2963, %v2962
        %v3084 = vpack.c.bf16 %v2965, %v2964
        %v3085 = vpack.c.bf16 %v2967, %v2966
        %v3086 = vpack.c.bf16 %v2969, %v2968
        %v3087 = vpack.c.bf16 %v2971, %v2970
        %v3088 = vpack.c.bf16 %v2973, %v2972
        %v3089 = vpack.c.bf16 %v2975, %v2974
        %v3090 = vpack.c.bf16 %v2977, %v2976
        %v3091 = vpack.c.bf16 %v2979, %v2978
        %v3092 = vpack.c.bf16 %v2981, %v2980
        %v3093 = vpack.c.bf16 %v2983, %v2982
        %v3094 = vpack.c.bf16 %v2985, %v2984
        %v3095 = vpack.c.bf16 %v2987, %v2986
        %v3096 = vpack.c.bf16 %v2989, %v2988
        %v3097 = vpack.c.bf16 %v2991, %v2990
        %v3098 = vpack.c.bf16 %v2993, %v2992
        %v3099 = vpack.c.bf16 %v2995, %v2994
        %v3100 = vpack.c.bf16 %v2997, %v2996
        %v3101 = vpack.c.bf16 %v2999, %v2998
        %v3102 = vpack.c.bf16 %v3001, %v3000
        %v3103 = vpack.c.bf16 %v3003, %v3002
        %v3104 = vpack.c.bf16 %v3005, %v3004
        %v3105 = vpack.c.bf16 %v3007, %v3006
        %v3106 = vpack.c.bf16 %v3009, %v3008
        %v3107 = vpack.c.bf16 %v3011, %v3010
        %v3108 = vpack.c.bf16 %v3013, %v3012
        %v3109 = vpack.c.bf16 %v3015, %v3014
        %v3110 = vpack.c.bf16 %v3017, %v3016
        %v3111 = vpack.c.bf16 %v3019, %v3018
        %v3112 = vpack.c.bf16 %v3021, %v3020
        %v3113 = vpack.c.bf16 %v3023, %v3022
        %v3114 = vpack.c.bf16 %v3025, %v3024
        %v3115 = vpack.c.bf16 %v3027, %v3026
        %v3116 = vpack.c.bf16 %v3029, %v3028
        %v3117 = vpack.c.bf16 %v3031, %v3030
        %v3118 = vpack.c.bf16 %v3033, %v3032
        %v3119 = vpack.c.bf16 %v3035, %v3034
        %v3120 = vpack.c.bf16 %v3037, %v3036
        %v3121 = vpack.c.bf16 %v3039, %v3038
        %v3122 = vpack.c.bf16 %v3041, %v3040
        %v3123 = vpack.c.bf16 %v3043, %v3042
        %v3124 = vpack.c.bf16 %v3045, %v3044
        %v3125 = vpack.c.bf16 %v3047, %v3046
        %v3126 = vpack.c.bf16 %v3049, %v3048
        %v3127 = vpack.c.bf16 %v3051, %v3050
        %v3128 = vpack.c.bf16 %v3053, %v3052
        %v3129 = vpack.c.bf16 %v3055, %v3054
        %v3130 = vpack.c.bf16 %v3057, %v3056
        %v3131 = vpack.c.bf16 %v3059, %v3058
        %v3132 = vpack.c.bf16 %v3061, %v3060
        %v3133 = vpack.c.bf16 %v3063, %v3062
        %v3134 = vpack.c.bf16 %v3065, %v3064
        %v3135 = vpack.c.bf16 %v3067, %v3066
        %v3136 = vpack.c.bf16 %v3069, %v3068
        %v3137 = vpack.c.bf16 %v3071, %v3070
        %v3138 = vpack.c.bf16 %v3073, %v3072
        %v3139 = vpack.c.bf16 %v3075, %v3074
        %v3140 = vpack.c.bf16 %v3077, %v3076
        %v3141 = vld [vmem:[%s2] sm:$0xf]
        %v3142 = vld [vmem:[%s2 + $0x4] sm:$0xf]
        %v3143 = vld [vmem:[%s2 + $0x8] sm:$0xf]
        %v3144 = vld [vmem:[%s2 + $0xc] sm:$0xf]
        %v3145 = vld [vmem:[%s2 + $0x10] sm:$0xf]
        %v3146 = vld [vmem:[%s2 + $0x14] sm:$0xf]
        %v3147 = vld [vmem:[%s2 + $0x18] sm:$0xf]
        %v3148 = vld [vmem:[%s2 + $0x1c] sm:$0xf]
        %v3149 = vld [vmem:[%s2 + $0x20] sm:$0xf]
        %v3150 = vld [vmem:[%s2 + $0x24] sm:$0xf]
        %v3151 = vld [vmem:[%s2 + $0x28] sm:$0xf]
        %v3152 = vld [vmem:[%s2 + $0x2c] sm:$0xf]
        %v3153 = vld [vmem:[%s2 + $0x30] sm:$0xf]
        %v3154 = vld [vmem:[%s2 + $0x34] sm:$0xf]
        %v3155 = vld [vmem:[%s2 + $0x38] sm:$0xf]
        %v3156 = vld [vmem:[%s2 + $0x3c] sm:$0xf]
        %v3173 = vunpack.c.l.b16 %v3141
        %v3174 = vunpack.c.l.b16 %v3142
        %v3175 = vunpack.c.l.b16 %v3143
        %v3176 = vunpack.c.l.b16 %v3144
        %v3177 = vunpack.c.l.b16 %v3145
        %v3178 = vunpack.c.l.b16 %v3146
        %v3179 = vunpack.c.l.b16 %v3147
        %v3180 = vunpack.c.l.b16 %v3148
        %v3181 = vunpack.c.l.b16 %v3149
        %v3182 = vunpack.c.l.b16 %v3150
        %v3183 = vunpack.c.l.b16 %v3151
        %v3184 = vunpack.c.l.b16 %v3152
        %v3185 = vunpack.c.l.b16 %v3153
        %v3186 = vunpack.c.l.b16 %v3154
        %v3187 = vunpack.c.l.b16 %v3155
        %v3188 = vunpack.c.l.b16 %v3156
        %v3189 = vpack.c.b16 %v3174, %v3173
        %v3190 = vpack.c.b16 %v3176, %v3175
        %v3191 = vpack.c.b16 %v3178, %v3177
        %v3192 = vpack.c.b16 %v3180, %v3179
        %v3193 = vpack.c.b16 %v3182, %v3181
        %v3194 = vpack.c.b16 %v3184, %v3183
        %v3195 = vpack.c.b16 %v3186, %v3185
        %v3196 = vpack.c.b16 %v3188, %v3187
        %3205 = vmatprep.subr.bf16.mxu0 0
        %3206 = vmatpush1.bf16.msra.mxu0 %v3196
        %3207 = vmatprep.subr.bf16.mxu0 0
        %3208 = vmatpush1.bf16.msra.mxu0 %v3195
        %3209 = vmatprep.subr.bf16.mxu0 0
        %3210 = vmatpush1.bf16.msra.mxu0 %v3194
        %3211 = vmatprep.subr.bf16.mxu0 0
        %3212 = vmatpush1.bf16.msra.mxu0 %v3193
        %3213 = vmatprep.subr.bf16.mxu0 0
        %3214 = vmatpush1.bf16.msra.mxu0 %v3192
        %3215 = vmatprep.subr.bf16.mxu0 0
        %3216 = vmatpush1.bf16.msra.mxu0 %v3191
        %3217 = vmatprep.subr.bf16.mxu0 0
        %3218 = vmatpush1.bf16.msra.mxu0 %v3190
        %3219 = vmatprep.subr.bf16.mxu0 0
        %3220 = vmatpush1.bf16.msra.mxu0 %v3189
        %3221 = vmatprep.subr.bf16.mxu0 0
        %3222 = vmatpush2.bf16.msra.mxu0 0
        %3223 = vmatprep.subr.bf16.mxu0 0
        %3224 = vmatpush2.bf16.msra.mxu0 0
        %3225 = vmatprep.subr.bf16.mxu0 0
        %3226 = vmatpush2.bf16.msra.mxu0 0
        %3227 = vmatprep.subr.bf16.mxu0 0
        %3228 = vmatpush2.bf16.msra.mxu0 0
        %3229 = vmatprep.subr.bf16.mxu0 0
        %3230 = vmatpush2.bf16.msra.mxu0 0
        %3231 = vmatprep.subr.bf16.mxu0 0
        %3232 = vmatpush2.bf16.msra.mxu0 0
        %3233 = vmatprep.subr.bf16.mxu0 0
        %3234 = vmatpush2.bf16.msra.mxu0 0
        %3235 = vmatprep.subr.bf16.mxu0 0
        %3236 = vmatpush2.bf16.msra.mxu0 0
        %3237 = vmatprep.mubr.bf16.mxu0 0
        %3238 = vmatmul.mubr.bf16.gmra.mxu0 %v3078
        %v3239 = vpop.f32.mrf.mxu0
        %v3240 = vadd.f32 0.0, %v3239
        %v3241 = vpop.f32.mrf.mxu0
        %v3242 = vpop.f32.mrf.mxu0
        %v3243 = vadd.f32 0.0, %v3242
        %v3244 = vpop.f32.mrf.mxu0
        %3245 = vmatprep.mubr.bf16.mxu0 0
        %3246 = vmatmul.mubr.bf16.gmra.mxu0 %v3079
        %v3247 = vpop.f32.mrf.mxu0
        %v3248 = vadd.f32 0.0, %v3247
        %v3249 = vpop.f32.mrf.mxu0
        %v3250 = vpop.f32.mrf.mxu0
        %v3251 = vadd.f32 0.0, %v3250
        %v3252 = vpop.f32.mrf.mxu0
        %3253 = vmatprep.mubr.bf16.mxu0 0
        %3254 = vmatmul.mubr.bf16.gmra.mxu0 %v3080
        %v3255 = vpop.f32.mrf.mxu0
        %v3256 = vadd.f32 0.0, %v3255
        %v3257 = vpop.f32.mrf.mxu0
        %v3258 = vpop.f32.mrf.mxu0
        %v3259 = vadd.f32 0.0, %v3258
        %v3260 = vpop.f32.mrf.mxu0
        %3261 = vmatprep.mubr.bf16.mxu0 0
        %3262 = vmatmul.mubr.bf16.gmra.mxu0 %v3081
        %v3263 = vpop.f32.mrf.mxu0
        %v3264 = vadd.f32 0.0, %v3263
        %v3265 = vpop.f32.mrf.mxu0
        %v3266 = vpop.f32.mrf.mxu0
        %v3267 = vadd.f32 0.0, %v3266
        %v3268 = vpop.f32.mrf.mxu0
        %3269 = vmatprep.mubr.bf16.mxu0 0
        %3270 = vmatmul.mubr.bf16.gmra.mxu0 %v3082
        %v3271 = vpop.f32.mrf.mxu0
        %v3272 = vadd.f32 0.0, %v3271
        %v3273 = vpop.f32.mrf.mxu0
        %v3274 = vpop.f32.mrf.mxu0
        %v3275 = vadd.f32 0.0, %v3274
        %v3276 = vpop.f32.mrf.mxu0
        %3277 = vmatprep.mubr.bf16.mxu0 0
        %3278 = vmatmul.mubr.bf16.gmra.mxu0 %v3083
        %v3279 = vpop.f32.mrf.mxu0
        %v3280 = vadd.f32 0.0, %v3279
        %v3281 = vpop.f32.mrf.mxu0
        %v3282 = vpop.f32.mrf.mxu0
        %v3283 = vadd.f32 0.0, %v3282
        %v3284 = vpop.f32.mrf.mxu0
        %3285 = vmatprep.mubr.bf16.mxu0 0
        %3286 = vmatmul.mubr.bf16.gmra.mxu0 %v3084
        %v3287 = vpop.f32.mrf.mxu0
        %v3288 = vadd.f32 0.0, %v3287
        %v3289 = vpop.f32.mrf.mxu0
        %v3290 = vpop.f32.mrf.mxu0
        %v3291 = vadd.f32 0.0, %v3290
        %v3292 = vpop.f32.mrf.mxu0
        %3293 = vmatprep.mubr.bf16.mxu0 0
        %3294 = vmatmul.mubr.bf16.gmra.mxu0 %v3085
        %v3295 = vpop.f32.mrf.mxu0
        %v3296 = vadd.f32 0.0, %v3295
        %v3297 = vpop.f32.mrf.mxu0
        %v3298 = vpop.f32.mrf.mxu0
        %v3299 = vadd.f32 0.0, %v3298
        %v3300 = vpop.f32.mrf.mxu0
        %3301 = vmatprep.mubr.bf16.mxu0 0
        %3302 = vmatmul.mubr.bf16.gmra.mxu0 %v3086
        %v3303 = vpop.f32.mrf.mxu0
        %v3304 = vadd.f32 0.0, %v3303
        %v3305 = vpop.f32.mrf.mxu0
        %v3306 = vpop.f32.mrf.mxu0
        %v3307 = vadd.f32 0.0, %v3306
        %v3308 = vpop.f32.mrf.mxu0
        %3309 = vmatprep.mubr.bf16.mxu0 0
        %3310 = vmatmul.mubr.bf16.gmra.mxu0 %v3087
        %v3311 = vpop.f32.mrf.mxu0
        %v3312 = vadd.f32 0.0, %v3311
        %v3313 = vpop.f32.mrf.mxu0
        %v3314 = vpop.f32.mrf.mxu0
        %v3315 = vadd.f32 0.0, %v3314
        %v3316 = vpop.f32.mrf.mxu0
        %3317 = vmatprep.mubr.bf16.mxu0 0
        %3318 = vmatmul.mubr.bf16.gmra.mxu0 %v3088
        %v3319 = vpop.f32.mrf.mxu0
        %v3320 = vadd.f32 0.0, %v3319
        %v3321 = vpop.f32.mrf.mxu0
        %v3322 = vpop.f32.mrf.mxu0
        %v3323 = vadd.f32 0.0, %v3322
        %v3324 = vpop.f32.mrf.mxu0
        %3325 = vmatprep.mubr.bf16.mxu0 0
        %3326 = vmatmul.mubr.bf16.gmra.mxu0 %v3089
        %v3327 = vpop.f32.mrf.mxu0
        %v3328 = vadd.f32 0.0, %v3327
        %v3329 = vpop.f32.mrf.mxu0
        %v3330 = vpop.f32.mrf.mxu0
        %v3331 = vadd.f32 0.0, %v3330
        %v3332 = vpop.f32.mrf.mxu0
        %3333 = vmatprep.mubr.bf16.mxu0 0
        %3334 = vmatmul.mubr.bf16.gmra.mxu0 %v3090
        %v3335 = vpop.f32.mrf.mxu0
        %v3336 = vadd.f32 0.0, %v3335
        %v3337 = vpop.f32.mrf.mxu0
        %v3338 = vpop.f32.mrf.mxu0
        %v3339 = vadd.f32 0.0, %v3338
        %v3340 = vpop.f32.mrf.mxu0
        %3341 = vmatprep.mubr.bf16.mxu0 0
        %3342 = vmatmul.mubr.bf16.gmra.mxu0 %v3091
        %v3343 = vpop.f32.mrf.mxu0
        %v3344 = vadd.f32 0.0, %v3343
        %v3345 = vpop.f32.mrf.mxu0
        %v3346 = vpop.f32.mrf.mxu0
        %v3347 = vadd.f32 0.0, %v3346
        %v3348 = vpop.f32.mrf.mxu0
        %3349 = vmatprep.mubr.bf16.mxu0 0
        %3350 = vmatmul.mubr.bf16.gmra.mxu0 %v3092
        %v3351 = vpop.f32.mrf.mxu0
        %v3352 = vadd.f32 0.0, %v3351
        %v3353 = vpop.f32.mrf.mxu0
        %v3354 = vpop.f32.mrf.mxu0
        %v3355 = vadd.f32 0.0, %v3354
        %v3356 = vpop.f32.mrf.mxu0
        %3357 = vmatprep.mubr.bf16.mxu0 0
        %3358 = vmatmul.mubr.bf16.gmra.mxu0 %v3093
        %v3359 = vpop.f32.mrf.mxu0
        %v3360 = vadd.f32 0.0, %v3359
        %v3361 = vpop.f32.mrf.mxu0
        %v3362 = vpop.f32.mrf.mxu0
        %v3363 = vadd.f32 0.0, %v3362
        %v3364 = vpop.f32.mrf.mxu0
        %3365 = vmatprep.mubr.bf16.mxu0 0
        %3366 = vmatmul.mubr.bf16.gmra.mxu0 %v3094
        %v3367 = vpop.f32.mrf.mxu0
        %v3368 = vadd.f32 0.0, %v3367
        %v3369 = vpop.f32.mrf.mxu0
        %v3370 = vpop.f32.mrf.mxu0
        %v3371 = vadd.f32 0.0, %v3370
        %v3372 = vpop.f32.mrf.mxu0
        %3373 = vmatprep.mubr.bf16.mxu0 0
        %3374 = vmatmul.mubr.bf16.gmra.mxu0 %v3095
        %v3375 = vpop.f32.mrf.mxu0
        %v3376 = vadd.f32 0.0, %v3375
        %v3377 = vpop.f32.mrf.mxu0
        %v3378 = vpop.f32.mrf.mxu0
        %v3379 = vadd.f32 0.0, %v3378
        %v3380 = vpop.f32.mrf.mxu0
        %3381 = vmatprep.mubr.bf16.mxu0 0
        %3382 = vmatmul.mubr.bf16.gmra.mxu0 %v3096
        %v3383 = vpop.f32.mrf.mxu0
        %v3384 = vadd.f32 0.0, %v3383
        %v3385 = vpop.f32.mrf.mxu0
        %v3386 = vpop.f32.mrf.mxu0
        %v3387 = vadd.f32 0.0, %v3386
        %v3388 = vpop.f32.mrf.mxu0
        %3389 = vmatprep.mubr.bf16.mxu0 0
        %3390 = vmatmul.mubr.bf16.gmra.mxu0 %v3097
        %v3391 = vpop.f32.mrf.mxu0
        %v3392 = vadd.f32 0.0, %v3391
        %v3393 = vpop.f32.mrf.mxu0
        %v3394 = vpop.f32.mrf.mxu0
        %v3395 = vadd.f32 0.0, %v3394
        %v3396 = vpop.f32.mrf.mxu0
        %3397 = vmatprep.mubr.bf16.mxu0 0
        %3398 = vmatmul.mubr.bf16.gmra.mxu0 %v3098
        %v3399 = vpop.f32.mrf.mxu0
        %v3400 = vadd.f32 0.0, %v3399
        %v3401 = vpop.f32.mrf.mxu0
        %v3402 = vpop.f32.mrf.mxu0
        %v3403 = vadd.f32 0.0, %v3402
        %v3404 = vpop.f32.mrf.mxu0
        %3405 = vmatprep.mubr.bf16.mxu0 0
        %3406 = vmatmul.mubr.bf16.gmra.mxu0 %v3099
        %v3407 = vpop.f32.mrf.mxu0
        %v3408 = vadd.f32 0.0, %v3407
        %v3409 = vpop.f32.mrf.mxu0
        %v3410 = vpop.f32.mrf.mxu0
        %v3411 = vadd.f32 0.0, %v3410
        %v3412 = vpop.f32.mrf.mxu0
        %3413 = vmatprep.mubr.bf16.mxu0 0
        %3414 = vmatmul.mubr.bf16.gmra.mxu0 %v3100
        %v3415 = vpop.f32.mrf.mxu0
        %v3416 = vadd.f32 0.0, %v3415
        %v3417 = vpop.f32.mrf.mxu0
        %v3418 = vpop.f32.mrf.mxu0
        %v3419 = vadd.f32 0.0, %v3418
        %v3420 = vpop.f32.mrf.mxu0
        %3421 = vmatprep.mubr.bf16.mxu0 0
        %3422 = vmatmul.mubr.bf16.gmra.mxu0 %v3101
        %v3423 = vpop.f32.mrf.mxu0
        %v3424 = vadd.f32 0.0, %v3423
        %v3425 = vpop.f32.mrf.mxu0
        %v3426 = vpop.f32.mrf.mxu0
        %v3427 = vadd.f32 0.0, %v3426
        %v3428 = vpop.f32.mrf.mxu0
        %3429 = vmatprep.mubr.bf16.mxu0 0
        %3430 = vmatmul.mubr.bf16.gmra.mxu0 %v3102
        %v3431 = vpop.f32.mrf.mxu0
        %v3432 = vadd.f32 0.0, %v3431
        %v3433 = vpop.f32.mrf.mxu0
        %v3434 = vpop.f32.mrf.mxu0
        %v3435 = vadd.f32 0.0, %v3434
        %v3436 = vpop.f32.mrf.mxu0
        %3437 = vmatprep.mubr.bf16.mxu0 0
        %3438 = vmatmul.mubr.bf16.gmra.mxu0 %v3103
        %v3439 = vpop.f32.mrf.mxu0
        %v3440 = vadd.f32 0.0, %v3439
        %v3441 = vpop.f32.mrf.mxu0
        %v3442 = vpop.f32.mrf.mxu0
        %v3443 = vadd.f32 0.0, %v3442
        %v3444 = vpop.f32.mrf.mxu0
        %3445 = vmatprep.mubr.bf16.mxu0 0
        %3446 = vmatmul.mubr.bf16.gmra.mxu0 %v3104
        %v3447 = vpop.f32.mrf.mxu0
        %v3448 = vadd.f32 0.0, %v3447
        %v3449 = vpop.f32.mrf.mxu0
        %v3450 = vpop.f32.mrf.mxu0
        %v3451 = vadd.f32 0.0, %v3450
        %v3452 = vpop.f32.mrf.mxu0
        %3453 = vmatprep.mubr.bf16.mxu0 0
        %3454 = vmatmul.mubr.bf16.gmra.mxu0 %v3105
        %v3455 = vpop.f32.mrf.mxu0
        %v3456 = vadd.f32 0.0, %v3455
        %v3457 = vpop.f32.mrf.mxu0
        %v3458 = vpop.f32.mrf.mxu0
        %v3459 = vadd.f32 0.0, %v3458
        %v3460 = vpop.f32.mrf.mxu0
        %3461 = vmatprep.mubr.bf16.mxu0 0
        %3462 = vmatmul.mubr.bf16.gmra.mxu0 %v3106
        %v3463 = vpop.f32.mrf.mxu0
        %v3464 = vadd.f32 0.0, %v3463
        %v3465 = vpop.f32.mrf.mxu0
        %v3466 = vpop.f32.mrf.mxu0
        %v3467 = vadd.f32 0.0, %v3466
        %v3468 = vpop.f32.mrf.mxu0
        %3469 = vmatprep.mubr.bf16.mxu0 0
        %3470 = vmatmul.mubr.bf16.gmra.mxu0 %v3107
        %v3471 = vpop.f32.mrf.mxu0
        %v3472 = vadd.f32 0.0, %v3471
        %v3473 = vpop.f32.mrf.mxu0
        %v3474 = vpop.f32.mrf.mxu0
        %v3475 = vadd.f32 0.0, %v3474
        %v3476 = vpop.f32.mrf.mxu0
        %3477 = vmatprep.mubr.bf16.mxu0 0
        %3478 = vmatmul.mubr.bf16.gmra.mxu0 %v3108
        %v3479 = vpop.f32.mrf.mxu0
        %v3480 = vadd.f32 0.0, %v3479
        %v3481 = vpop.f32.mrf.mxu0
        %v3482 = vpop.f32.mrf.mxu0
        %v3483 = vadd.f32 0.0, %v3482
        %v3484 = vpop.f32.mrf.mxu0
        %3485 = vmatprep.mubr.bf16.mxu0 0
        %3486 = vmatmul.mubr.bf16.gmra.mxu0 %v3109
        %v3487 = vpop.f32.mrf.mxu0
        %v3488 = vadd.f32 0.0, %v3487
        %v3489 = vpop.f32.mrf.mxu0
        %v3490 = vpop.f32.mrf.mxu0
        %v3491 = vadd.f32 0.0, %v3490
        %v3492 = vpop.f32.mrf.mxu0
        %3493 = vmatprep.mubr.bf16.mxu0 0
        %3494 = vmatmul.mubr.bf16.gmra.mxu0 %v3110
        %v3495 = vpop.f32.mrf.mxu0
        %v3496 = vadd.f32 0.0, %v3495
        %v3497 = vpop.f32.mrf.mxu0
        %v3498 = vpop.f32.mrf.mxu0
        %v3499 = vadd.f32 0.0, %v3498
        %v3500 = vpop.f32.mrf.mxu0
        %3501 = vmatprep.mubr.bf16.mxu0 0
        %3502 = vmatmul.mubr.bf16.gmra.mxu0 %v3111
        %v3503 = vpop.f32.mrf.mxu0
        %v3504 = vadd.f32 0.0, %v3503
        %v3505 = vpop.f32.mrf.mxu0
        %v3506 = vpop.f32.mrf.mxu0
        %v3507 = vadd.f32 0.0, %v3506
        %v3508 = vpop.f32.mrf.mxu0
        %3509 = vmatprep.mubr.bf16.mxu0 0
        %3510 = vmatmul.mubr.bf16.gmra.mxu0 %v3112
        %v3511 = vpop.f32.mrf.mxu0
        %v3512 = vadd.f32 0.0, %v3511
        %v3513 = vpop.f32.mrf.mxu0
        %v3514 = vpop.f32.mrf.mxu0
        %v3515 = vadd.f32 0.0, %v3514
        %v3516 = vpop.f32.mrf.mxu0
        %3517 = vmatprep.mubr.bf16.mxu0 0
        %3518 = vmatmul.mubr.bf16.gmra.mxu0 %v3113
        %v3519 = vpop.f32.mrf.mxu0
        %v3520 = vadd.f32 0.0, %v3519
        %v3521 = vpop.f32.mrf.mxu0
        %v3522 = vpop.f32.mrf.mxu0
        %v3523 = vadd.f32 0.0, %v3522
        %v3524 = vpop.f32.mrf.mxu0
        %3525 = vmatprep.mubr.bf16.mxu0 0
        %3526 = vmatmul.mubr.bf16.gmra.mxu0 %v3114
        %v3527 = vpop.f32.mrf.mxu0
        %v3528 = vadd.f32 0.0, %v3527
        %v3529 = vpop.f32.mrf.mxu0
        %v3530 = vpop.f32.mrf.mxu0
        %v3531 = vadd.f32 0.0, %v3530
        %v3532 = vpop.f32.mrf.mxu0
        %3533 = vmatprep.mubr.bf16.mxu0 0
        %3534 = vmatmul.mubr.bf16.gmra.mxu0 %v3115
        %v3535 = vpop.f32.mrf.mxu0
        %v3536 = vadd.f32 0.0, %v3535
        %v3537 = vpop.f32.mrf.mxu0
        %v3538 = vpop.f32.mrf.mxu0
        %v3539 = vadd.f32 0.0, %v3538
        %v3540 = vpop.f32.mrf.mxu0
        %3541 = vmatprep.mubr.bf16.mxu0 0
        %3542 = vmatmul.mubr.bf16.gmra.mxu0 %v3116
        %v3543 = vpop.f32.mrf.mxu0
        %v3544 = vadd.f32 0.0, %v3543
        %v3545 = vpop.f32.mrf.mxu0
        %v3546 = vpop.f32.mrf.mxu0
        %v3547 = vadd.f32 0.0, %v3546
        %v3548 = vpop.f32.mrf.mxu0
        %3549 = vmatprep.mubr.bf16.mxu0 0
        %3550 = vmatmul.mubr.bf16.gmra.mxu0 %v3117
        %v3551 = vpop.f32.mrf.mxu0
        %v3552 = vadd.f32 0.0, %v3551
        %v3553 = vpop.f32.mrf.mxu0
        %v3554 = vpop.f32.mrf.mxu0
        %v3555 = vadd.f32 0.0, %v3554
        %v3556 = vpop.f32.mrf.mxu0
        %3557 = vmatprep.mubr.bf16.mxu0 0
        %3558 = vmatmul.mubr.bf16.gmra.mxu0 %v3118
        %v3559 = vpop.f32.mrf.mxu0
        %v3560 = vadd.f32 0.0, %v3559
        %v3561 = vpop.f32.mrf.mxu0
        %v3562 = vpop.f32.mrf.mxu0
        %v3563 = vadd.f32 0.0, %v3562
        %v3564 = vpop.f32.mrf.mxu0
        %3565 = vmatprep.mubr.bf16.mxu0 0
        %3566 = vmatmul.mubr.bf16.gmra.mxu0 %v3119
        %v3567 = vpop.f32.mrf.mxu0
        %v3568 = vadd.f32 0.0, %v3567
        %v3569 = vpop.f32.mrf.mxu0
        %v3570 = vpop.f32.mrf.mxu0
        %v3571 = vadd.f32 0.0, %v3570
        %v3572 = vpop.f32.mrf.mxu0
        %3573 = vmatprep.mubr.bf16.mxu0 0
        %3574 = vmatmul.mubr.bf16.gmra.mxu0 %v3120
        %v3575 = vpop.f32.mrf.mxu0
        %v3576 = vadd.f32 0.0, %v3575
        %v3577 = vpop.f32.mrf.mxu0
        %v3578 = vpop.f32.mrf.mxu0
        %v3579 = vadd.f32 0.0, %v3578
        %v3580 = vpop.f32.mrf.mxu0
        %3581 = vmatprep.mubr.bf16.mxu0 0
        %3582 = vmatmul.mubr.bf16.gmra.mxu0 %v3121
        %v3583 = vpop.f32.mrf.mxu0
        %v3584 = vadd.f32 0.0, %v3583
        %v3585 = vpop.f32.mrf.mxu0
        %v3586 = vpop.f32.mrf.mxu0
        %v3587 = vadd.f32 0.0, %v3586
        %v3588 = vpop.f32.mrf.mxu0
        %3589 = vmatprep.mubr.bf16.mxu0 0
        %3590 = vmatmul.mubr.bf16.gmra.mxu0 %v3122
        %v3591 = vpop.f32.mrf.mxu0
        %v3592 = vadd.f32 0.0, %v3591
        %v3593 = vpop.f32.mrf.mxu0
        %v3594 = vpop.f32.mrf.mxu0
        %v3595 = vadd.f32 0.0, %v3594
        %v3596 = vpop.f32.mrf.mxu0
        %3597 = vmatprep.mubr.bf16.mxu0 0
        %3598 = vmatmul.mubr.bf16.gmra.mxu0 %v3123
        %v3599 = vpop.f32.mrf.mxu0
        %v3600 = vadd.f32 0.0, %v3599
        %v3601 = vpop.f32.mrf.mxu0
        %v3602 = vpop.f32.mrf.mxu0
        %v3603 = vadd.f32 0.0, %v3602
        %v3604 = vpop.f32.mrf.mxu0
        %3605 = vmatprep.mubr.bf16.mxu0 0
        %3606 = vmatmul.mubr.bf16.gmra.mxu0 %v3124
        %v3607 = vpop.f32.mrf.mxu0
        %v3608 = vadd.f32 0.0, %v3607
        %v3609 = vpop.f32.mrf.mxu0
        %v3610 = vpop.f32.mrf.mxu0
        %v3611 = vadd.f32 0.0, %v3610
        %v3612 = vpop.f32.mrf.mxu0
        %3613 = vmatprep.mubr.bf16.mxu0 0
        %3614 = vmatmul.mubr.bf16.gmra.mxu0 %v3125
        %v3615 = vpop.f32.mrf.mxu0
        %v3616 = vadd.f32 0.0, %v3615
        %v3617 = vpop.f32.mrf.mxu0
        %v3618 = vpop.f32.mrf.mxu0
        %v3619 = vadd.f32 0.0, %v3618
        %v3620 = vpop.f32.mrf.mxu0
        %3621 = vmatprep.mubr.bf16.mxu0 0
        %3622 = vmatmul.mubr.bf16.gmra.mxu0 %v3126
        %v3623 = vpop.f32.mrf.mxu0
        %v3624 = vadd.f32 0.0, %v3623
        %v3625 = vpop.f32.mrf.mxu0
        %v3626 = vpop.f32.mrf.mxu0
        %v3627 = vadd.f32 0.0, %v3626
        %v3628 = vpop.f32.mrf.mxu0
        %3629 = vmatprep.mubr.bf16.mxu0 0
        %3630 = vmatmul.mubr.bf16.gmra.mxu0 %v3127
        %v3631 = vpop.f32.mrf.mxu0
        %v3632 = vadd.f32 0.0, %v3631
        %v3633 = vpop.f32.mrf.mxu0
        %v3634 = vpop.f32.mrf.mxu0
        %v3635 = vadd.f32 0.0, %v3634
        %v3636 = vpop.f32.mrf.mxu0
        %3637 = vmatprep.mubr.bf16.mxu0 0
        %3638 = vmatmul.mubr.bf16.gmra.mxu0 %v3128
        %v3639 = vpop.f32.mrf.mxu0
        %v3640 = vadd.f32 0.0, %v3639
        %v3641 = vpop.f32.mrf.mxu0
        %v3642 = vpop.f32.mrf.mxu0
        %v3643 = vadd.f32 0.0, %v3642
        %v3644 = vpop.f32.mrf.mxu0
        %3645 = vmatprep.mubr.bf16.mxu0 0
        %3646 = vmatmul.mubr.bf16.gmra.mxu0 %v3129
        %v3647 = vpop.f32.mrf.mxu0
        %v3648 = vadd.f32 0.0, %v3647
        %v3649 = vpop.f32.mrf.mxu0
        %v3650 = vpop.f32.mrf.mxu0
        %v3651 = vadd.f32 0.0, %v3650
        %v3652 = vpop.f32.mrf.mxu0
        %3653 = vmatprep.mubr.bf16.mxu0 0
        %3654 = vmatmul.mubr.bf16.gmra.mxu0 %v3130
        %v3655 = vpop.f32.mrf.mxu0
        %v3656 = vadd.f32 0.0, %v3655
        %v3657 = vpop.f32.mrf.mxu0
        %v3658 = vpop.f32.mrf.mxu0
        %v3659 = vadd.f32 0.0, %v3658
        %v3660 = vpop.f32.mrf.mxu0
        %3661 = vmatprep.mubr.bf16.mxu0 0
        %3662 = vmatmul.mubr.bf16.gmra.mxu0 %v3131
        %v3663 = vpop.f32.mrf.mxu0
        %v3664 = vadd.f32 0.0, %v3663
        %v3665 = vpop.f32.mrf.mxu0
        %v3666 = vpop.f32.mrf.mxu0
        %v3667 = vadd.f32 0.0, %v3666
        %v3668 = vpop.f32.mrf.mxu0
        %3669 = vmatprep.mubr.bf16.mxu0 0
        %3670 = vmatmul.mubr.bf16.gmra.mxu0 %v3132
        %v3671 = vpop.f32.mrf.mxu0
        %v3672 = vadd.f32 0.0, %v3671
        %v3673 = vpop.f32.mrf.mxu0
        %v3674 = vpop.f32.mrf.mxu0
        %v3675 = vadd.f32 0.0, %v3674
        %v3676 = vpop.f32.mrf.mxu0
        %3677 = vmatprep.mubr.bf16.mxu0 0
        %3678 = vmatmul.mubr.bf16.gmra.mxu0 %v3133
        %v3679 = vpop.f32.mrf.mxu0
        %v3680 = vadd.f32 0.0, %v3679
        %v3681 = vpop.f32.mrf.mxu0
        %v3682 = vpop.f32.mrf.mxu0
        %v3683 = vadd.f32 0.0, %v3682
        %v3684 = vpop.f32.mrf.mxu0
        %3685 = vmatprep.mubr.bf16.mxu0 0
        %3686 = vmatmul.mubr.bf16.gmra.mxu0 %v3134
        %v3687 = vpop.f32.mrf.mxu0
        %v3688 = vadd.f32 0.0, %v3687
        %v3689 = vpop.f32.mrf.mxu0
        %v3690 = vpop.f32.mrf.mxu0
        %v3691 = vadd.f32 0.0, %v3690
        %v3692 = vpop.f32.mrf.mxu0
        %3693 = vmatprep.mubr.bf16.mxu0 0
        %3694 = vmatmul.mubr.bf16.gmra.mxu0 %v3135
        %v3695 = vpop.f32.mrf.mxu0
        %v3696 = vadd.f32 0.0, %v3695
        %v3697 = vpop.f32.mrf.mxu0
        %v3698 = vpop.f32.mrf.mxu0
        %v3699 = vadd.f32 0.0, %v3698
        %v3700 = vpop.f32.mrf.mxu0
        %3701 = vmatprep.mubr.bf16.mxu0 0
        %3702 = vmatmul.mubr.bf16.gmra.mxu0 %v3136
        %v3703 = vpop.f32.mrf.mxu0
        %v3704 = vadd.f32 0.0, %v3703
        %v3705 = vpop.f32.mrf.mxu0
        %v3706 = vpop.f32.mrf.mxu0
        %v3707 = vadd.f32 0.0, %v3706
        %v3708 = vpop.f32.mrf.mxu0
        %3709 = vmatprep.mubr.bf16.mxu0 0
        %3710 = vmatmul.mubr.bf16.gmra.mxu0 %v3137
        %v3711 = vpop.f32.mrf.mxu0
        %v3712 = vadd.f32 0.0, %v3711
        %v3713 = vpop.f32.mrf.mxu0
        %v3714 = vpop.f32.mrf.mxu0
        %v3715 = vadd.f32 0.0, %v3714
        %v3716 = vpop.f32.mrf.mxu0
        %3717 = vmatprep.mubr.bf16.mxu0 0
        %3718 = vmatmul.mubr.bf16.gmra.mxu0 %v3138
        %v3719 = vpop.f32.mrf.mxu0
        %v3720 = vadd.f32 0.0, %v3719
        %v3721 = vpop.f32.mrf.mxu0
        %v3722 = vpop.f32.mrf.mxu0
        %v3723 = vadd.f32 0.0, %v3722
        %v3724 = vpop.f32.mrf.mxu0
        %3725 = vmatprep.mubr.bf16.mxu0 0
        %3726 = vmatmul.mubr.bf16.gmra.mxu0 %v3139
        %v3727 = vpop.f32.mrf.mxu0
        %v3728 = vadd.f32 0.0, %v3727
        %v3729 = vpop.f32.mrf.mxu0
        %v3730 = vpop.f32.mrf.mxu0
        %v3731 = vadd.f32 0.0, %v3730
        %v3732 = vpop.f32.mrf.mxu0
        %3733 = vmatprep.mubr.bf16.mxu0 0
        %3734 = vmatmul.mubr.bf16.gmra.mxu0 %v3140
        %v3735 = vpop.f32.mrf.mxu0
        %v3736 = vadd.f32 0.0, %v3735
        %v3737 = vpop.f32.mrf.mxu0
        %v3738 = vpop.f32.mrf.mxu0
        %v3739 = vadd.f32 0.0, %v3738
        %v3740 = vpop.f32.mrf.mxu0
        %3741 = vdwg.mxu0
        %s3742 = scalar_lea.vmem [#allocation3], %s1929
        %3743 = vst [vmem:[%s3742] sm:$0xff] %v3240
        %3744 = vst [vmem:[%s3742 + $0x8] sm:$0xff] %v3243
        %3745 = vst [vmem:[%s3742 + $0x10] sm:$0xff] %v3248
        %3746 = vst [vmem:[%s3742 + $0x18] sm:$0xff] %v3251
        %3747 = vst [vmem:[%s3742 + $0x20] sm:$0xff] %v3256
        %3748 = vst [vmem:[%s3742 + $0x28] sm:$0xff] %v3259
        %3749 = vst [vmem:[%s3742 + $0x30] sm:$0xff] %v3264
        %3750 = vst [vmem:[%s3742 + $0x38] sm:$0xff] %v3267
        %3751 = vst [vmem:[%s3742 + $0x40] sm:$0xff] %v3272
        %3752 = vst [vmem:[%s3742 + $0x48] sm:$0xff] %v3275
        %3753 = vst [vmem:[%s3742 + $0x50] sm:$0xff] %v3280
        %3754 = vst [vmem:[%s3742 + $0x58] sm:$0xff] %v3283
        %3755 = vst [vmem:[%s3742 + $0x60] sm:$0xff] %v3288
        %3756 = vst [vmem:[%s3742 + $0x68] sm:$0xff] %v3291
        %3757 = vst [vmem:[%s3742 + $0x70] sm:$0xff] %v3296
        %3758 = vst [vmem:[%s3742 + $0x78] sm:$0xff] %v3299
        %3759 = vst [vmem:[%s3742 + $0x80] sm:$0xff] %v3304
        %3760 = vst [vmem:[%s3742 + $0x88] sm:$0xff] %v3307
        %3761 = vst [vmem:[%s3742 + $0x90] sm:$0xff] %v3312
        %3762 = vst [vmem:[%s3742 + $0x98] sm:$0xff] %v3315
        %3763 = vst [vmem:[%s3742 + $0xa0] sm:$0xff] %v3320
        %3764 = vst [vmem:[%s3742 + $0xa8] sm:$0xff] %v3323
        %3765 = vst [vmem:[%s3742 + $0xb0] sm:$0xff] %v3328
        %3766 = vst [vmem:[%s3742 + $0xb8] sm:$0xff] %v3331
        %3767 = vst [vmem:[%s3742 + $0xc0] sm:$0xff] %v3336
        %3768 = vst [vmem:[%s3742 + $0xc8] sm:$0xff] %v3339
        %3769 = vst [vmem:[%s3742 + $0xd0] sm:$0xff] %v3344
        %3770 = vst [vmem:[%s3742 + $0xd8] sm:$0xff] %v3347
        %3771 = vst [vmem:[%s3742 + $0xe0] sm:$0xff] %v3352
        %3772 = vst [vmem:[%s3742 + $0xe8] sm:$0xff] %v3355
        %3773 = vst [vmem:[%s3742 + $0xf0] sm:$0xff] %v3360
        %3774 = vst [vmem:[%s3742 + $0xf8] sm:$0xff] %v3363
        %3775 = vst [vmem:[%s3742 + $0x100] sm:$0xff] %v3368
        %3776 = vst [vmem:[%s3742 + $0x108] sm:$0xff] %v3371
        %3777 = vst [vmem:[%s3742 + $0x110] sm:$0xff] %v3376
        %3778 = vst [vmem:[%s3742 + $0x118] sm:$0xff] %v3379
        %3779 = vst [vmem:[%s3742 + $0x120] sm:$0xff] %v3384
        %3780 = vst [vmem:[%s3742 + $0x128] sm:$0xff] %v3387
        %3781 = vst [vmem:[%s3742 + $0x130] sm:$0xff] %v3392
        %3782 = vst [vmem:[%s3742 + $0x138] sm:$0xff] %v3395
        %3783 = vst [vmem:[%s3742 + $0x140] sm:$0xff] %v3400
        %3784 = vst [vmem:[%s3742 + $0x148] sm:$0xff] %v3403
        %3785 = vst [vmem:[%s3742 + $0x150] sm:$0xff] %v3408
        %3786 = vst [vmem:[%s3742 + $0x158] sm:$0xff] %v3411
        %3787 = vst [vmem:[%s3742 + $0x160] sm:$0xff] %v3416
        %3788 = vst [vmem:[%s3742 + $0x168] sm:$0xff] %v3419
        %3789 = vst [vmem:[%s3742 + $0x170] sm:$0xff] %v3424
        %3790 = vst [vmem:[%s3742 + $0x178] sm:$0xff] %v3427
        %3791 = vst [vmem:[%s3742 + $0x180] sm:$0xff] %v3432
        %3792 = vst [vmem:[%s3742 + $0x188] sm:$0xff] %v3435
        %3793 = vst [vmem:[%s3742 + $0x190] sm:$0xff] %v3440
        %3794 = vst [vmem:[%s3742 + $0x198] sm:$0xff] %v3443
        %3795 = vst [vmem:[%s3742 + $0x1a0] sm:$0xff] %v3448
        %3796 = vst [vmem:[%s3742 + $0x1a8] sm:$0xff] %v3451
        %3797 = vst [vmem:[%s3742 + $0x1b0] sm:$0xff] %v3456
        %3798 = vst [vmem:[%s3742 + $0x1b8] sm:$0xff] %v3459
        %3799 = vst [vmem:[%s3742 + $0x1c0] sm:$0xff] %v3464
        %3800 = vst [vmem:[%s3742 + $0x1c8] sm:$0xff] %v3467
        %3801 = vst [vmem:[%s3742 + $0x1d0] sm:$0xff] %v3472
        %3802 = vst [vmem:[%s3742 + $0x1d8] sm:$0xff] %v3475
        %3803 = vst [vmem:[%s3742 + $0x1e0] sm:$0xff] %v3480
        %3804 = vst [vmem:[%s3742 + $0x1e8] sm:$0xff] %v3483
        %3805 = vst [vmem:[%s3742 + $0x1f0] sm:$0xff] %v3488
        %3806 = vst [vmem:[%s3742 + $0x1f8] sm:$0xff] %v3491
        %3807 = vst [vmem:[%s3742 + $0x200] sm:$0xff] %v3496
        %3808 = vst [vmem:[%s3742 + $0x208] sm:$0xff] %v3499
        %3809 = vst [vmem:[%s3742 + $0x210] sm:$0xff] %v3504
        %3810 = vst [vmem:[%s3742 + $0x218] sm:$0xff] %v3507
        %3811 = vst [vmem:[%s3742 + $0x220] sm:$0xff] %v3512
        %3812 = vst [vmem:[%s3742 + $0x228] sm:$0xff] %v3515
        %3813 = vst [vmem:[%s3742 + $0x230] sm:$0xff] %v3520
        %3814 = vst [vmem:[%s3742 + $0x238] sm:$0xff] %v3523
        %3815 = vst [vmem:[%s3742 + $0x240] sm:$0xff] %v3528
        %3816 = vst [vmem:[%s3742 + $0x248] sm:$0xff] %v3531
        %3817 = vst [vmem:[%s3742 + $0x250] sm:$0xff] %v3536
        %3818 = vst [vmem:[%s3742 + $0x258] sm:$0xff] %v3539
        %3819 = vst [vmem:[%s3742 + $0x260] sm:$0xff] %v3544
        %3820 = vst [vmem:[%s3742 + $0x268] sm:$0xff] %v3547
        %3821 = vst [vmem:[%s3742 + $0x270] sm:$0xff] %v3552
        %3822 = vst [vmem:[%s3742 + $0x278] sm:$0xff] %v3555
        %3823 = vst [vmem:[%s3742 + $0x280] sm:$0xff] %v3560
        %3824 = vst [vmem:[%s3742 + $0x288] sm:$0xff] %v3563
        %3825 = vst [vmem:[%s3742 + $0x290] sm:$0xff] %v3568
        %3826 = vst [vmem:[%s3742 + $0x298] sm:$0xff] %v3571
        %3827 = vst [vmem:[%s3742 + $0x2a0] sm:$0xff] %v3576
        %3828 = vst [vmem:[%s3742 + $0x2a8] sm:$0xff] %v3579
        %3829 = vst [vmem:[%s3742 + $0x2b0] sm:$0xff] %v3584
        %3830 = vst [vmem:[%s3742 + $0x2b8] sm:$0xff] %v3587
        %3831 = vst [vmem:[%s3742 + $0x2c0] sm:$0xff] %v3592
        %3832 = vst [vmem:[%s3742 + $0x2c8] sm:$0xff] %v3595
        %3833 = vst [vmem:[%s3742 + $0x2d0] sm:$0xff] %v3600
        %3834 = vst [vmem:[%s3742 + $0x2d8] sm:$0xff] %v3603
        %3835 = vst [vmem:[%s3742 + $0x2e0] sm:$0xff] %v3608
        %3836 = vst [vmem:[%s3742 + $0x2e8] sm:$0xff] %v3611
        %3837 = vst [vmem:[%s3742 + $0x2f0] sm:$0xff] %v3616
        %3838 = vst [vmem:[%s3742 + $0x2f8] sm:$0xff] %v3619
        %3839 = vst [vmem:[%s3742 + $0x300] sm:$0xff] %v3624
        %3840 = vst [vmem:[%s3742 + $0x308] sm:$0xff] %v3627
        %3841 = vst [vmem:[%s3742 + $0x310] sm:$0xff] %v3632
        %3842 = vst [vmem:[%s3742 + $0x318] sm:$0xff] %v3635
        %3843 = vst [vmem:[%s3742 + $0x320] sm:$0xff] %v3640
        %3844 = vst [vmem:[%s3742 + $0x328] sm:$0xff] %v3643
        %3845 = vst [vmem:[%s3742 + $0x330] sm:$0xff] %v3648
        %3846 = vst [vmem:[%s3742 + $0x338] sm:$0xff] %v3651
        %3847 = vst [vmem:[%s3742 + $0x340] sm:$0xff] %v3656
        %3848 = vst [vmem:[%s3742 + $0x348] sm:$0xff] %v3659
        %3849 = vst [vmem:[%s3742 + $0x350] sm:$0xff] %v3664
        %3850 = vst [vmem:[%s3742 + $0x358] sm:$0xff] %v3667
        %3851 = vst [vmem:[%s3742 + $0x360] sm:$0xff] %v3672
        %3852 = vst [vmem:[%s3742 + $0x368] sm:$0xff] %v3675
        %3853 = vst [vmem:[%s3742 + $0x370] sm:$0xff] %v3680
        %3854 = vst [vmem:[%s3742 + $0x378] sm:$0xff] %v3683
        %3855 = vst [vmem:[%s3742 + $0x380] sm:$0xff] %v3688
        %3856 = vst [vmem:[%s3742 + $0x388] sm:$0xff] %v3691
        %3857 = vst [vmem:[%s3742 + $0x390] sm:$0xff] %v3696
        %3858 = vst [vmem:[%s3742 + $0x398] sm:$0xff] %v3699
        %3859 = vst [vmem:[%s3742 + $0x3a0] sm:$0xff] %v3704
        %3860 = vst [vmem:[%s3742 + $0x3a8] sm:$0xff] %v3707
        %3861 = vst [vmem:[%s3742 + $0x3b0] sm:$0xff] %v3712
        %3862 = vst [vmem:[%s3742 + $0x3b8] sm:$0xff] %v3715
        %3863 = vst [vmem:[%s3742 + $0x3c0] sm:$0xff] %v3720
        %3864 = vst [vmem:[%s3742 + $0x3c8] sm:$0xff] %v3723
        %3865 = vst [vmem:[%s3742 + $0x3d0] sm:$0xff] %v3728
        %3866 = vst [vmem:[%s3742 + $0x3d8] sm:$0xff] %v3731
        %3867 = vst [vmem:[%s3742 + $0x3e0] sm:$0xff] %v3736
        %3868 = vst [vmem:[%s3742 + $0x3e8] sm:$0xff] %v3739
        %v3869 = vld [vmem:[#allocation5] sm:$0x3]
        %v3870 = vadd.f32 %v3240, %v3243
        %v3871 = vadd.f32 %v3870, %v3248
        %v3872 = vadd.f32 %v3871, %v3251
        %v3873 = vadd.f32 %v3872, %v3256
        %v3874 = vadd.f32 %v3873, %v3259
        %v3875 = vadd.f32 %v3874, %v3264
        %v3876 = vadd.f32 %v3875, %v3267
        %v3877 = vadd.f32 %v3876, %v3272
        %v3878 = vadd.f32 %v3877, %v3275
        %v3879 = vadd.f32 %v3878, %v3280
        %v3880 = vadd.f32 %v3879, %v3283
        %v3881 = vadd.f32 %v3880, %v3288
        %v3882 = vadd.f32 %v3881, %v3291
        %v3883 = vadd.f32 %v3882, %v3296
        %v3884 = vadd.f32 %v3883, %v3299
        %v3885 = vadd.f32 %v3884, %v3304
        %v3886 = vadd.f32 %v3885, %v3307
        %v3887 = vadd.f32 %v3886, %v3312
        %v3888 = vadd.f32 %v3887, %v3315
        %v3889 = vadd.f32 %v3888, %v3320
        %v3890 = vadd.f32 %v3889, %v3323
        %v3891 = vadd.f32 %v3890, %v3328
        %v3892 = vadd.f32 %v3891, %v3331
        %v3893 = vadd.f32 %v3892, %v3336
        %v3894 = vadd.f32 %v3893, %v3339
        %v3895 = vadd.f32 %v3894, %v3344
        %v3896 = vadd.f32 %v3895, %v3347
        %v3897 = vadd.f32 %v3896, %v3352
        %v3898 = vadd.f32 %v3897, %v3355
        %v3899 = vadd.f32 %v3898, %v3360
        %v3900 = vadd.f32 %v3899, %v3363
        %v3901 = vadd.f32 %v3900, %v3368
        %v3902 = vadd.f32 %v3901, %v3371
        %v3903 = vadd.f32 %v3902, %v3376
        %v3904 = vadd.f32 %v3903, %v3379
        %v3905 = vadd.f32 %v3904, %v3384
        %v3906 = vadd.f32 %v3905, %v3387
        %v3907 = vadd.f32 %v3906, %v3392
        %v3908 = vadd.f32 %v3907, %v3395
        %v3909 = vadd.f32 %v3908, %v3400
        %v3910 = vadd.f32 %v3909, %v3403
        %v3911 = vadd.f32 %v3910, %v3408
        %v3912 = vadd.f32 %v3911, %v3411
        %v3913 = vadd.f32 %v3912, %v3416
        %v3914 = vadd.f32 %v3913, %v3419
        %v3915 = vadd.f32 %v3914, %v3424
        %v3916 = vadd.f32 %v3915, %v3427
        %v3917 = vadd.f32 %v3916, %v3432
        %v3918 = vadd.f32 %v3917, %v3435
        %v3919 = vadd.f32 %v3918, %v3440
        %v3920 = vadd.f32 %v3919, %v3443
        %v3921 = vadd.f32 %v3920, %v3448
        %v3922 = vadd.f32 %v3921, %v3451
        %v3923 = vadd.f32 %v3922, %v3456
        %v3924 = vadd.f32 %v3923, %v3459
        %v3925 = vadd.f32 %v3924, %v3464
        %v3926 = vadd.f32 %v3925, %v3467
        %v3927 = vadd.f32 %v3926, %v3472
        %v3928 = vadd.f32 %v3927, %v3475
        %v3929 = vadd.f32 %v3928, %v3480
        %v3930 = vadd.f32 %v3929, %v3483
        %v3931 = vadd.f32 %v3930, %v3488
        %v3932 = vadd.f32 %v3931, %v3491
        %v3933 = vadd.f32 %v3932, %v3496
        %v3934 = vadd.f32 %v3933, %v3499
        %v3935 = vadd.f32 %v3934, %v3504
        %v3936 = vadd.f32 %v3935, %v3507
        %v3937 = vadd.f32 %v3936, %v3512
        %v3938 = vadd.f32 %v3937, %v3515
        %v3939 = vadd.f32 %v3938, %v3520
        %v3940 = vadd.f32 %v3939, %v3523
        %v3941 = vadd.f32 %v3940, %v3528
        %v3942 = vadd.f32 %v3941, %v3531
        %v3943 = vadd.f32 %v3942, %v3536
        %v3944 = vadd.f32 %v3943, %v3539
        %v3945 = vadd.f32 %v3944, %v3544
        %v3946 = vadd.f32 %v3945, %v3547
        %v3947 = vadd.f32 %v3946, %v3552
        %v3948 = vadd.f32 %v3947, %v3555
        %v3949 = vadd.f32 %v3948, %v3560
        %v3950 = vadd.f32 %v3949, %v3563
        %v3951 = vadd.f32 %v3950, %v3568
        %v3952 = vadd.f32 %v3951, %v3571
        %v3953 = vadd.f32 %v3952, %v3576
        %v3954 = vadd.f32 %v3953, %v3579
        %v3955 = vadd.f32 %v3954, %v3584
        %v3956 = vadd.f32 %v3955, %v3587
        %v3957 = vadd.f32 %v3956, %v3592
        %v3958 = vadd.f32 %v3957, %v3595
        %v3959 = vadd.f32 %v3958, %v3600
        %v3960 = vadd.f32 %v3959, %v3603
        %v3961 = vadd.f32 %v3960, %v3608
        %v3962 = vadd.f32 %v3961, %v3611
        %v3963 = vadd.f32 %v3962, %v3616
        %v3964 = vadd.f32 %v3963, %v3619
        %v3965 = vadd.f32 %v3964, %v3624
        %v3966 = vadd.f32 %v3965, %v3627
        %v3967 = vadd.f32 %v3966, %v3632
        %v3968 = vadd.f32 %v3967, %v3635
        %v3969 = vadd.f32 %v3968, %v3640
        %v3970 = vadd.f32 %v3969, %v3643
        %v3971 = vadd.f32 %v3970, %v3648
        %v3972 = vadd.f32 %v3971, %v3651
        %v3973 = vadd.f32 %v3972, %v3656
        %v3974 = vadd.f32 %v3973, %v3659
        %v3975 = vadd.f32 %v3974, %v3664
        %v3976 = vadd.f32 %v3975, %v3667
        %v3977 = vadd.f32 %v3976, %v3672
        %v3978 = vadd.f32 %v3977, %v3675
        %v3979 = vadd.f32 %v3978, %v3680
        %v3980 = vadd.f32 %v3979, %v3683
        %v3981 = vadd.f32 %v3980, %v3688
        %v3982 = vadd.f32 %v3981, %v3691
        %v3983 = vadd.f32 %v3982, %v3696
        %v3984 = vadd.f32 %v3983, %v3699
        %v3985 = vadd.f32 %v3984, %v3704
        %v3986 = vadd.f32 %v3985, %v3707
        %v3987 = vadd.f32 %v3986, %v3712
        %v3988 = vadd.f32 %v3987, %v3715
        %v3989 = vadd.f32 %v3988, %v3720
        %v3990 = vadd.f32 %v3989, %v3723
        %v3991 = vadd.f32 %v3990, %v3728
        %v3992 = vadd.f32 %v3991, %v3731
        %v3993 = vadd.f32 %v3992, %v3736
        %v3994 = vadd.f32 %v3993, %v3739
        %v3995 = vrot.slane %v3994, 4
        %v3996 = vadd.f32 %v3994, %v3995
        %v3997 = vrot.slane %v3996, 2
        %v3998 = vadd.f32 %v3996, %v3997
        %v3999 = vrot.slane %v3998, 1
        %v4000 = vadd.f32 %v3998, %v3999
        %v4001 = vmul.f32 %v3240, %v3240
        %v4002 = vmul.f32 %v3243, %v3243
        %v4003 = vmul.f32 %v3248, %v3248
        %v4004 = vmul.f32 %v3251, %v3251
        %v4005 = vmul.f32 %v3256, %v3256
        %v4006 = vmul.f32 %v3259, %v3259
        %v4007 = vmul.f32 %v3264, %v3264
        %v4008 = vmul.f32 %v3267, %v3267
        %v4009 = vmul.f32 %v3272, %v3272
        %v4010 = vmul.f32 %v3275, %v3275
        %v4011 = vmul.f32 %v3280, %v3280
        %v4012 = vmul.f32 %v3283, %v3283
        %v4013 = vmul.f32 %v3288, %v3288
        %v4014 = vmul.f32 %v3291, %v3291
        %v4015 = vmul.f32 %v3296, %v3296
        %v4016 = vmul.f32 %v3299, %v3299
        %v4017 = vmul.f32 %v3304, %v3304
        %v4018 = vmul.f32 %v3307, %v3307
        %v4019 = vmul.f32 %v3312, %v3312
        %v4020 = vmul.f32 %v3315, %v3315
        %v4021 = vmul.f32 %v3320, %v3320
        %v4022 = vmul.f32 %v3323, %v3323
        %v4023 = vmul.f32 %v3328, %v3328
        %v4024 = vmul.f32 %v3331, %v3331
        %v4025 = vmul.f32 %v3336, %v3336
        %v4026 = vmul.f32 %v3339, %v3339
        %v4027 = vmul.f32 %v3344, %v3344
        %v4028 = vmul.f32 %v3347, %v3347
        %v4029 = vmul.f32 %v3352, %v3352
        %v4030 = vmul.f32 %v3355, %v3355
        %v4031 = vmul.f32 %v3360, %v3360
        %v4032 = vmul.f32 %v3363, %v3363
        %v4033 = vmul.f32 %v3368, %v3368
        %v4034 = vmul.f32 %v3371, %v3371
        %v4035 = vmul.f32 %v3376, %v3376
        %v4036 = vmul.f32 %v3379, %v3379
        %v4037 = vmul.f32 %v3384, %v3384
        %v4038 = vmul.f32 %v3387, %v3387
        %v4039 = vmul.f32 %v3392, %v3392
        %v4040 = vmul.f32 %v3395, %v3395
        %v4041 = vmul.f32 %v3400, %v3400
        %v4042 = vmul.f32 %v3403, %v3403
        %v4043 = vmul.f32 %v3408, %v3408
        %v4044 = vmul.f32 %v3411, %v3411
        %v4045 = vmul.f32 %v3416, %v3416
        %v4046 = vmul.f32 %v3419, %v3419
        %v4047 = vmul.f32 %v3424, %v3424
        %v4048 = vmul.f32 %v3427, %v3427
        %v4049 = vmul.f32 %v3432, %v3432
        %v4050 = vmul.f32 %v3435, %v3435
        %v4051 = vmul.f32 %v3440, %v3440
        %v4052 = vmul.f32 %v3443, %v3443
        %v4053 = vmul.f32 %v3448, %v3448
        %v4054 = vmul.f32 %v3451, %v3451
        %v4055 = vmul.f32 %v3456, %v3456
        %v4056 = vmul.f32 %v3459, %v3459
        %v4057 = vmul.f32 %v3464, %v3464
        %v4058 = vmul.f32 %v3467, %v3467
        %v4059 = vmul.f32 %v3472, %v3472
        %v4060 = vmul.f32 %v3475, %v3475
        %v4061 = vmul.f32 %v3480, %v3480
        %v4062 = vmul.f32 %v3483, %v3483
        %v4063 = vmul.f32 %v3488, %v3488
        %v4064 = vmul.f32 %v3491, %v3491
        %v4065 = vmul.f32 %v3496, %v3496
        %v4066 = vmul.f32 %v3499, %v3499
        %v4067 = vmul.f32 %v3504, %v3504
        %v4068 = vmul.f32 %v3507, %v3507
        %v4069 = vmul.f32 %v3512, %v3512
        %v4070 = vmul.f32 %v3515, %v3515
        %v4071 = vmul.f32 %v3520, %v3520
        %v4072 = vmul.f32 %v3523, %v3523
        %v4073 = vmul.f32 %v3528, %v3528
        %v4074 = vmul.f32 %v3531, %v3531
        %v4075 = vmul.f32 %v3536, %v3536
        %v4076 = vmul.f32 %v3539, %v3539
        %v4077 = vmul.f32 %v3544, %v3544
        %v4078 = vmul.f32 %v3547, %v3547
        %v4079 = vmul.f32 %v3552, %v3552
        %v4080 = vmul.f32 %v3555, %v3555
        %v4081 = vmul.f32 %v3560, %v3560
        %v4082 = vmul.f32 %v3563, %v3563
        %v4083 = vmul.f32 %v3568, %v3568
        %v4084 = vmul.f32 %v3571, %v3571
        %v4085 = vmul.f32 %v3576, %v3576
        %v4086 = vmul.f32 %v3579, %v3579
        %v4087 = vmul.f32 %v3584, %v3584
        %v4088 = vmul.f32 %v3587, %v3587
        %v4089 = vmul.f32 %v3592, %v3592
        %v4090 = vmul.f32 %v3595, %v3595
        %v4091 = vmul.f32 %v3600, %v3600
        %v4092 = vmul.f32 %v3603, %v3603
        %v4093 = vmul.f32 %v3608, %v3608
        %v4094 = vmul.f32 %v3611, %v3611
        %v4095 = vmul.f32 %v3616, %v3616
        %v4096 = vmul.f32 %v3619, %v3619
        %v4097 = vmul.f32 %v3624, %v3624
        %v4098 = vmul.f32 %v3627, %v3627
        %v4099 = vmul.f32 %v3632, %v3632
        %v4100 = vmul.f32 %v3635, %v3635
        %v4101 = vmul.f32 %v3640, %v3640
        %v4102 = vmul.f32 %v3643, %v3643
        %v4103 = vmul.f32 %v3648, %v3648
        %v4104 = vmul.f32 %v3651, %v3651
        %v4105 = vmul.f32 %v3656, %v3656
        %v4106 = vmul.f32 %v3659, %v3659
        %v4107 = vmul.f32 %v3664, %v3664
        %v4108 = vmul.f32 %v3667, %v3667
        %v4109 = vmul.f32 %v3672, %v3672
        %v4110 = vmul.f32 %v3675, %v3675
        %v4111 = vmul.f32 %v3680, %v3680
        %v4112 = vmul.f32 %v3683, %v3683
        %v4113 = vmul.f32 %v3688, %v3688
        %v4114 = vmul.f32 %v3691, %v3691
        %v4115 = vmul.f32 %v3696, %v3696
        %v4116 = vmul.f32 %v3699, %v3699
        %v4117 = vmul.f32 %v3704, %v3704
        %v4118 = vmul.f32 %v3707, %v3707
        %v4119 = vmul.f32 %v3712, %v3712
        %v4120 = vmul.f32 %v3715, %v3715
        %v4121 = vmul.f32 %v3720, %v3720
        %v4122 = vmul.f32 %v3723, %v3723
        %v4123 = vmul.f32 %v3728, %v3728
        %v4124 = vmul.f32 %v3731, %v3731
        %v4125 = vmul.f32 %v3736, %v3736
        %v4126 = vmul.f32 %v3739, %v3739
        %v4127 = vadd.f32 %v4001, %v4002
        %v4128 = vadd.f32 %v4127, %v4003
        %v4129 = vadd.f32 %v4128, %v4004
        %v4130 = vadd.f32 %v4129, %v4005
        %v4131 = vadd.f32 %v4130, %v4006
        %v4132 = vadd.f32 %v4131, %v4007
        %v4133 = vadd.f32 %v4132, %v4008
        %v4134 = vadd.f32 %v4133, %v4009
        %v4135 = vadd.f32 %v4134, %v4010
        %v4136 = vadd.f32 %v4135, %v4011
        %v4137 = vadd.f32 %v4136, %v4012
        %v4138 = vadd.f32 %v4137, %v4013
        %v4139 = vadd.f32 %v4138, %v4014
        %v4140 = vadd.f32 %v4139, %v4015
        %v4141 = vadd.f32 %v4140, %v4016
        %v4142 = vadd.f32 %v4141, %v4017
        %v4143 = vadd.f32 %v4142, %v4018
        %v4144 = vadd.f32 %v4143, %v4019
        %v4145 = vadd.f32 %v4144, %v4020
        %v4146 = vadd.f32 %v4145, %v4021
        %v4147 = vadd.f32 %v4146, %v4022
        %v4148 = vadd.f32 %v4147, %v4023
        %v4149 = vadd.f32 %v4148, %v4024
        %v4150 = vadd.f32 %v4149, %v4025
        %v4151 = vadd.f32 %v4150, %v4026
        %v4152 = vadd.f32 %v4151, %v4027
        %v4153 = vadd.f32 %v4152, %v4028
        %v4154 = vadd.f32 %v4153, %v4029
        %v4155 = vadd.f32 %v4154, %v4030
        %v4156 = vadd.f32 %v4155, %v4031
        %v4157 = vadd.f32 %v4156, %v4032
        %v4158 = vadd.f32 %v4157, %v4033
        %v4159 = vadd.f32 %v4158, %v4034
        %v4160 = vadd.f32 %v4159, %v4035
        %v4161 = vadd.f32 %v4160, %v4036
        %v4162 = vadd.f32 %v4161, %v4037
        %v4163 = vadd.f32 %v4162, %v4038
        %v4164 = vadd.f32 %v4163, %v4039
        %v4165 = vadd.f32 %v4164, %v4040
        %v4166 = vadd.f32 %v4165, %v4041
        %v4167 = vadd.f32 %v4166, %v4042
        %v4168 = vadd.f32 %v4167, %v4043
        %v4169 = vadd.f32 %v4168, %v4044
        %v4170 = vadd.f32 %v4169, %v4045
        %v4171 = vadd.f32 %v4170, %v4046
        %v4172 = vadd.f32 %v4171, %v4047
        %v4173 = vadd.f32 %v4172, %v4048
        %v4174 = vadd.f32 %v4173, %v4049
        %v4175 = vadd.f32 %v4174, %v4050
        %v4176 = vadd.f32 %v4175, %v4051
        %v4177 = vadd.f32 %v4176, %v4052
        %v4178 = vadd.f32 %v4177, %v4053
        %v4179 = vadd.f32 %v4178, %v4054
        %v4180 = vadd.f32 %v4179, %v4055
        %v4181 = vadd.f32 %v4180, %v4056
        %v4182 = vadd.f32 %v4181, %v4057
        %v4183 = vadd.f32 %v4182, %v4058
        %v4184 = vadd.f32 %v4183, %v4059
        %v4185 = vadd.f32 %v4184, %v4060
        %v4186 = vadd.f32 %v4185, %v4061
        %v4187 = vadd.f32 %v4186, %v4062
        %v4188 = vadd.f32 %v4187, %v4063
        %v4189 = vadd.f32 %v4188, %v4064
        %v4190 = vadd.f32 %v4189, %v4065
        %v4191 = vadd.f32 %v4190, %v4066
        %v4192 = vadd.f32 %v4191, %v4067
        %v4193 = vadd.f32 %v4192, %v4068
        %v4194 = vadd.f32 %v4193, %v4069
        %v4195 = vadd.f32 %v4194, %v4070
        %v4196 = vadd.f32 %v4195, %v4071
        %v4197 = vadd.f32 %v4196, %v4072
        %v4198 = vadd.f32 %v4197, %v4073
        %v4199 = vadd.f32 %v4198, %v4074
        %v4200 = vadd.f32 %v4199, %v4075
        %v4201 = vadd.f32 %v4200, %v4076
        %v4202 = vadd.f32 %v4201, %v4077
        %v4203 = vadd.f32 %v4202, %v4078
        %v4204 = vadd.f32 %v4203, %v4079
        %v4205 = vadd.f32 %v4204, %v4080
        %v4206 = vadd.f32 %v4205, %v4081
        %v4207 = vadd.f32 %v4206, %v4082
        %v4208 = vadd.f32 %v4207, %v4083
        %v4209 = vadd.f32 %v4208, %v4084
        %v4210 = vadd.f32 %v4209, %v4085
        %v4211 = vadd.f32 %v4210, %v4086
        %v4212 = vadd.f32 %v4211, %v4087
        %v4213 = vadd.f32 %v4212, %v4088
        %v4214 = vadd.f32 %v4213, %v4089
        %v4215 = vadd.f32 %v4214, %v4090
        %v4216 = vadd.f32 %v4215, %v4091
        %v4217 = vadd.f32 %v4216, %v4092
        %v4218 = vadd.f32 %v4217, %v4093
        %v4219 = vadd.f32 %v4218, %v4094
        %v4220 = vadd.f32 %v4219, %v4095
        %v4221 = vadd.f32 %v4220, %v4096
        %v4222 = vadd.f32 %v4221, %v4097
        %v4223 = vadd.f32 %v4222, %v4098
        %v4224 = vadd.f32 %v4223, %v4099
        %v4225 = vadd.f32 %v4224, %v4100
        %v4226 = vadd.f32 %v4225, %v4101
        %v4227 = vadd.f32 %v4226, %v4102
        %v4228 = vadd.f32 %v4227, %v4103
        %v4229 = vadd.f32 %v4228, %v4104
        %v4230 = vadd.f32 %v4229, %v4105
        %v4231 = vadd.f32 %v4230, %v4106
        %v4232 = vadd.f32 %v4231, %v4107
        %v4233 = vadd.f32 %v4232, %v4108
        %v4234 = vadd.f32 %v4233, %v4109
        %v4235 = vadd.f32 %v4234, %v4110
        %v4236 = vadd.f32 %v4235, %v4111
        %v4237 = vadd.f32 %v4236, %v4112
        %v4238 = vadd.f32 %v4237, %v4113
        %v4239 = vadd.f32 %v4238, %v4114
        %v4240 = vadd.f32 %v4239, %v4115
        %v4241 = vadd.f32 %v4240, %v4116
        %v4242 = vadd.f32 %v4241, %v4117
        %v4243 = vadd.f32 %v4242, %v4118
        %v4244 = vadd.f32 %v4243, %v4119
        %v4245 = vadd.f32 %v4244, %v4120
        %v4246 = vadd.f32 %v4245, %v4121
        %v4247 = vadd.f32 %v4246, %v4122
        %v4248 = vadd.f32 %v4247, %v4123
        %v4249 = vadd.f32 %v4248, %v4124
        %v4250 = vadd.f32 %v4249, %v4125
        %v4251 = vadd.f32 %v4250, %v4126
        %v4252 = vrot.slane %v4251, 4
        %v4253 = vadd.f32 %v4251, %v4252
        %v4254 = vrot.slane %v4253, 2
        %v4255 = vadd.f32 %v4253, %v4254
        %v4256 = vrot.slane %v4255, 1
        %v4257 = vadd.f32 %v4255, %v4256
        %vm4258 = vcmask 1040384
        %v4259 = vsel %vm4258, %v4000, %v4257
        %v4260 = vadd.f32 %v3869, %v4259
        %4261 = vst [vmem:[#allocation5] sm:$0x3] %v4260
      $region52: #{apply_node_func.1} parent=39 // pred_fallthru
        _
      %p4262 = scmp.eq.s32.totalorder %s20, 2
      // Predicated region
      $region57: #{apply_node_func.1} parent=39 // pred_check
        %p4263 = pneg %p4262
      $region58: #{apply_node_func.1} parent=39 // pred_check_branch
        %4265 = sbr.rel (%p4263) target = $region60
      $region59: #{apply_node_func.1} parent=39 // pred_region
        %p4266 = scmp.eq.s32.totalorder %s21, 0
        // Predicated region
        $region61: #{apply_node_func.1} parent=59 // pred_check
          %p4267 = pneg %p4266
        $region62: #{apply_node_func.1} parent=59 // pred_check_branch
          %4269 = sbr.rel (%p4267) target = $region64
        $region63: #{apply_node_func.1} parent=59 // pred_region
          %v4270 = vld [vmem:[#allocation5] sm:$0x1]
          %v4271 = vmul.f32 %v4270, 0.000999001
          %v4272 = vld [vmem:[#allocation5 + $0x1] sm:$0x1]
          %v4273 = vmul.f32 %v4272, 0.000999001
          %v4274 = vmul.f32 %v4271, %v4271
          %v4275 = vsub.f32 %v4273, %v4274
          %v4276 = vmax.f32 %v4275, 0.0
          %v4277 = vld [vmem:[%s4] sm:$0x1]
          %v4278 = vadd.f32 %v4276, 1e-05
          %v4279 = vrsqrt.pop %v4278
          %v4280 = vmul.f32 %v4277, %v4279
          %v4281 = vld [vmem:[%s4 + $0x1] sm:$0x1]
          %v4282 = vmul.f32 %v4271, %v4280
          %v4283 = vsub.f32 %v4281, %v4282
          %v4285 = vrot.slane %v4283, 7
          %vm4287 = vcmask 1040384
          %v4288 = vsel %vm4287, %v4280, %v4285
          %4289 = vst [vmem:[#allocation7] sm:$0x3] %v4288
        $region64: #{apply_node_func.1} parent=59 // pred_fallthru
          _
        %s4290 = smul.u32 %s21, 1008
        %s4291 = scalar_lea.vmem [#allocation3], %s4290
        %v4292 = vld [vmem:[%s4291] sm:$0xff]
        %v4293 = vld [vmem:[%s4291 + $0x8] sm:$0xff]
        %v4294 = vld [vmem:[%s4291 + $0x10] sm:$0xff]
        %v4295 = vld [vmem:[%s4291 + $0x18] sm:$0xff]
        %v4296 = vld [vmem:[%s4291 + $0x20] sm:$0xff]
        %v4297 = vld [vmem:[%s4291 + $0x28] sm:$0xff]
        %v4298 = vld [vmem:[%s4291 + $0x30] sm:$0xff]
        %v4299 = vld [vmem:[%s4291 + $0x38] sm:$0xff]
        %v4300 = vld [vmem:[%s4291 + $0x40] sm:$0xff]
        %v4301 = vld [vmem:[%s4291 + $0x48] sm:$0xff]
        %v4302 = vld [vmem:[%s4291 + $0x50] sm:$0xff]
        %v4303 = vld [vmem:[%s4291 + $0x58] sm:$0xff]
        %v4304 = vld [vmem:[%s4291 + $0x60] sm:$0xff]
        %v4305 = vld [vmem:[%s4291 + $0x68] sm:$0xff]
        %v4306 = vld [vmem:[%s4291 + $0x70] sm:$0xff]
        %v4307 = vld [vmem:[%s4291 + $0x78] sm:$0xff]
        %v4308 = vld [vmem:[%s4291 + $0x80] sm:$0xff]
        %v4309 = vld [vmem:[%s4291 + $0x88] sm:$0xff]
        %v4310 = vld [vmem:[%s4291 + $0x90] sm:$0xff]
        %v4311 = vld [vmem:[%s4291 + $0x98] sm:$0xff]
        %v4312 = vld [vmem:[%s4291 + $0xa0] sm:$0xff]
        %v4313 = vld [vmem:[%s4291 + $0xa8] sm:$0xff]
        %v4314 = vld [vmem:[%s4291 + $0xb0] sm:$0xff]
        %v4315 = vld [vmem:[%s4291 + $0xb8] sm:$0xff]
        %v4316 = vld [vmem:[%s4291 + $0xc0] sm:$0xff]
        %v4317 = vld [vmem:[%s4291 + $0xc8] sm:$0xff]
        %v4318 = vld [vmem:[%s4291 + $0xd0] sm:$0xff]
        %v4319 = vld [vmem:[%s4291 + $0xd8] sm:$0xff]
        %v4320 = vld [vmem:[%s4291 + $0xe0] sm:$0xff]
        %v4321 = vld [vmem:[%s4291 + $0xe8] sm:$0xff]
        %v4322 = vld [vmem:[%s4291 + $0xf0] sm:$0xff]
        %v4323 = vld [vmem:[%s4291 + $0xf8] sm:$0xff]
        %v4324 = vld [vmem:[%s4291 + $0x100] sm:$0xff]
        %v4325 = vld [vmem:[%s4291 + $0x108] sm:$0xff]
        %v4326 = vld [vmem:[%s4291 + $0x110] sm:$0xff]
        %v4327 = vld [vmem:[%s4291 + $0x118] sm:$0xff]
        %v4328 = vld [vmem:[%s4291 + $0x120] sm:$0xff]
        %v4329 = vld [vmem:[%s4291 + $0x128] sm:$0xff]
        %v4330 = vld [vmem:[%s4291 + $0x130] sm:$0xff]
        %v4331 = vld [vmem:[%s4291 + $0x138] sm:$0xff]
        %v4332 = vld [vmem:[%s4291 + $0x140] sm:$0xff]
        %v4333 = vld [vmem:[%s4291 + $0x148] sm:$0xff]
        %v4334 = vld [vmem:[%s4291 + $0x150] sm:$0xff]
        %v4335 = vld [vmem:[%s4291 + $0x158] sm:$0xff]
        %v4336 = vld [vmem:[%s4291 + $0x160] sm:$0xff]
        %v4337 = vld [vmem:[%s4291 + $0x168] sm:$0xff]
        %v4338 = vld [vmem:[%s4291 + $0x170] sm:$0xff]
        %v4339 = vld [vmem:[%s4291 + $0x178] sm:$0xff]
        %v4340 = vld [vmem:[%s4291 + $0x180] sm:$0xff]
        %v4341 = vld [vmem:[%s4291 + $0x188] sm:$0xff]
        %v4342 = vld [vmem:[%s4291 + $0x190] sm:$0xff]
        %v4343 = vld [vmem:[%s4291 + $0x198] sm:$0xff]
        %v4344 = vld [vmem:[%s4291 + $0x1a0] sm:$0xff]
        %v4345 = vld [vmem:[%s4291 + $0x1a8] sm:$0xff]
        %v4346 = vld [vmem:[%s4291 + $0x1b0] sm:$0xff]
        %v4347 = vld [vmem:[%s4291 + $0x1b8] sm:$0xff]
        %v4348 = vld [vmem:[%s4291 + $0x1c0] sm:$0xff]
        %v4349 = vld [vmem:[%s4291 + $0x1c8] sm:$0xff]
        %v4350 = vld [vmem:[%s4291 + $0x1d0] sm:$0xff]
        %v4351 = vld [vmem:[%s4291 + $0x1d8] sm:$0xff]
        %v4352 = vld [vmem:[%s4291 + $0x1e0] sm:$0xff]
        %v4353 = vld [vmem:[%s4291 + $0x1e8] sm:$0xff]
        %v4354 = vld [vmem:[%s4291 + $0x1f0] sm:$0xff]
        %v4355 = vld [vmem:[%s4291 + $0x1f8] sm:$0xff]
        %v4356 = vld [vmem:[%s4291 + $0x200] sm:$0xff]
        %v4357 = vld [vmem:[%s4291 + $0x208] sm:$0xff]
        %v4358 = vld [vmem:[%s4291 + $0x210] sm:$0xff]
        %v4359 = vld [vmem:[%s4291 + $0x218] sm:$0xff]
        %v4360 = vld [vmem:[%s4291 + $0x220] sm:$0xff]
        %v4361 = vld [vmem:[%s4291 + $0x228] sm:$0xff]
        %v4362 = vld [vmem:[%s4291 + $0x230] sm:$0xff]
        %v4363 = vld [vmem:[%s4291 + $0x238] sm:$0xff]
        %v4364 = vld [vmem:[%s4291 + $0x240] sm:$0xff]
        %v4365 = vld [vmem:[%s4291 + $0x248] sm:$0xff]
        %v4366 = vld [vmem:[%s4291 + $0x250] sm:$0xff]
        %v4367 = vld [vmem:[%s4291 + $0x258] sm:$0xff]
        %v4368 = vld [vmem:[%s4291 + $0x260] sm:$0xff]
        %v4369 = vld [vmem:[%s4291 + $0x268] sm:$0xff]
        %v4370 = vld [vmem:[%s4291 + $0x270] sm:$0xff]
        %v4371 = vld [vmem:[%s4291 + $0x278] sm:$0xff]
        %v4372 = vld [vmem:[%s4291 + $0x280] sm:$0xff]
        %v4373 = vld [vmem:[%s4291 + $0x288] sm:$0xff]
        %v4374 = vld [vmem:[%s4291 + $0x290] sm:$0xff]
        %v4375 = vld [vmem:[%s4291 + $0x298] sm:$0xff]
        %v4376 = vld [vmem:[%s4291 + $0x2a0] sm:$0xff]
        %v4377 = vld [vmem:[%s4291 + $0x2a8] sm:$0xff]
        %v4378 = vld [vmem:[%s4291 + $0x2b0] sm:$0xff]
        %v4379 = vld [vmem:[%s4291 + $0x2b8] sm:$0xff]
        %v4380 = vld [vmem:[%s4291 + $0x2c0] sm:$0xff]
        %v4381 = vld [vmem:[%s4291 + $0x2c8] sm:$0xff]
        %v4382 = vld [vmem:[%s4291 + $0x2d0] sm:$0xff]
        %v4383 = vld [vmem:[%s4291 + $0x2d8] sm:$0xff]
        %v4384 = vld [vmem:[%s4291 + $0x2e0] sm:$0xff]
        %v4385 = vld [vmem:[%s4291 + $0x2e8] sm:$0xff]
        %v4386 = vld [vmem:[%s4291 + $0x2f0] sm:$0xff]
        %v4387 = vld [vmem:[%s4291 + $0x2f8] sm:$0xff]
        %v4388 = vld [vmem:[%s4291 + $0x300] sm:$0xff]
        %v4389 = vld [vmem:[%s4291 + $0x308] sm:$0xff]
        %v4390 = vld [vmem:[%s4291 + $0x310] sm:$0xff]
        %v4391 = vld [vmem:[%s4291 + $0x318] sm:$0xff]
        %v4392 = vld [vmem:[%s4291 + $0x320] sm:$0xff]
        %v4393 = vld [vmem:[%s4291 + $0x328] sm:$0xff]
        %v4394 = vld [vmem:[%s4291 + $0x330] sm:$0xff]
        %v4395 = vld [vmem:[%s4291 + $0x338] sm:$0xff]
        %v4396 = vld [vmem:[%s4291 + $0x340] sm:$0xff]
        %v4397 = vld [vmem:[%s4291 + $0x348] sm:$0xff]
        %v4398 = vld [vmem:[%s4291 + $0x350] sm:$0xff]
        %v4399 = vld [vmem:[%s4291 + $0x358] sm:$0xff]
        %v4400 = vld [vmem:[%s4291 + $0x360] sm:$0xff]
        %v4401 = vld [vmem:[%s4291 + $0x368] sm:$0xff]
        %v4402 = vld [vmem:[%s4291 + $0x370] sm:$0xff]
        %v4403 = vld [vmem:[%s4291 + $0x378] sm:$0xff]
        %v4404 = vld [vmem:[%s4291 + $0x380] sm:$0xff]
        %v4405 = vld [vmem:[%s4291 + $0x388] sm:$0xff]
        %v4406 = vld [vmem:[%s4291 + $0x390] sm:$0xff]
        %v4407 = vld [vmem:[%s4291 + $0x398] sm:$0xff]
        %v4408 = vld [vmem:[%s4291 + $0x3a0] sm:$0xff]
        %v4409 = vld [vmem:[%s4291 + $0x3a8] sm:$0xff]
        %v4410 = vld [vmem:[%s4291 + $0x3b0] sm:$0xff]
        %v4411 = vld [vmem:[%s4291 + $0x3b8] sm:$0xff]
        %v4412 = vld [vmem:[%s4291 + $0x3c0] sm:$0xff]
        %v4413 = vld [vmem:[%s4291 + $0x3c8] sm:$0xff]
        %v4414 = vld [vmem:[%s4291 + $0x3d0] sm:$0xff]
        %v4415 = vld [vmem:[%s4291 + $0x3d8] sm:$0xff]
        %v4416 = vld [vmem:[%s4291 + $0x3e0] sm:$0xff]
        %v4417 = vld [vmem:[%s4291 + $0x3e8] sm:$0xff]
        %v4418 = vld [vmem:[#allocation7] sm:$0x1]
        %v4419 = vlaneseq
        %v4420 = vshrl.u32 %v4419, 7
        %v4421 = vsub.s32 0, %v4420
        %v4422 = vrot.slane %v4418, %v4421
        %v4423 = vmul.f32 %v4292, %v4422
        %v4424 = vmul.f32 %v4293, %v4422
        %v4425 = vmul.f32 %v4294, %v4422
        %v4426 = vmul.f32 %v4295, %v4422
        %v4427 = vmul.f32 %v4296, %v4422
        %v4428 = vmul.f32 %v4297, %v4422
        %v4429 = vmul.f32 %v4298, %v4422
        %v4430 = vmul.f32 %v4299, %v4422
        %v4431 = vmul.f32 %v4300, %v4422
        %v4432 = vmul.f32 %v4301, %v4422
        %v4433 = vmul.f32 %v4302, %v4422
        %v4434 = vmul.f32 %v4303, %v4422
        %v4435 = vmul.f32 %v4304, %v4422
        %v4436 = vmul.f32 %v4305, %v4422
        %v4437 = vmul.f32 %v4306, %v4422
        %v4438 = vmul.f32 %v4307, %v4422
        %v4439 = vmul.f32 %v4308, %v4422
        %v4440 = vmul.f32 %v4309, %v4422
        %v4441 = vmul.f32 %v4310, %v4422
        %v4442 = vmul.f32 %v4311, %v4422
        %v4443 = vmul.f32 %v4312, %v4422
        %v4444 = vmul.f32 %v4313, %v4422
        %v4445 = vmul.f32 %v4314, %v4422
        %v4446 = vmul.f32 %v4315, %v4422
        %v4447 = vmul.f32 %v4316, %v4422
        %v4448 = vmul.f32 %v4317, %v4422
        %v4449 = vmul.f32 %v4318, %v4422
        %v4450 = vmul.f32 %v4319, %v4422
        %v4451 = vmul.f32 %v4320, %v4422
        %v4452 = vmul.f32 %v4321, %v4422
        %v4453 = vmul.f32 %v4322, %v4422
        %v4454 = vmul.f32 %v4323, %v4422
        %v4455 = vmul.f32 %v4324, %v4422
        %v4456 = vmul.f32 %v4325, %v4422
        %v4457 = vmul.f32 %v4326, %v4422
        %v4458 = vmul.f32 %v4327, %v4422
        %v4459 = vmul.f32 %v4328, %v4422
        %v4460 = vmul.f32 %v4329, %v4422
        %v4461 = vmul.f32 %v4330, %v4422
        %v4462 = vmul.f32 %v4331, %v4422
        %v4463 = vmul.f32 %v4332, %v4422
        %v4464 = vmul.f32 %v4333, %v4422
        %v4465 = vmul.f32 %v4334, %v4422
        %v4466 = vmul.f32 %v4335, %v4422
        %v4467 = vmul.f32 %v4336, %v4422
        %v4468 = vmul.f32 %v4337, %v4422
        %v4469 = vmul.f32 %v4338, %v4422
        %v4470 = vmul.f32 %v4339, %v4422
        %v4471 = vmul.f32 %v4340, %v4422
        %v4472 = vmul.f32 %v4341, %v4422
        %v4473 = vmul.f32 %v4342, %v4422
        %v4474 = vmul.f32 %v4343, %v4422
        %v4475 = vmul.f32 %v4344, %v4422
        %v4476 = vmul.f32 %v4345, %v4422
        %v4477 = vmul.f32 %v4346, %v4422
        %v4478 = vmul.f32 %v4347, %v4422
        %v4479 = vmul.f32 %v4348, %v4422
        %v4480 = vmul.f32 %v4349, %v4422
        %v4481 = vmul.f32 %v4350, %v4422
        %v4482 = vmul.f32 %v4351, %v4422
        %v4483 = vmul.f32 %v4352, %v4422
        %v4484 = vmul.f32 %v4353, %v4422
        %v4485 = vmul.f32 %v4354, %v4422
        %v4486 = vmul.f32 %v4355, %v4422
        %v4487 = vmul.f32 %v4356, %v4422
        %v4488 = vmul.f32 %v4357, %v4422
        %v4489 = vmul.f32 %v4358, %v4422
        %v4490 = vmul.f32 %v4359, %v4422
        %v4491 = vmul.f32 %v4360, %v4422
        %v4492 = vmul.f32 %v4361, %v4422
        %v4493 = vmul.f32 %v4362, %v4422
        %v4494 = vmul.f32 %v4363, %v4422
        %v4495 = vmul.f32 %v4364, %v4422
        %v4496 = vmul.f32 %v4365, %v4422
        %v4497 = vmul.f32 %v4366, %v4422
        %v4498 = vmul.f32 %v4367, %v4422
        %v4499 = vmul.f32 %v4368, %v4422
        %v4500 = vmul.f32 %v4369, %v4422
        %v4501 = vmul.f32 %v4370, %v4422
        %v4502 = vmul.f32 %v4371, %v4422
        %v4503 = vmul.f32 %v4372, %v4422
        %v4504 = vmul.f32 %v4373, %v4422
        %v4505 = vmul.f32 %v4374, %v4422
        %v4506 = vmul.f32 %v4375, %v4422
        %v4507 = vmul.f32 %v4376, %v4422
        %v4508 = vmul.f32 %v4377, %v4422
        %v4509 = vmul.f32 %v4378, %v4422
        %v4510 = vmul.f32 %v4379, %v4422
        %v4511 = vmul.f32 %v4380, %v4422
        %v4512 = vmul.f32 %v4381, %v4422
        %v4513 = vmul.f32 %v4382, %v4422
        %v4514 = vmul.f32 %v4383, %v4422
        %v4515 = vmul.f32 %v4384, %v4422
        %v4516 = vmul.f32 %v4385, %v4422
        %v4517 = vmul.f32 %v4386, %v4422
        %v4518 = vmul.f32 %v4387, %v4422
        %v4519 = vmul.f32 %v4388, %v4422
        %v4520 = vmul.f32 %v4389, %v4422
        %v4521 = vmul.f32 %v4390, %v4422
        %v4522 = vmul.f32 %v4391, %v4422
        %v4523 = vmul.f32 %v4392, %v4422
        %v4524 = vmul.f32 %v4393, %v4422
        %v4525 = vmul.f32 %v4394, %v4422
        %v4526 = vmul.f32 %v4395, %v4422
        %v4527 = vmul.f32 %v4396, %v4422
        %v4528 = vmul.f32 %v4397, %v4422
        %v4529 = vmul.f32 %v4398, %v4422
        %v4530 = vmul.f32 %v4399, %v4422
        %v4531 = vmul.f32 %v4400, %v4422
        %v4532 = vmul.f32 %v4401, %v4422
        %v4533 = vmul.f32 %v4402, %v4422
        %v4534 = vmul.f32 %v4403, %v4422
        %v4535 = vmul.f32 %v4404, %v4422
        %v4536 = vmul.f32 %v4405, %v4422
        %v4537 = vmul.f32 %v4406, %v4422
        %v4538 = vmul.f32 %v4407, %v4422
        %v4539 = vmul.f32 %v4408, %v4422
        %v4540 = vmul.f32 %v4409, %v4422
        %v4541 = vmul.f32 %v4410, %v4422
        %v4542 = vmul.f32 %v4411, %v4422
        %v4543 = vmul.f32 %v4412, %v4422
        %v4544 = vmul.f32 %v4413, %v4422
        %v4545 = vmul.f32 %v4414, %v4422
        %v4546 = vmul.f32 %v4415, %v4422
        %v4547 = vmul.f32 %v4416, %v4422
        %v4548 = vmul.f32 %v4417, %v4422
        %v4549 = vld [vmem:[#allocation7 + $0x1] sm:$0x1]
        %v4550 = vlaneseq
        %v4551 = vshrl.u32 %v4550, 7
        %v4552 = vsub.s32 0, %v4551
        %v4553 = vrot.slane %v4549, %v4552
        %v4554 = vadd.f32 %v4423, %v4553
        %v4555 = vadd.f32 %v4424, %v4553
        %v4556 = vadd.f32 %v4425, %v4553
        %v4557 = vadd.f32 %v4426, %v4553
        %v4558 = vadd.f32 %v4427, %v4553
        %v4559 = vadd.f32 %v4428, %v4553
        %v4560 = vadd.f32 %v4429, %v4553
        %v4561 = vadd.f32 %v4430, %v4553
        %v4562 = vadd.f32 %v4431, %v4553
        %v4563 = vadd.f32 %v4432, %v4553
        %v4564 = vadd.f32 %v4433, %v4553
        %v4565 = vadd.f32 %v4434, %v4553
        %v4566 = vadd.f32 %v4435, %v4553
        %v4567 = vadd.f32 %v4436, %v4553
        %v4568 = vadd.f32 %v4437, %v4553
        %v4569 = vadd.f32 %v4438, %v4553
        %v4570 = vadd.f32 %v4439, %v4553
        %v4571 = vadd.f32 %v4440, %v4553
        %v4572 = vadd.f32 %v4441, %v4553
        %v4573 = vadd.f32 %v4442, %v4553
        %v4574 = vadd.f32 %v4443, %v4553
        %v4575 = vadd.f32 %v4444, %v4553
        %v4576 = vadd.f32 %v4445, %v4553
        %v4577 = vadd.f32 %v4446, %v4553
        %v4578 = vadd.f32 %v4447, %v4553
        %v4579 = vadd.f32 %v4448, %v4553
        %v4580 = vadd.f32 %v4449, %v4553
        %v4581 = vadd.f32 %v4450, %v4553
        %v4582 = vadd.f32 %v4451, %v4553
        %v4583 = vadd.f32 %v4452, %v4553
        %v4584 = vadd.f32 %v4453, %v4553
        %v4585 = vadd.f32 %v4454, %v4553
        %v4586 = vadd.f32 %v4455, %v4553
        %v4587 = vadd.f32 %v4456, %v4553
        %v4588 = vadd.f32 %v4457, %v4553
        %v4589 = vadd.f32 %v4458, %v4553
        %v4590 = vadd.f32 %v4459, %v4553
        %v4591 = vadd.f32 %v4460, %v4553
        %v4592 = vadd.f32 %v4461, %v4553
        %v4593 = vadd.f32 %v4462, %v4553
        %v4594 = vadd.f32 %v4463, %v4553
        %v4595 = vadd.f32 %v4464, %v4553
        %v4596 = vadd.f32 %v4465, %v4553
        %v4597 = vadd.f32 %v4466, %v4553
        %v4598 = vadd.f32 %v4467, %v4553
        %v4599 = vadd.f32 %v4468, %v4553
        %v4600 = vadd.f32 %v4469, %v4553
        %v4601 = vadd.f32 %v4470, %v4553
        %v4602 = vadd.f32 %v4471, %v4553
        %v4603 = vadd.f32 %v4472, %v4553
        %v4604 = vadd.f32 %v4473, %v4553
        %v4605 = vadd.f32 %v4474, %v4553
        %v4606 = vadd.f32 %v4475, %v4553
        %v4607 = vadd.f32 %v4476, %v4553
        %v4608 = vadd.f32 %v4477, %v4553
        %v4609 = vadd.f32 %v4478, %v4553
        %v4610 = vadd.f32 %v4479, %v4553
        %v4611 = vadd.f32 %v4480, %v4553
        %v4612 = vadd.f32 %v4481, %v4553
        %v4613 = vadd.f32 %v4482, %v4553
        %v4614 = vadd.f32 %v4483, %v4553
        %v4615 = vadd.f32 %v4484, %v4553
        %v4616 = vadd.f32 %v4485, %v4553
        %v4617 = vadd.f32 %v4486, %v4553
        %v4618 = vadd.f32 %v4487, %v4553
        %v4619 = vadd.f32 %v4488, %v4553
        %v4620 = vadd.f32 %v4489, %v4553
        %v4621 = vadd.f32 %v4490, %v4553
        %v4622 = vadd.f32 %v4491, %v4553
        %v4623 = vadd.f32 %v4492, %v4553
        %v4624 = vadd.f32 %v4493, %v4553
        %v4625 = vadd.f32 %v4494, %v4553
        %v4626 = vadd.f32 %v4495, %v4553
        %v4627 = vadd.f32 %v4496, %v4553
        %v4628 = vadd.f32 %v4497, %v4553
        %v4629 = vadd.f32 %v4498, %v4553
        %v4630 = vadd.f32 %v4499, %v4553
        %v4631 = vadd.f32 %v4500, %v4553
        %v4632 = vadd.f32 %v4501, %v4553
        %v4633 = vadd.f32 %v4502, %v4553
        %v4634 = vadd.f32 %v4503, %v4553
        %v4635 = vadd.f32 %v4504, %v4553
        %v4636 = vadd.f32 %v4505, %v4553
        %v4637 = vadd.f32 %v4506, %v4553
        %v4638 = vadd.f32 %v4507, %v4553
        %v4639 = vadd.f32 %v4508, %v4553
        %v4640 = vadd.f32 %v4509, %v4553
        %v4641 = vadd.f32 %v4510, %v4553
        %v4642 = vadd.f32 %v4511, %v4553
        %v4643 = vadd.f32 %v4512, %v4553
        %v4644 = vadd.f32 %v4513, %v4553
        %v4645 = vadd.f32 %v4514, %v4553
        %v4646 = vadd.f32 %v4515, %v4553
        %v4647 = vadd.f32 %v4516, %v4553
        %v4648 = vadd.f32 %v4517, %v4553
        %v4649 = vadd.f32 %v4518, %v4553
        %v4650 = vadd.f32 %v4519, %v4553
        %v4651 = vadd.f32 %v4520, %v4553
        %v4652 = vadd.f32 %v4521, %v4553
        %v4653 = vadd.f32 %v4522, %v4553
        %v4654 = vadd.f32 %v4523, %v4553
        %v4655 = vadd.f32 %v4524, %v4553
        %v4656 = vadd.f32 %v4525, %v4553
        %v4657 = vadd.f32 %v4526, %v4553
        %v4658 = vadd.f32 %v4527, %v4553
        %v4659 = vadd.f32 %v4528, %v4553
        %v4660 = vadd.f32 %v4529, %v4553
        %v4661 = vadd.f32 %v4530, %v4553
        %v4662 = vadd.f32 %v4531, %v4553
        %v4663 = vadd.f32 %v4532, %v4553
        %v4664 = vadd.f32 %v4533, %v4553
        %v4665 = vadd.f32 %v4534, %v4553
        %v4666 = vadd.f32 %v4535, %v4553
        %v4667 = vadd.f32 %v4536, %v4553
        %v4668 = vadd.f32 %v4537, %v4553
        %v4669 = vadd.f32 %v4538, %v4553
        %v4670 = vadd.f32 %v4539, %v4553
        %v4671 = vadd.f32 %v4540, %v4553
        %v4672 = vadd.f32 %v4541, %v4553
        %v4673 = vadd.f32 %v4542, %v4553
        %v4674 = vadd.f32 %v4543, %v4553
        %v4675 = vadd.f32 %v4544, %v4553
        %v4676 = vadd.f32 %v4545, %v4553
        %v4677 = vadd.f32 %v4546, %v4553
        %v4678 = vadd.f32 %v4547, %v4553
        %v4679 = vadd.f32 %v4548, %v4553
        %v4680 = vmax.f32 %v4554, 0.0
        %v4681 = vmax.f32 %v4555, 0.0
        %v4682 = vmax.f32 %v4556, 0.0
        %v4683 = vmax.f32 %v4557, 0.0
        %v4684 = vmax.f32 %v4558, 0.0
        %v4685 = vmax.f32 %v4559, 0.0
        %v4686 = vmax.f32 %v4560, 0.0
        %v4687 = vmax.f32 %v4561, 0.0
        %v4688 = vmax.f32 %v4562, 0.0
        %v4689 = vmax.f32 %v4563, 0.0
        %v4690 = vmax.f32 %v4564, 0.0
        %v4691 = vmax.f32 %v4565, 0.0
        %v4692 = vmax.f32 %v4566, 0.0
        %v4693 = vmax.f32 %v4567, 0.0
        %v4694 = vmax.f32 %v4568, 0.0
        %v4695 = vmax.f32 %v4569, 0.0
        %v4696 = vmax.f32 %v4570, 0.0
        %v4697 = vmax.f32 %v4571, 0.0
        %v4698 = vmax.f32 %v4572, 0.0
        %v4699 = vmax.f32 %v4573, 0.0
        %v4700 = vmax.f32 %v4574, 0.0
        %v4701 = vmax.f32 %v4575, 0.0
        %v4702 = vmax.f32 %v4576, 0.0
        %v4703 = vmax.f32 %v4577, 0.0
        %v4704 = vmax.f32 %v4578, 0.0
        %v4705 = vmax.f32 %v4579, 0.0
        %v4706 = vmax.f32 %v4580, 0.0
        %v4707 = vmax.f32 %v4581, 0.0
        %v4708 = vmax.f32 %v4582, 0.0
        %v4709 = vmax.f32 %v4583, 0.0
        %v4710 = vmax.f32 %v4584, 0.0
        %v4711 = vmax.f32 %v4585, 0.0
        %v4712 = vmax.f32 %v4586, 0.0
        %v4713 = vmax.f32 %v4587, 0.0
        %v4714 = vmax.f32 %v4588, 0.0
        %v4715 = vmax.f32 %v4589, 0.0
        %v4716 = vmax.f32 %v4590, 0.0
        %v4717 = vmax.f32 %v4591, 0.0
        %v4718 = vmax.f32 %v4592, 0.0
        %v4719 = vmax.f32 %v4593, 0.0
        %v4720 = vmax.f32 %v4594, 0.0
        %v4721 = vmax.f32 %v4595, 0.0
        %v4722 = vmax.f32 %v4596, 0.0
        %v4723 = vmax.f32 %v4597, 0.0
        %v4724 = vmax.f32 %v4598, 0.0
        %v4725 = vmax.f32 %v4599, 0.0
        %v4726 = vmax.f32 %v4600, 0.0
        %v4727 = vmax.f32 %v4601, 0.0
        %v4728 = vmax.f32 %v4602, 0.0
        %v4729 = vmax.f32 %v4603, 0.0
        %v4730 = vmax.f32 %v4604, 0.0
        %v4731 = vmax.f32 %v4605, 0.0
        %v4732 = vmax.f32 %v4606, 0.0
        %v4733 = vmax.f32 %v4607, 0.0
        %v4734 = vmax.f32 %v4608, 0.0
        %v4735 = vmax.f32 %v4609, 0.0
        %v4736 = vmax.f32 %v4610, 0.0
        %v4737 = vmax.f32 %v4611, 0.0
        %v4738 = vmax.f32 %v4612, 0.0
        %v4739 = vmax.f32 %v4613, 0.0
        %v4740 = vmax.f32 %v4614, 0.0
        %v4741 = vmax.f32 %v4615, 0.0
        %v4742 = vmax.f32 %v4616, 0.0
        %v4743 = vmax.f32 %v4617, 0.0
        %v4744 = vmax.f32 %v4618, 0.0
        %v4745 = vmax.f32 %v4619, 0.0
        %v4746 = vmax.f32 %v4620, 0.0
        %v4747 = vmax.f32 %v4621, 0.0
        %v4748 = vmax.f32 %v4622, 0.0
        %v4749 = vmax.f32 %v4623, 0.0
        %v4750 = vmax.f32 %v4624, 0.0
        %v4751 = vmax.f32 %v4625, 0.0
        %v4752 = vmax.f32 %v4626, 0.0
        %v4753 = vmax.f32 %v4627, 0.0
        %v4754 = vmax.f32 %v4628, 0.0
        %v4755 = vmax.f32 %v4629, 0.0
        %v4756 = vmax.f32 %v4630, 0.0
        %v4757 = vmax.f32 %v4631, 0.0
        %v4758 = vmax.f32 %v4632, 0.0
        %v4759 = vmax.f32 %v4633, 0.0
        %v4760 = vmax.f32 %v4634, 0.0
        %v4761 = vmax.f32 %v4635, 0.0
        %v4762 = vmax.f32 %v4636, 0.0
        %v4763 = vmax.f32 %v4637, 0.0
        %v4764 = vmax.f32 %v4638, 0.0
        %v4765 = vmax.f32 %v4639, 0.0
        %v4766 = vmax.f32 %v4640, 0.0
        %v4767 = vmax.f32 %v4641, 0.0
        %v4768 = vmax.f32 %v4642, 0.0
        %v4769 = vmax.f32 %v4643, 0.0
        %v4770 = vmax.f32 %v4644, 0.0
        %v4771 = vmax.f32 %v4645, 0.0
        %v4772 = vmax.f32 %v4646, 0.0
        %v4773 = vmax.f32 %v4647, 0.0
        %v4774 = vmax.f32 %v4648, 0.0
        %v4775 = vmax.f32 %v4649, 0.0
        %v4776 = vmax.f32 %v4650, 0.0
        %v4777 = vmax.f32 %v4651, 0.0
        %v4778 = vmax.f32 %v4652, 0.0
        %v4779 = vmax.f32 %v4653, 0.0
        %v4780 = vmax.f32 %v4654, 0.0
        %v4781 = vmax.f32 %v4655, 0.0
        %v4782 = vmax.f32 %v4656, 0.0
        %v4783 = vmax.f32 %v4657, 0.0
        %v4784 = vmax.f32 %v4658, 0.0
        %v4785 = vmax.f32 %v4659, 0.0
        %v4786 = vmax.f32 %v4660, 0.0
        %v4787 = vmax.f32 %v4661, 0.0
        %v4788 = vmax.f32 %v4662, 0.0
        %v4789 = vmax.f32 %v4663, 0.0
        %v4790 = vmax.f32 %v4664, 0.0
        %v4791 = vmax.f32 %v4665, 0.0
        %v4792 = vmax.f32 %v4666, 0.0
        %v4793 = vmax.f32 %v4667, 0.0
        %v4794 = vmax.f32 %v4668, 0.0
        %v4795 = vmax.f32 %v4669, 0.0
        %v4796 = vmax.f32 %v4670, 0.0
        %v4797 = vmax.f32 %v4671, 0.0
        %v4798 = vmax.f32 %v4672, 0.0
        %v4799 = vmax.f32 %v4673, 0.0
        %v4800 = vmax.f32 %v4674, 0.0
        %v4801 = vmax.f32 %v4675, 0.0
        %v4802 = vmax.f32 %v4676, 0.0
        %v4803 = vmax.f32 %v4677, 0.0
        %v4804 = vmax.f32 %v4678, 0.0
        %v4805 = vmax.f32 %v4679, 0.0
        %4806 = vst [vmem:[%s260] sm:$0xff] %v4680
        %4807 = vst [vmem:[%s260 + $0x8] sm:$0xff] %v4681
        %4808 = vst [vmem:[%s260 + $0x10] sm:$0xff] %v4682
        %4809 = vst [vmem:[%s260 + $0x18] sm:$0xff] %v4683
        %4810 = vst [vmem:[%s260 + $0x20] sm:$0xff] %v4684
        %4811 = vst [vmem:[%s260 + $0x28] sm:$0xff] %v4685
        %4812 = vst [vmem:[%s260 + $0x30] sm:$0xff] %v4686
        %4813 = vst [vmem:[%s260 + $0x38] sm:$0xff] %v4687
        %4814 = vst [vmem:[%s260 + $0x40] sm:$0xff] %v4688
        %4815 = vst [vmem:[%s260 + $0x48] sm:$0xff] %v4689
        %4816 = vst [vmem:[%s260 + $0x50] sm:$0xff] %v4690
        %4817 = vst [vmem:[%s260 + $0x58] sm:$0xff] %v4691
        %4818 = vst [vmem:[%s260 + $0x60] sm:$0xff] %v4692
        %4819 = vst [vmem:[%s260 + $0x68] sm:$0xff] %v4693
        %4820 = vst [vmem:[%s260 + $0x70] sm:$0xff] %v4694
        %4821 = vst [vmem:[%s260 + $0x78] sm:$0xff] %v4695
        %4822 = vst [vmem:[%s260 + $0x80] sm:$0xff] %v4696
        %4823 = vst [vmem:[%s260 + $0x88] sm:$0xff] %v4697
        %4824 = vst [vmem:[%s260 + $0x90] sm:$0xff] %v4698
        %4825 = vst [vmem:[%s260 + $0x98] sm:$0xff] %v4699
        %4826 = vst [vmem:[%s260 + $0xa0] sm:$0xff] %v4700
        %4827 = vst [vmem:[%s260 + $0xa8] sm:$0xff] %v4701
        %4828 = vst [vmem:[%s260 + $0xb0] sm:$0xff] %v4702
        %4829 = vst [vmem:[%s260 + $0xb8] sm:$0xff] %v4703
        %4830 = vst [vmem:[%s260 + $0xc0] sm:$0xff] %v4704
        %4831 = vst [vmem:[%s260 + $0xc8] sm:$0xff] %v4705
        %4832 = vst [vmem:[%s260 + $0xd0] sm:$0xff] %v4706
        %4833 = vst [vmem:[%s260 + $0xd8] sm:$0xff] %v4707
        %4834 = vst [vmem:[%s260 + $0xe0] sm:$0xff] %v4708
        %4835 = vst [vmem:[%s260 + $0xe8] sm:$0xff] %v4709
        %4836 = vst [vmem:[%s260 + $0xf0] sm:$0xff] %v4710
        %4837 = vst [vmem:[%s260 + $0xf8] sm:$0xff] %v4711
        %4838 = vst [vmem:[%s260 + $0x100] sm:$0xff] %v4712
        %4839 = vst [vmem:[%s260 + $0x108] sm:$0xff] %v4713
        %4840 = vst [vmem:[%s260 + $0x110] sm:$0xff] %v4714
        %4841 = vst [vmem:[%s260 + $0x118] sm:$0xff] %v4715
        %4842 = vst [vmem:[%s260 + $0x120] sm:$0xff] %v4716
        %4843 = vst [vmem:[%s260 + $0x128] sm:$0xff] %v4717
        %4844 = vst [vmem:[%s260 + $0x130] sm:$0xff] %v4718
        %4845 = vst [vmem:[%s260 + $0x138] sm:$0xff] %v4719
        %4846 = vst [vmem:[%s260 + $0x140] sm:$0xff] %v4720
        %4847 = vst [vmem:[%s260 + $0x148] sm:$0xff] %v4721
        %4848 = vst [vmem:[%s260 + $0x150] sm:$0xff] %v4722
        %4849 = vst [vmem:[%s260 + $0x158] sm:$0xff] %v4723
        %4850 = vst [vmem:[%s260 + $0x160] sm:$0xff] %v4724
        %4851 = vst [vmem:[%s260 + $0x168] sm:$0xff] %v4725
        %4852 = vst [vmem:[%s260 + $0x170] sm:$0xff] %v4726
        %4853 = vst [vmem:[%s260 + $0x178] sm:$0xff] %v4727
        %4854 = vst [vmem:[%s260 + $0x180] sm:$0xff] %v4728
        %4855 = vst [vmem:[%s260 + $0x188] sm:$0xff] %v4729
        %4856 = vst [vmem:[%s260 + $0x190] sm:$0xff] %v4730
        %4857 = vst [vmem:[%s260 + $0x198] sm:$0xff] %v4731
        %4858 = vst [vmem:[%s260 + $0x1a0] sm:$0xff] %v4732
        %4859 = vst [vmem:[%s260 + $0x1a8] sm:$0xff] %v4733
        %4860 = vst [vmem:[%s260 + $0x1b0] sm:$0xff] %v4734
        %4861 = vst [vmem:[%s260 + $0x1b8] sm:$0xff] %v4735
        %4862 = vst [vmem:[%s260 + $0x1c0] sm:$0xff] %v4736
        %4863 = vst [vmem:[%s260 + $0x1c8] sm:$0xff] %v4737
        %4864 = vst [vmem:[%s260 + $0x1d0] sm:$0xff] %v4738
        %4865 = vst [vmem:[%s260 + $0x1d8] sm:$0xff] %v4739
        %4866 = vst [vmem:[%s260 + $0x1e0] sm:$0xff] %v4740
        %4867 = vst [vmem:[%s260 + $0x1e8] sm:$0xff] %v4741
        %4868 = vst [vmem:[%s260 + $0x1f0] sm:$0xff] %v4742
        %4869 = vst [vmem:[%s260 + $0x1f8] sm:$0xff] %v4743
        %4870 = vst [vmem:[%s260 + $0x200] sm:$0xff] %v4744
        %4871 = vst [vmem:[%s260 + $0x208] sm:$0xff] %v4745
        %4872 = vst [vmem:[%s260 + $0x210] sm:$0xff] %v4746
        %4873 = vst [vmem:[%s260 + $0x218] sm:$0xff] %v4747
        %4874 = vst [vmem:[%s260 + $0x220] sm:$0xff] %v4748
        %4875 = vst [vmem:[%s260 + $0x228] sm:$0xff] %v4749
        %4876 = vst [vmem:[%s260 + $0x230] sm:$0xff] %v4750
        %4877 = vst [vmem:[%s260 + $0x238] sm:$0xff] %v4751
        %4878 = vst [vmem:[%s260 + $0x240] sm:$0xff] %v4752
        %4879 = vst [vmem:[%s260 + $0x248] sm:$0xff] %v4753
        %4880 = vst [vmem:[%s260 + $0x250] sm:$0xff] %v4754
        %4881 = vst [vmem:[%s260 + $0x258] sm:$0xff] %v4755
        %4882 = vst [vmem:[%s260 + $0x260] sm:$0xff] %v4756
        %4883 = vst [vmem:[%s260 + $0x268] sm:$0xff] %v4757
        %4884 = vst [vmem:[%s260 + $0x270] sm:$0xff] %v4758
        %4885 = vst [vmem:[%s260 + $0x278] sm:$0xff] %v4759
        %4886 = vst [vmem:[%s260 + $0x280] sm:$0xff] %v4760
        %4887 = vst [vmem:[%s260 + $0x288] sm:$0xff] %v4761
        %4888 = vst [vmem:[%s260 + $0x290] sm:$0xff] %v4762
        %4889 = vst [vmem:[%s260 + $0x298] sm:$0xff] %v4763
        %4890 = vst [vmem:[%s260 + $0x2a0] sm:$0xff] %v4764
        %4891 = vst [vmem:[%s260 + $0x2a8] sm:$0xff] %v4765
        %4892 = vst [vmem:[%s260 + $0x2b0] sm:$0xff] %v4766
        %4893 = vst [vmem:[%s260 + $0x2b8] sm:$0xff] %v4767
        %4894 = vst [vmem:[%s260 + $0x2c0] sm:$0xff] %v4768
        %4895 = vst [vmem:[%s260 + $0x2c8] sm:$0xff] %v4769
        %4896 = vst [vmem:[%s260 + $0x2d0] sm:$0xff] %v4770
        %4897 = vst [vmem:[%s260 + $0x2d8] sm:$0xff] %v4771
        %4898 = vst [vmem:[%s260 + $0x2e0] sm:$0xff] %v4772
        %4899 = vst [vmem:[%s260 + $0x2e8] sm:$0xff] %v4773
        %4900 = vst [vmem:[%s260 + $0x2f0] sm:$0xff] %v4774
        %4901 = vst [vmem:[%s260 + $0x2f8] sm:$0xff] %v4775
        %4902 = vst [vmem:[%s260 + $0x300] sm:$0xff] %v4776
        %4903 = vst [vmem:[%s260 + $0x308] sm:$0xff] %v4777
        %4904 = vst [vmem:[%s260 + $0x310] sm:$0xff] %v4778
        %4905 = vst [vmem:[%s260 + $0x318] sm:$0xff] %v4779
        %4906 = vst [vmem:[%s260 + $0x320] sm:$0xff] %v4780
        %4907 = vst [vmem:[%s260 + $0x328] sm:$0xff] %v4781
        %4908 = vst [vmem:[%s260 + $0x330] sm:$0xff] %v4782
        %4909 = vst [vmem:[%s260 + $0x338] sm:$0xff] %v4783
        %4910 = vst [vmem:[%s260 + $0x340] sm:$0xff] %v4784
        %4911 = vst [vmem:[%s260 + $0x348] sm:$0xff] %v4785
        %4912 = vst [vmem:[%s260 + $0x350] sm:$0xff] %v4786
        %4913 = vst [vmem:[%s260 + $0x358] sm:$0xff] %v4787
        %4914 = vst [vmem:[%s260 + $0x360] sm:$0xff] %v4788
        %4915 = vst [vmem:[%s260 + $0x368] sm:$0xff] %v4789
        %4916 = vst [vmem:[%s260 + $0x370] sm:$0xff] %v4790
        %4917 = vst [vmem:[%s260 + $0x378] sm:$0xff] %v4791
        %4918 = vst [vmem:[%s260 + $0x380] sm:$0xff] %v4792
        %4919 = vst [vmem:[%s260 + $0x388] sm:$0xff] %v4793
        %4920 = vst [vmem:[%s260 + $0x390] sm:$0xff] %v4794
        %4921 = vst [vmem:[%s260 + $0x398] sm:$0xff] %v4795
        %4922 = vst [vmem:[%s260 + $0x3a0] sm:$0xff] %v4796
        %4923 = vst [vmem:[%s260 + $0x3a8] sm:$0xff] %v4797
        %4924 = vst [vmem:[%s260 + $0x3b0] sm:$0xff] %v4798
        %4925 = vst [vmem:[%s260 + $0x3b8] sm:$0xff] %v4799
        %4926 = vst [vmem:[%s260 + $0x3c0] sm:$0xff] %v4800
        %4927 = vst [vmem:[%s260 + $0x3c8] sm:$0xff] %v4801
        %4928 = vst [vmem:[%s260 + $0x3d0] sm:$0xff] %v4802
        %4929 = vst [vmem:[%s260 + $0x3d8] sm:$0xff] %v4803
        %4930 = vst [vmem:[%s260 + $0x3e0] sm:$0xff] %v4804
        %4931 = vst [vmem:[%s260 + $0x3e8] sm:$0xff] %v4805
      $region60: #{apply_node_func.1} parent=39 // pred_fallthru
        _
      %p4932 = scmp.eq.s32.totalorder %s20, 2
      %s4933 = scalar_select %p4932, %s21, 0
      %s4934 = smul.u32 126, %s4933
      %p4935 = scmp.lt.s32.totalorder %s4934, 125
      %s4936 = scalar_select %p4935, %s4934, 125
      %s4937 = smul.addr %s4936, 8
      %s4938 = scalar_lea.vmem %s5, %s4937
      // Predicated region
      $region65: #{apply_node_func.1} parent=39 // pred_check
        %p4939 = pneg %p164
      $region66: #{apply_node_func.1} parent=39 // pred_check_branch
        %4941 = sbr.rel (%p4939) target = $region68
      $region67: #{apply_node_func.1} parent=39 // pred_region
        %p4942 = scmp.eq.s32.totalorder %s20, 2
        %s4943 = scalar_select %p4942, %s21, 0
        %s4944 = smul.u32 126, %s4943
      $region68: #{apply_node_func.1} parent=39 // pred_fallthru
        _
    $region40: #{apply_node_func.1} parent=5 // pred_fallthru
      _
    %p4945 = scmp.le.s32.totalorder 2, %s11
    // Predicated region
    $region69: #{apply_node_func.1} parent=5 // pred_check
      %p4946 = pneg %p4945
    $region70: #{apply_node_func.1} parent=5 // pred_check_branch
      %4948 = sbr.rel (%p4946) target = $region72
    $region71: #{apply_node_func.1} parent=5 // pred_region
      %s4949 = ssub.s32 %s11, 2
      // Predicated region
      $region73: #{apply_node_func.1} parent=71 // pred_check
        %p4950 = pneg %p170
      $region74: #{apply_node_func.1} parent=71 // pred_check_branch
        %4952 = sbr.rel (%p4950) target = $region76
      $region75: #{apply_node_func.1} parent=71 // pred_region
        %p4953 = scmp.eq.s32.totalorder %s22, 2
        %s4954 = scalar_select %p4953, %s23, 0
        %s4955 = smul.u32 126, %s4954
        %p4956 = scmp.lt.s32.totalorder %s4955, 125
        %s4957 = scalar_select %p4956, %s4955, 125
        %s4958 = smul.addr %s4957, 8
        %s4959 = scalar_lea.vmem %s5, %s4958
      $region76: #{apply_node_func.1} parent=71 // pred_fallthru
        _
    $region72: #{apply_node_func.1} parent=5 // pred_fallthru
      _
  $region6: #{apply_node_func.1} parent=0 // loop_footer
    %s15 = sadd.s32 1, %s11
  $region7: #{apply_node_func.1} parent=0 // loop_footer_branch
    %10 = sbr.rel target = $region3
  $region8: #{apply_node_func.1} parent=0 // loop_exit
    _

</llo_original>
